<compile_context>
chip_gen: v5e
topology: v5e:2x2
jax: 0.10.0
libtpu: 0.0.40
codegen_flags: <defaults>
</compile_context>

<pallas_src>
import functools

import jax
import jax.numpy as jnp
from jax.experimental import pallas as pl
from jax.experimental.pallas import tpu as pltpu


_VMEM_LIMIT = 48 * 1024 * 1024   # <= v7x physical (64 MiB); fine on v5e/v6e.


# ------------------------------ tiling helpers -------------------------------

def _pick_tile(dim, target, align):
    """Largest tile <= target that divides `dim` and is `align`-aligned.

    Falls back to the full dimension (always a legal block size) when no
    aligned divisor exists, so small/odd shapes stay correct.
    """
    if dim <= target:
        return dim
    t = (target // align) * align
    while t >= align:
        if dim % t == 0:
            return t
        t -= align
    return dim


def _pick_tn(N):
    """>=2 lane-dense N blocks when possible (keeps both v7x TCs busy)."""
    if N >= 256:
        t = _pick_tile(N, N // 2, 128)
        if t < N:
            return t
    return N


# --------------------------- fused matmul kernel ------------------------------
# o = act( LN(x) @ w + b ) [+ residual]
#   * optional LayerNorm prologue on the (full-K) x tile, f32
#   * bf16 MXU operands, f32 accumulate (single dot, tk = K)
#   * bias / exact-erf GELU / residual epilogue in f32

def _fused_matmul_kernel(*refs, has_ln, ln_eps, activation, has_residual):
    it = iter(refs)
    x_ref = next(it)
    g_ref = bt_ref = None
    if has_ln:
        g_ref = next(it)
        bt_ref = next(it)
    w_ref = next(it)
    b_ref = next(it)
    r_ref = next(it) if has_residual else None
    o_ref = next(it)

    x = x_ref[...]
    if has_ln:
        x = x.astype(jnp.float32)
        mu = jnp.mean(x, axis=-1, keepdims=True)
        xc = x - mu
        var = jnp.mean(xc * xc, axis=-1, keepdims=True)
        x = xc * jax.lax.rsqrt(var + ln_eps) * g_ref[...] + bt_ref[...]

    y = jnp.dot(x.astype(jnp.bfloat16), w_ref[...],
                preferred_element_type=jnp.float32) + b_ref[...]
    if activation == "gelu":
        y = jax.nn.gelu(y, approximate=False)      # exact (erf) GELU, f32
    if r_ref is not None:
        y = y + r_ref[...]                         # fused residual add, f32
    o_ref[...] = y.astype(o_ref.dtype)


def fused_matmul(x, w, b, *, ln=None, ln_eps=1e-6, residual=None,
                 activation=None, out_dtype=jnp.float32):
    """o = act(LN(x) @ w + b) [+ residual]; bf16 MXU operands, f32 accumulate."""
    M, K = x.shape
    K2, N = w.shape
    assert K == K2
    has_ln = ln is not None
    if has_ln:
        x = x.astype(jnp.float32)
        g = ln[0].astype(jnp.float32).reshape(1, K)
        bt = ln[1].astype(jnp.float32).reshape(1, K)
    else:
        x = x.astype(jnp.bfloat16)
    w = w.astype(jnp.bfloat16)
    b = b.astype(jnp.float32).reshape(1, N)

    tm = _pick_tile(M, 256, 16)        # 16-aligned for bf16 sublane packing
    tn = _pick_tn(N)
    grid = (M // tm, N // tn)

    in_specs = [pl.BlockSpec((tm, K), lambda i, j: (i, 0))]
    args = [x]
    if has_ln:
        in_specs += [pl.BlockSpec((1, K), lambda i, j: (0, 0)),
                     pl.BlockSpec((1, K), lambda i, j: (0, 0))]
        args += [g, bt]
    in_specs += [pl.BlockSpec((K, tn), lambda i, j: (0, j)),
                 pl.BlockSpec((1, tn), lambda i, j: (0, j))]
    args += [w, b]
    if residual is not None:
        in_specs.append(pl.BlockSpec((tm, tn), lambda i, j: (i, j)))
        args.append(residual.astype(jnp.float32))

    kern = functools.partial(_fused_matmul_kernel, has_ln=has_ln, ln_eps=ln_eps,
                             activation=activation,
                             has_residual=residual is not None)
    return pl.pallas_call(
        kern,
        out_shape=jax.ShapeDtypeStruct((M, N), out_dtype),
        grid=grid,
        in_specs=in_specs,
        out_specs=pl.BlockSpec((tm, tn), lambda i, j: (i, j)),
        compiler_params=pltpu.CompilerParams(
            dimension_semantics=("parallel", "parallel"),
            vmem_limit_bytes=_VMEM_LIMIT),
    )(*args)


# ------------------------------ layernorm kernel ------------------------------
# Standalone LN (only used for the final model.norm on the cls rows).

def _layernorm_kernel(x_ref, g_ref, b_ref, o_ref, *, eps):
    x = x_ref[...].astype(jnp.float32)
    mu = jnp.mean(x, axis=-1, keepdims=True)
    xc = x - mu
    var = jnp.mean(xc * xc, axis=-1, keepdims=True)
    y = xc * jax.lax.rsqrt(var + eps) * g_ref[...] + b_ref[...]
    o_ref[...] = y.astype(o_ref.dtype)


def layernorm(x, g, b, *, eps, out_dtype=jnp.float32):
    M, D = x.shape
    tm = _pick_tile(M, 256, 8)
    kern = functools.partial(_layernorm_kernel, eps=eps)
    return pl.pallas_call(
        kern,
        out_shape=jax.ShapeDtypeStruct((M, D), out_dtype),
        grid=(M // tm,),
        in_specs=[
            pl.BlockSpec((tm, D), lambda i: (i, 0)),
            pl.BlockSpec((1, D), lambda i: (0, 0)),
            pl.BlockSpec((1, D), lambda i: (0, 0)),
        ],
        out_specs=pl.BlockSpec((tm, D), lambda i: (i, 0)),
        compiler_params=pltpu.CompilerParams(
            dimension_semantics=("parallel",)),
    )(x, g.reshape(1, D), b.reshape(1, D))


# ------------------------------ attention kernel ------------------------------
# qkv block: (1, S, 3*D) packed timm-style [q_h0..q_hH | k_h0.. | v_h0..].
# One grid point handles one head group (Dg = D / G lanes):
#   * lane-dense 128-multiple-wide loads of q/k/v windows
#   * attention scale folded into q (not the SxS score matrix)
#   * per-head 2-D dots, f32 softmax with EUP reciprocal
#   * single lane-dense (S, Dg) store of the concatenated head outputs.

def _attention_kernel(qkv_ref, o_ref, *, heads_per_blk, hd, scale, D, Dg):
    if Dg == D:
        q = qkv_ref[0, :, 0:D]
        k = qkv_ref[0, :, D:2 * D]
        v = qkv_ref[0, :, 2 * D:3 * D]
    else:
        off = pl.program_id(1) * Dg
        q = qkv_ref[0, :, pl.ds(pl.multiple_of(off, 128), Dg)]
        k = qkv_ref[0, :, pl.ds(pl.multiple_of(D + off, 128), Dg)]
        v = qkv_ref[0, :, pl.ds(pl.multiple_of(2 * D + off, 128), Dg)]
    q = (q * scale).astype(jnp.bfloat16)

    outs = []
    for h in range(heads_per_blk):
        sl = slice(h * hd, (h + 1) * hd)
        s = jax.lax.dot_general(q[:, sl], k[:, sl], (((1,), (1,)), ((), ())),
                                preferred_element_type=jnp.float32)   # (S, S)
        m = jnp.max(s, axis=-1, keepdims=True)                        # f32 softmax
        p = jnp.exp(s - m)
        l = jnp.sum(p, axis=-1, keepdims=True)
        p = p * pl.reciprocal(l, approx=True)                         # EUP reciprocal
        o_h = jnp.dot(p.astype(jnp.bfloat16), v[:, sl],
                      preferred_element_type=jnp.float32)
        outs.append(o_h.astype(o_ref.dtype))
    o = outs[0] if len(outs) == 1 else jnp.concatenate(outs, axis=-1)
    o_ref[0, :, :] = o                                                # one dense store


def attention(qkv, *, heads, scale, out_dtype=jnp.bfloat16):
    B, S, threeD = qkv.shape
    D = threeD // 3
    hd = D // heads
    # Head groups: split D into 2 lane-dense halves when legal so a B=1 call
    # still has >=2 parallel grid blocks (v7x megacore); toy D=128 -> G=1.
    G = 2 if (heads % 2 == 0 and (D // 2) % 128 == 0) else 1
    Dg = D // G
    kern = functools.partial(_attention_kernel, heads_per_blk=heads // G,
                             hd=hd, scale=scale, D=D, Dg=Dg)
    return pl.pallas_call(
        kern,
        out_shape=jax.ShapeDtypeStruct((B, S, D), out_dtype),
        grid=(B, G),
        in_specs=[pl.BlockSpec((1, S, threeD), lambda b, g: (b, 0, 0))],
        out_specs=pl.BlockSpec((1, S, Dg), lambda b, g: (b, 0, g)),
        compiler_params=pltpu.CompilerParams(
            dimension_semantics=("parallel", "parallel"),
            vmem_limit_bytes=_VMEM_LIMIT),
    )(qkv)


# ------------------------------ l2-normalize kernel ---------------------------

def _l2norm_kernel(x_ref, o_ref):
    x = x_ref[...]
    n = jnp.sqrt(jnp.sum(x * x, axis=-1, keepdims=True))
    # F.normalize: x / max(||x||_2, eps), eps = 1e-12 (exact division here).
    o_ref[...] = x / jnp.maximum(n, 1e-12)


def l2_normalize(x):
    M, N = x.shape
    tm = _pick_tile(M, 256, 8)
    return pl.pallas_call(
        _l2norm_kernel,
        out_shape=jax.ShapeDtypeStruct((M, N), jnp.float32),
        grid=(M // tm,),
        in_specs=[pl.BlockSpec((tm, N), lambda i: (i, 0))],
        out_specs=pl.BlockSpec((tm, N), lambda i: (i, 0)),
        compiler_params=pltpu.CompilerParams(
            dimension_semantics=("parallel",)),
    )(x)


# --------------------------- erf-in-kernel feature probe ----------------------

_ERF_IN_KERNEL = None


def erf_in_kernel_supported():
    """Probe (once, eagerly) whether exact-erf GELU lowers inside a TPU kernel."""
    global _ERF_IN_KERNEL
    if _ERF_IN_KERNEL is None:
        def k(x_ref, o_ref):
            o_ref[...] = jax.nn.gelu(x_ref[...], approximate=False)
        try:
            out = pl.pallas_call(
                k, out_shape=jax.ShapeDtypeStruct((8, 128), jnp.float32)
            )(jnp.zeros((8, 128), jnp.float32))
            jax.block_until_ready(out)
            _ERF_IN_KERNEL = True
        except Exception:
            _ERF_IN_KERNEL = False
    return _ERF_IN_KERNEL


# ------------------------------- parameters -----------------------------------

def init_params(key, *, in_chans, patch, dim, depth, mlp_hidden, out_dim,
                seq_len):
    def nrm(k, shape, scale=0.02, dtype=jnp.float32):
        return (scale * jax.random.normal(k, shape, jnp.float32)).astype(dtype)

    wdt = jnp.bfloat16  # matmul weights stored bf16 once; f32 accumulate in-kernel
    keys = iter(jax.random.split(key, 8 + 6 * depth))
    p = {}
    p["patch_w"] = nrm(next(keys), (in_chans * patch * patch, dim), dtype=wdt)
    p["patch_b"] = jnp.zeros((dim,), jnp.float32)
    p["cls_token"] = nrm(next(keys), (1, 1, dim))
    p["pos_embed"] = nrm(next(keys), (1, seq_len, dim))

    blocks = []
    for _ in range(depth):
        blocks.append(dict(
            ln1_g=jnp.ones((dim,), jnp.float32),
            ln1_b=jnp.zeros((dim,), jnp.float32),
            qkv_w=nrm(next(keys), (dim, 3 * dim), dtype=wdt),
            qkv_b=jnp.zeros((3 * dim,), jnp.float32),
            proj_w=nrm(next(keys), (dim, dim), dtype=wdt),
            proj_b=jnp.zeros((dim,), jnp.float32),
            ln2_g=jnp.ones((dim,), jnp.float32),
            ln2_b=jnp.zeros((dim,), jnp.float32),
            fc1_w=nrm(next(keys), (dim, mlp_hidden), dtype=wdt),
            fc1_b=jnp.zeros((mlp_hidden,), jnp.float32),
            fc2_w=nrm(next(keys), (mlp_hidden, dim), dtype=wdt),
            fc2_b=jnp.zeros((dim,), jnp.float32),
        ))
    p["blocks"] = blocks

    p["norm_g"] = jnp.ones((dim,), jnp.float32)     # model.norm (eps 1e-6)
    p["norm_b"] = jnp.zeros((dim,), jnp.float32)
    p["lnf_g"] = jnp.ones((dim,), jnp.float32)      # added model.layer_norm (eps 1e-5)
    p["lnf_b"] = jnp.zeros((dim,), jnp.float32)
    p["head_w"] = nrm(next(keys), (dim, out_dim), dtype=wdt)  # replaced model.head
    p["head_b"] = jnp.zeros((out_dim,), jnp.float32)
    return p


# --------------------------------- forward ------------------------------------

def vit_b32_forward(x, params, *, patch, heads, use_fused_gelu):
    B, C, H, W = x.shape
    Hp, Wp = H // patch, W // patch
    N = Hp * Wp
    D = params["patch_w"].shape[1]
    hd = D // heads
    scale = hd ** -0.5

    # patch_embed: Conv2d(k=stride=patch) == im2col + matmul. Cast to bf16 first
    # to halve the strided HBM copy; flatten channel-major to match the PyTorch
    # conv weight layout (D, C, P, P).
    # TODO(synk): fold the im2col gather into the matmul's x BlockSpec index_map.
    xb = x.astype(jnp.bfloat16)
    patches = xb.reshape(B, C, Hp, patch, Wp, patch)
    patches = patches.transpose(0, 2, 4, 1, 3, 5).reshape(B * N, C * patch * patch)
    tok = fused_matmul(patches, params["patch_w"], params["patch_b"]).reshape(B, N, D)

    cls = jnp.broadcast_to(params["cls_token"], (B, 1, D))
    h = jnp.concatenate([cls, tok], axis=1) + params["pos_embed"]   # f32 residual
    # pos_drop is dropout -> identity at inference.
    S = h.shape[1]
    M = B * S

    for blk in params["blocks"]:
        h2d = h.reshape(M, D)
        # --- MHSA: LN1 fused into qkv prologue, residual fused into proj ---
        qkv = fused_matmul(h2d, blk["qkv_w"], blk["qkv_b"],
                           ln=(blk["ln1_g"], blk["ln1_b"]), ln_eps=1e-6,
                           out_dtype=jnp.bfloat16)
        a = attention(qkv.reshape(B, S, 3 * D), heads=heads, scale=scale)
        h = fused_matmul(a.reshape(M, D), blk["proj_w"], blk["proj_b"],
                         residual=h2d).reshape(B, S, D)

        h2d = h.reshape(M, D)
        # --- MLP: LN2 fused into fc1 prologue (+GELU), residual fused into fc2 ---
        if use_fused_gelu:
            y = fused_matmul(h2d, blk["fc1_w"], blk["fc1_b"],
                             ln=(blk["ln2_g"], blk["ln2_b"]), ln_eps=1e-6,
                             activation="gelu", out_dtype=jnp.bfloat16)
        else:
            # Fallback: exact-erf GELU as plain-JAX glue if erf does not lower.
            y = fused_matmul(h2d, blk["fc1_w"], blk["fc1_b"],
                             ln=(blk["ln2_g"], blk["ln2_b"]), ln_eps=1e-6)
            y = jax.nn.gelu(y, approximate=False).astype(jnp.bfloat16)
        h = fused_matmul(y, blk["fc2_w"], blk["fc2_b"],
                         residual=h2d).reshape(B, S, D)

    # model.norm is row-wise and only x[:, 0] is consumed downstream, so
    # normalize just the cls rows (identical result, 1/S the work + traffic).
    cls_out = h[:, 0]                                            # (B, D) f32
    y = layernorm(cls_out, params["norm_g"], params["norm_b"], eps=1e-6)
    # pre_logits is nn.Identity for the not_pretrained vit_base_patch32_224.
    # TODO(synk): the in21k variant's pre_logits (Linear + Tanh) is not modeled.
    y = fused_matmul(y, params["head_w"], params["head_b"],
                     ln=(params["lnf_g"], params["lnf_b"]), ln_eps=1e-5)
    return l2_normalize(y)                                       # F.normalize(dim=-1)


# Note: the GeM module is defined in the reference code but never used in
# ViTB32.forward, so it is intentionally not part of this kernel.


# ----------------------------------- main --------------------------------------

if __name__ == "__main__":
    # Small, shape-consistent configuration (ViT-B/32 structure at toy size):
    B, C, H, W = 2, 3, 64, 64       # NCHW input
    PATCH = 32                      # /32 patch size -> 2x2 = 4 patches
    DIM = 128                       # hidden size
    DEPTH = 2                       # transformer blocks
    HEADS = 4                       # head_dim = 32
    MLP_HIDDEN = 256
    EMBED_DIM = 64                  # opt.embed_dim (new head output)
    SEQ = (H // PATCH) * (W // PATCH) + 1   # patches + cls token

    key = jax.random.PRNGKey(0)
    kx, kp = jax.random.split(key)
    x = jax.random.normal(kx, (B, C, H, W), jnp.float32)
    params = init_params(kp, in_chans=C, patch=PATCH, dim=DIM, depth=DEPTH,
                         mlp_hidden=MLP_HIDDEN, out_dim=EMBED_DIM, seq_len=SEQ)

    fwd = jax.jit(functools.partial(
        vit_b32_forward, patch=PATCH, heads=HEADS,
        use_fused_gelu=erf_in_kernel_supported()))

    out = fwd(x, params)
    out = jax.block_until_ready(out)

    assert out.shape == (B, EMBED_DIM), out.shape
    assert out.dtype == jnp.float32
    # output rows are L2-normalized
    norms = jnp.linalg.norm(out, axis=-1)
    assert bool(jnp.all(jnp.abs(norms - 1.0) < 1e-4))
    print("KERNEL_OK")
</pallas_src>

<mosaic_0001>
module attributes {stable_mosaic.version = 11 : i64} {
  func.func @_fused_matmul_kernel(%arg0: i32, %arg1: i32, %arg2: memref<8x3072xbf16, #tpu.memory_space<vmem>>, %arg3: memref<3072x128xbf16, #tpu.memory_space<vmem>>, %arg4: memref<1x128xf32, #tpu.memory_space<vmem>>, %arg5: memref<8x128xf32, #tpu.memory_space<vmem>>) attributes {dimension_semantics = [#tpu.dimension_semantics<parallel>, #tpu.dimension_semantics<parallel>], iteration_bounds = array<i64: 1, 1>, scalar_prefetch = 0 : i64, scratch_operands = 0 : i64, tpu.core_type = #tpu.core_type<tc>, window_params = [{transform_indices = @transform_0, window_bounds = array<i64: 8, 3072>}, {transform_indices = @transform_1, window_bounds = array<i64: 3072, 128>}, {transform_indices = @transform_2, window_bounds = array<i64: 1, 128>}, {transform_indices = @transform_3, window_bounds = array<i64: 8, 128>}]} {
    %c0 = arith.constant 0 : index
    %c0_0 = arith.constant 0 : index
    %0 = vector.load %arg2[%c0, %c0_0] : memref<8x3072xbf16, #tpu.memory_space<vmem>>, vector<8x3072xbf16>
    %c0_1 = arith.constant 0 : index
    %c0_2 = arith.constant 0 : index
    %1 = vector.load %arg3[%c0_1, %c0_2] : memref<3072x128xbf16, #tpu.memory_space<vmem>>, vector<3072x128xbf16>
    %cst = arith.constant dense<0.000000e+00> : vector<8x128xf32>
    %2 = tpu.matmul %0, %1, %cst {dimension_numbers = #tpu.dot_dimension_numbers<[1], [0], [0], [1], [0, 0, 1, 1], [], []>} : vector<8x3072xbf16>, vector<3072x128xbf16>, vector<8x128xf32> -> vector<8x128xf32>
    %c0_3 = arith.constant 0 : index
    %c0_4 = arith.constant 0 : index
    %3 = vector.load %arg4[%c0_3, %c0_4] : memref<1x128xf32, #tpu.memory_space<vmem>>, vector<1x128xf32>
    %4 = vector.broadcast %3 : vector<1x128xf32> to vector<8x128xf32>
    %5 = arith.addf %2, %4 : vector<8x128xf32>
    %c0_5 = arith.constant 0 : index
    %c0_6 = arith.constant 0 : index
    %6 = vector.load %arg5[%c0_5, %c0_6] : memref<8x128xf32, #tpu.memory_space<vmem>>, vector<8x128xf32>
    tpu.vector_store %arg5[%c0_5, %c0_6], %5 {strides = array<i32>} : memref<8x128xf32, #tpu.memory_space<vmem>>, vector<8x128xf32>,
    return
  }
  func.func @transform_0(%arg0: i32, %arg1: i32) -> (i32, i32) {
    %c0_i32 = arith.constant 0 : i32
    %c0_i32_0 = arith.constant 0 : i32
    return %arg0, %c0_i32 : i32, i32
  }
  func.func @transform_1(%arg0: i32, %arg1: i32) -> (i32, i32) {
    %c0_i32 = arith.constant 0 : i32
    %c0_i32_0 = arith.constant 0 : i32
    return %c0_i32, %arg1 : i32, i32
  }
  func.func @transform_2(%arg0: i32, %arg1: i32) -> (i32, i32) {
    %c0_i32 = arith.constant 0 : i32
    %c0_i32_0 = arith.constant 0 : i32
    return %c0_i32, %arg1 : i32, i32
  }
  func.func @transform_3(%arg0: i32, %arg1: i32) -> (i32, i32) {
    %c0_i32 = arith.constant 0 : i32
    return %arg0, %arg1 : i32, i32
  }
}

module attributes {stable_mosaic.version = 11 : i64} {
  func.func @_fused_matmul_kernel(%arg0: i32, %arg1: i32, %arg2: memref<10x128xf32, #tpu.memory_space<vmem>>, %arg3: memref<1x128xf32, #tpu.memory_space<vmem>>, %arg4: memref<1x128xf32, #tpu.memory_space<vmem>>, %arg5: memref<128x128xbf16, #tpu.memory_space<vmem>>, %arg6: memref<1x128xf32, #tpu.memory_space<vmem>>, %arg7: memref<10x128xbf16, #tpu.memory_space<vmem>>) attributes {dimension_semantics = [#tpu.dimension_semantics<parallel>, #tpu.dimension_semantics<parallel>], iteration_bounds = array<i64: 1, 3>, scalar_prefetch = 0 : i64, scratch_operands = 0 : i64, tpu.core_type = #tpu.core_type<tc>, window_params = [{transform_indices = @transform_0, window_bounds = array<i64: 10, 128>}, {pipeline_mode = #tpu.pipeline_mode<synchronous>, transform_indices = @transform_1, window_bounds = array<i64: 1, 128>}, {pipeline_mode = #tpu.pipeline_mode<synchronous>, transform_indices = @transform_2, window_bounds = array<i64: 1, 128>}, {transform_indices = @transform_3, window_bounds = array<i64: 128, 128>}, {transform_indices = @transform_4, window_bounds = array<i64: 1, 128>}, {transform_indices = @transform_5, window_bounds = array<i64: 10, 128>}]} {
    %c0 = arith.constant 0 : index
    %c0_0 = arith.constant 0 : index
    %0 = vector.load %arg2[%c0, %c0_0] : memref<10x128xf32, #tpu.memory_space<vmem>>, vector<10x128xf32>
    %cst = arith.constant dense<0.000000e+00> : vector<10xf32>
    %1 = vector.multi_reduction <add>, %0, %cst [1] : vector<10x128xf32> to vector<10xf32>
    %2 = vector.shape_cast %1 : vector<10xf32> to vector<10x1xf32>
    %cst_1 = arith.constant 1.280000e+02 : f32
    %3 = vector.broadcast %cst_1 : f32 to vector<10x1xf32>
    %4 = arith.divf %2, %3 : vector<10x1xf32>
    %5 = vector.broadcast %4 : vector<10x1xf32> to vector<10x128xf32>
    %6 = arith.subf %0, %5 : vector<10x128xf32>
    %7 = arith.mulf %6, %6 : vector<10x128xf32>
    %cst_2 = arith.constant dense<0.000000e+00> : vector<10xf32>
    %8 = vector.multi_reduction <add>, %7, %cst_2 [1] : vector<10x128xf32> to vector<10xf32>
    %9 = vector.shape_cast %8 : vector<10xf32> to vector<10x1xf32>
    %cst_3 = arith.constant 1.280000e+02 : f32
    %10 = vector.broadcast %cst_3 : f32 to vector<10x1xf32>
    %11 = arith.divf %9, %10 : vector<10x1xf32>
    %cst_4 = arith.constant 9.99999997E-7 : f32
    %12 = vector.broadcast %cst_4 : f32 to vector<10x1xf32>
    %13 = arith.addf %11, %12 : vector<10x1xf32>
    %14 = math.rsqrt %13 : vector<10x1xf32>
    %15 = vector.broadcast %14 : vector<10x1xf32> to vector<10x128xf32>
    %16 = arith.mulf %6, %15 : vector<10x128xf32>
    %c0_5 = arith.constant 0 : index
    %c0_6 = arith.constant 0 : index
    %17 = vector.load %arg3[%c0_5, %c0_6] : memref<1x128xf32, #tpu.memory_space<vmem>>, vector<1x128xf32>
    %18 = vector.broadcast %17 : vector<1x128xf32> to vector<10x128xf32>
    %19 = arith.mulf %16, %18 : vector<10x128xf32>
    %c0_7 = arith.constant 0 : index
    %c0_8 = arith.constant 0 : index
    %20 = vector.load %arg4[%c0_7, %c0_8] : memref<1x128xf32, #tpu.memory_space<vmem>>, vector<1x128xf32>
    %21 = vector.broadcast %20 : vector<1x128xf32> to vector<10x128xf32>
    %22 = arith.addf %19, %21 : vector<10x128xf32>
    %23 = arith.truncf %22 : vector<10x128xf32> to vector<10x128xbf16>
    %c0_9 = arith.constant 0 : index
    %c0_10 = arith.constant 0 : index
    %24 = vector.load %arg5[%c0_9, %c0_10] : memref<128x128xbf16, #tpu.memory_space<vmem>>, vector<128x128xbf16>
    %cst_11 = arith.constant dense<0.000000e+00> : vector<10x128xf32>
    %25 = tpu.matmul %23, %24, %cst_11 {dimension_numbers = #tpu.dot_dimension_numbers<[1], [0], [0], [1], [0, 0, 1, 1], [], []>} : vector<10x128xbf16>, vector<128x128xbf16>, vector<10x128xf32> -> vector<10x128xf32>
    %c0_12 = arith.constant 0 : index
    %c0_13 = arith.constant 0 : index
    %26 = vector.load %arg6[%c0_12, %c0_13] : memref<1x128xf32, #tpu.memory_space<vmem>>, vector<1x128xf32>
    %27 = vector.broadcast %26 : vector<1x128xf32> to vector<10x128xf32>
    %28 = arith.addf %25, %27 : vector<10x128xf32>
    %29 = arith.truncf %28 : vector<10x128xf32> to vector<10x128xbf16>
    %c0_14 = arith.constant 0 : index
    %c0_15 = arith.constant 0 : index
    %30 = vector.load %arg7[%c0_14, %c0_15] : memref<10x128xbf16, #tpu.memory_space<vmem>>, vector<10x128xbf16>
    tpu.vector_store %arg7[%c0_14, %c0_15], %29 {strides = array<i32>} : memref<10x128xbf16, #tpu.memory_space<vmem>>, vector<10x128xbf16>,
    return
  }
  func.func @transform_0(%arg0: i32, %arg1: i32) -> (i32, i32) {
    %c0_i32 = arith.constant 0 : i32
    %c0_i32_0 = arith.constant 0 : i32
    return %arg0, %c0_i32 : i32, i32
  }
  func.func @transform_1(%arg0: i32, %arg1: i32) -> (i32, i32) {
    %c0_i32 = arith.constant 0 : i32
    %c0_i32_0 = arith.constant 0 : i32
    %c0_i32_1 = arith.constant 0 : i32
    return %c0_i32, %c0_i32_0 : i32, i32
  }
  func.func @transform_2(%arg0: i32, %arg1: i32) -> (i32, i32) {
    %c0_i32 = arith.constant 0 : i32
    %c0_i32_0 = arith.constant 0 : i32
    %c0_i32_1 = arith.constant 0 : i32
    return %c0_i32, %c0_i32_0 : i32, i32
  }
  func.func @transform_3(%arg0: i32, %arg1: i32) -> (i32, i32) {
    %c0_i32 = arith.constant 0 : i32
    %c0_i32_0 = arith.constant 0 : i32
    return %c0_i32, %arg1 : i32, i32
  }
  func.func @transform_4(%arg0: i32, %arg1: i32) -> (i32, i32) {
    %c0_i32 = arith.constant 0 : i32
    %c0_i32_0 = arith.constant 0 : i32
    return %c0_i32, %arg1 : i32, i32
  }
  func.func @transform_5(%arg0: i32, %arg1: i32) -> (i32, i32) {
    %c0_i32 = arith.constant 0 : i32
    return %arg0, %arg1 : i32, i32
  }
}

module attributes {stable_mosaic.version = 11 : i64} {
  func.func @_attention_kernel(%arg0: i32, %arg1: i32, %arg2: memref<1x5x384xbf16, #tpu.memory_space<vmem>>, %arg3: memref<1x5x128xbf16, #tpu.memory_space<vmem>>) attributes {dimension_semantics = [#tpu.dimension_semantics<parallel>, #tpu.dimension_semantics<parallel>], iteration_bounds = array<i64: 2, 1>, scalar_prefetch = 0 : i64, scratch_operands = 0 : i64, tpu.core_type = #tpu.core_type<tc>, window_params = [{transform_indices = @transform_0, window_bounds = array<i64: 1, 5, 384>}, {transform_indices = @transform_1, window_bounds = array<i64: 1, 5, 128>}]} {
    %c0 = arith.constant 0 : index
    %c0_0 = arith.constant 0 : index
    %c0_1 = arith.constant 0 : index
    %0 = vector.load %arg2[%c0, %c0_0, %c0_1] : memref<1x5x384xbf16, #tpu.memory_space<vmem>>, vector<1x5x128xbf16>
    %1 = vector.shape_cast %0 : vector<1x5x128xbf16> to vector<5x128xbf16>
    %c0_2 = arith.constant 0 : index
    %c0_3 = arith.constant 0 : index
    %c128 = arith.constant 128 : index
    %2 = vector.load %arg2[%c0_2, %c0_3, %c128] : memref<1x5x384xbf16, #tpu.memory_space<vmem>>, vector<1x5x128xbf16>
    %3 = vector.shape_cast %2 : vector<1x5x128xbf16> to vector<5x128xbf16>
    %c0_4 = arith.constant 0 : index
    %c0_5 = arith.constant 0 : index
    %c256 = arith.constant 256 : index
    %4 = vector.load %arg2[%c0_4, %c0_5, %c256] : memref<1x5x384xbf16, #tpu.memory_space<vmem>>, vector<1x5x128xbf16>
    %5 = vector.shape_cast %4 : vector<1x5x128xbf16> to vector<5x128xbf16>
    %cst = arith.constant 1.767580e-01 : bf16
    %6 = vector.broadcast %cst : bf16 to vector<5x128xbf16>
    %7 = arith.mulf %1, %6 : vector<5x128xbf16>
    %8 = vector.extract_strided_slice %7 {offsets = [0, 0], sizes = [5, 32], strides = [1, 1]} : vector<5x128xbf16> to vector<5x32xbf16>
    %9 = vector.extract_strided_slice %3 {offsets = [0, 0], sizes = [5, 32], strides = [1, 1]} : vector<5x128xbf16> to vector<5x32xbf16>
    %cst_6 = arith.constant dense<0.000000e+00> : vector<5x5xf32>
    %10 = tpu.matmul %8, %9, %cst_6 {dimension_numbers = #tpu.dot_dimension_numbers<[1], [1], [0], [0], [0, 0, 1, 0], [], []>} : vector<5x32xbf16>, vector<5x32xbf16>, vector<5x5xf32> -> vector<5x5xf32>
    %cst_7 = arith.constant dense<0xFF800000> : vector<5xf32>
    %11 = vector.multi_reduction <maximumf>, %10, %cst_7 [1] : vector<5x5xf32> to vector<5xf32>
    %12 = vector.shape_cast %11 : vector<5xf32> to vector<5x1xf32>
    %13 = vector.broadcast %12 : vector<5x1xf32> to vector<5x5xf32>
    %14 = arith.subf %10, %13 : vector<5x5xf32>
    %15 = math.exp %14 : vector<5x5xf32>
    %cst_8 = arith.constant dense<0.000000e+00> : vector<5xf32>
    %16 = vector.multi_reduction <add>, %15, %cst_8 [1] : vector<5x5xf32> to vector<5xf32>
    %17 = vector.shape_cast %16 : vector<5xf32> to vector<5x1xf32>
    %18 = tpu.reciprocal %17 {approx = true} : vector<5x1xf32> -> vector<5x1xf32>
    %19 = vector.broadcast %18 : vector<5x1xf32> to vector<5x5xf32>
    %20 = arith.mulf %15, %19 : vector<5x5xf32>
    %21 = arith.truncf %20 : vector<5x5xf32> to vector<5x5xbf16>
    %22 = vector.extract_strided_slice %5 {offsets = [0, 0], sizes = [5, 32], strides = [1, 1]} : vector<5x128xbf16> to vector<5x32xbf16>
    %cst_9 = arith.constant dense<0.000000e+00> : vector<5x32xf32>
    %23 = tpu.matmul %21, %22, %cst_9 {dimension_numbers = #tpu.dot_dimension_numbers<[1], [0], [0], [1], [0, 0, 1, 1], [], []>} : vector<5x5xbf16>, vector<5x32xbf16>, vector<5x32xf32> -> vector<5x32xf32>
    %24 = arith.truncf %23 : vector<5x32xf32> to vector<5x32xbf16>
    %25 = vector.extract_strided_slice %7 {offsets = [0, 32], sizes = [5, 32], strides = [1, 1]} : vector<5x128xbf16> to vector<5x32xbf16>
    %26 = vector.extract_strided_slice %3 {offsets = [0, 32], sizes = [5, 32], strides = [1, 1]} : vector<5x128xbf16> to vector<5x32xbf16>
    %cst_10 = arith.constant dense<0.000000e+00> : vector<5x5xf32>
    %27 = tpu.matmul %25, %26, %cst_10 {dimension_numbers = #tpu.dot_dimension_numbers<[1], [1], [0], [0], [0, 0, 1, 0], [], []>} : vector<5x32xbf16>, vector<5x32xbf16>, vector<5x5xf32> -> vector<5x5xf32>
    %cst_11 = arith.constant dense<0xFF800000> : vector<5xf32>
    %28 = vector.multi_reduction <maximumf>, %27, %cst_11 [1] : vector<5x5xf32> to vector<5xf32>
    %29 = vector.shape_cast %28 : vector<5xf32> to vector<5x1xf32>
    %30 = vector.broadcast %29 : vector<5x1xf32> to vector<5x5xf32>
    %31 = arith.subf %27, %30 : vector<5x5xf32>
    %32 = math.exp %31 : vector<5x5xf32>
    %cst_12 = arith.constant dense<0.000000e+00> : vector<5xf32>
    %33 = vector.multi_reduction <add>, %32, %cst_12 [1] : vector<5x5xf32> to vector<5xf32>
    %34 = vector.shape_cast %33 : vector<5xf32> to vector<5x1xf32>
    %35 = tpu.reciprocal %34 {approx = true} : vector<5x1xf32> -> vector<5x1xf32>
    %36 = vector.broadcast %35 : vector<5x1xf32> to vector<5x5xf32>
    %37 = arith.mulf %32, %36 : vector<5x5xf32>
    %38 = arith.truncf %37 : vector<5x5xf32> to vector<5x5xbf16>
    %39 = vector.extract_strided_slice %5 {offsets = [0, 32], sizes = [5, 32], strides = [1, 1]} : vector<5x128xbf16> to vector<5x32xbf16>
    %cst_13 = arith.constant dense<0.000000e+00> : vector<5x32xf32>
    %40 = tpu.matmul %38, %39, %cst_13 {dimension_numbers = #tpu.dot_dimension_numbers<[1], [0], [0], [1], [0, 0, 1, 1], [], []>} : vector<5x5xbf16>, vector<5x32xbf16>, vector<5x32xf32> -> vector<5x32xf32>
    %41 = arith.truncf %40 : vector<5x32xf32> to vector<5x32xbf16>
    %42 = vector.extract_strided_slice %7 {offsets = [0, 64], sizes = [5, 32], strides = [1, 1]} : vector<5x128xbf16> to vector<5x32xbf16>
    %43 = vector.extract_strided_slice %3 {offsets = [0, 64], sizes = [5, 32], strides = [1, 1]} : vector<5x128xbf16> to vector<5x32xbf16>
    %cst_14 = arith.constant dense<0.000000e+00> : vector<5x5xf32>
    %44 = tpu.matmul %42, %43, %cst_14 {dimension_numbers = #tpu.dot_dimension_numbers<[1], [1], [0], [0], [0, 0, 1, 0], [], []>} : vector<5x32xbf16>, vector<5x32xbf16>, vector<5x5xf32> -> vector<5x5xf32>
    %cst_15 = arith.constant dense<0xFF800000> : vector<5xf32>
    %45 = vector.multi_reduction <maximumf>, %44, %cst_15 [1] : vector<5x5xf32> to vector<5xf32>
    %46 = vector.shape_cast %45 : vector<5xf32> to vector<5x1xf32>
    %47 = vector.broadcast %46 : vector<5x1xf32> to vector<5x5xf32>
    %48 = arith.subf %44, %47 : vector<5x5xf32>
    %49 = math.exp %48 : vector<5x5xf32>
    %cst_16 = arith.constant dense<0.000000e+00> : vector<5xf32>
    %50 = vector.multi_reduction <add>, %49, %cst_16 [1] : vector<5x5xf32> to vector<5xf32>
    %51 = vector.shape_cast %50 : vector<5xf32> to vector<5x1xf32>
    %52 = tpu.reciprocal %51 {approx = true} : vector<5x1xf32> -> vector<5x1xf32>
    %53 = vector.broadcast %52 : vector<5x1xf32> to vector<5x5xf32>
    %54 = arith.mulf %49, %53 : vector<5x5xf32>
    %55 = arith.truncf %54 : vector<5x5xf32> to vector<5x5xbf16>
    %56 = vector.extract_strided_slice %5 {offsets = [0, 64], sizes = [5, 32], strides = [1, 1]} : vector<5x128xbf16> to vector<5x32xbf16>
    %cst_17 = arith.constant dense<0.000000e+00> : vector<5x32xf32>
    %57 = tpu.matmul %55, %56, %cst_17 {dimension_numbers = #tpu.dot_dimension_numbers<[1], [0], [0], [1], [0, 0, 1, 1], [], []>} : vector<5x5xbf16>, vector<5x32xbf16>, vector<5x32xf32> -> vector<5x32xf32>
    %58 = arith.truncf %57 : vector<5x32xf32> to vector<5x32xbf16>
    %59 = vector.extract_strided_slice %7 {offsets = [0, 96], sizes = [5, 32], strides = [1, 1]} : vector<5x128xbf16> to vector<5x32xbf16>
    %60 = vector.extract_strided_slice %3 {offsets = [0, 96], sizes = [5, 32], strides = [1, 1]} : vector<5x128xbf16> to vector<5x32xbf16>
    %cst_18 = arith.constant dense<0.000000e+00> : vector<5x5xf32>
    %61 = tpu.matmul %59, %60, %cst_18 {dimension_numbers = #tpu.dot_dimension_numbers<[1], [1], [0], [0], [0, 0, 1, 0], [], []>} : vector<5x32xbf16>, vector<5x32xbf16>, vector<5x5xf32> -> vector<5x5xf32>
    %cst_19 = arith.constant dense<0xFF800000> : vector<5xf32>
    %62 = vector.multi_reduction <maximumf>, %61, %cst_19 [1] : vector<5x5xf32> to vector<5xf32>
    %63 = vector.shape_cast %62 : vector<5xf32> to vector<5x1xf32>
    %64 = vector.broadcast %63 : vector<5x1xf32> to vector<5x5xf32>
    %65 = arith.subf %61, %64 : vector<5x5xf32>
    %66 = math.exp %65 : vector<5x5xf32>
    %cst_20 = arith.constant dense<0.000000e+00> : vector<5xf32>
    %67 = vector.multi_reduction <add>, %66, %cst_20 [1] : vector<5x5xf32> to vector<5xf32>
    %68 = vector.shape_cast %67 : vector<5xf32> to vector<5x1xf32>
    %69 = tpu.reciprocal %68 {approx = true} : vector<5x1xf32> -> vector<5x1xf32>
    %70 = vector.broadcast %69 : vector<5x1xf32> to vector<5x5xf32>
    %71 = arith.mulf %66, %70 : vector<5x5xf32>
    %72 = arith.truncf %71 : vector<5x5xf32> to vector<5x5xbf16>
    %73 = vector.extract_strided_slice %5 {offsets = [0, 96], sizes = [5, 32], strides = [1, 1]} : vector<5x128xbf16> to vector<5x32xbf16>
    %cst_21 = arith.constant dense<0.000000e+00> : vector<5x32xf32>
    %74 = tpu.matmul %72, %73, %cst_21 {dimension_numbers = #tpu.dot_dimension_numbers<[1], [0], [0], [1], [0, 0, 1, 1], [], []>} : vector<5x5xbf16>, vector<5x32xbf16>, vector<5x32xf32> -> vector<5x32xf32>
    %75 = arith.truncf %74 : vector<5x32xf32> to vector<5x32xbf16>
    %76 = tpu.concatenate %24, %41, %58, %75 in 1 : vector<5x32xbf16>, vector<5x32xbf16>, vector<5x32xbf16>, vector<5x32xbf16> -> vector<5x128xbf16>
    %c0_22 = arith.constant 0 : index
    %c0_23 = arith.constant 0 : index
    %c0_24 = arith.constant 0 : index
    %77 = vector.load %arg3[%c0_22, %c0_23, %c0_24] : memref<1x5x128xbf16, #tpu.memory_space<vmem>>, vector<1x5x128xbf16>
    %78 = vector.shape_cast %77 : vector<1x5x128xbf16> to vector<5x128xbf16>
    %79 = vector.shape_cast %76 : vector<5x128xbf16> to vector<1x5x128xbf16>
    tpu.vector_store %arg3[%c0_22, %c0_23, %c0_24], %79 {strides = array<i32>} : memref<1x5x128xbf16, #tpu.memory_space<vmem>>, vector<1x5x128xbf16>,
    return
  }
  func.func @transform_0(%arg0: i32, %arg1: i32) -> (i32, i32, i32) {
    %c0_i32 = arith.constant 0 : i32
    %c0_i32_0 = arith.constant 0 : i32
    %c0_i32_1 = arith.constant 0 : i32
    return %arg0, %c0_i32, %c0_i32_0 : i32, i32, i32
  }
  func.func @transform_1(%arg0: i32, %arg1: i32) -> (i32, i32, i32) {
    %c0_i32 = arith.constant 0 : i32
    %c0_i32_0 = arith.constant 0 : i32
    return %arg0, %c0_i32, %arg1 : i32, i32, i32
  }
}

module attributes {stable_mosaic.version = 11 : i64} {
  func.func @_fused_matmul_kernel(%arg0: i32, %arg1: i32, %arg2: memref<10x128xf32, #tpu.memory_space<vmem>>, %arg3: memref<1x128xf32, #tpu.memory_space<vmem>>, %arg4: memref<1x128xf32, #tpu.memory_space<vmem>>, %arg5: memref<128x128xbf16, #tpu.memory_space<vmem>>, %arg6: memref<1x128xf32, #tpu.memory_space<vmem>>, %arg7: memref<10x128xf32, #tpu.memory_space<vmem>>) attributes {dimension_semantics = [#tpu.dimension_semantics<parallel>, #tpu.dimension_semantics<parallel>], iteration_bounds = array<i64: 1, 2>, scalar_prefetch = 0 : i64, scratch_operands = 0 : i64, tpu.core_type = #tpu.core_type<tc>, window_params = [{transform_indices = @transform_0, window_bounds = array<i64: 10, 128>}, {pipeline_mode = #tpu.pipeline_mode<synchronous>, transform_indices = @transform_1, window_bounds = array<i64: 1, 128>}, {pipeline_mode = #tpu.pipeline_mode<synchronous>, transform_indices = @transform_2, window_bounds = array<i64: 1, 128>}, {transform_indices = @transform_3, window_bounds = array<i64: 128, 128>}, {transform_indices = @transform_4, window_bounds = array<i64: 1, 128>}, {transform_indices = @transform_5, window_bounds = array<i64: 10, 128>}]} {
    %c0 = arith.constant 0 : index
    %c0_0 = arith.constant 0 : index
    %0 = vector.load %arg2[%c0, %c0_0] : memref<10x128xf32, #tpu.memory_space<vmem>>, vector<10x128xf32>
    %cst = arith.constant dense<0.000000e+00> : vector<10xf32>
    %1 = vector.multi_reduction <add>, %0, %cst [1] : vector<10x128xf32> to vector<10xf32>
    %2 = vector.shape_cast %1 : vector<10xf32> to vector<10x1xf32>
    %cst_1 = arith.constant 1.280000e+02 : f32
    %3 = vector.broadcast %cst_1 : f32 to vector<10x1xf32>
    %4 = arith.divf %2, %3 : vector<10x1xf32>
    %5 = vector.broadcast %4 : vector<10x1xf32> to vector<10x128xf32>
    %6 = arith.subf %0, %5 : vector<10x128xf32>
    %7 = arith.mulf %6, %6 : vector<10x128xf32>
    %cst_2 = arith.constant dense<0.000000e+00> : vector<10xf32>
    %8 = vector.multi_reduction <add>, %7, %cst_2 [1] : vector<10x128xf32> to vector<10xf32>
    %9 = vector.shape_cast %8 : vector<10xf32> to vector<10x1xf32>
    %cst_3 = arith.constant 1.280000e+02 : f32
    %10 = vector.broadcast %cst_3 : f32 to vector<10x1xf32>
    %11 = arith.divf %9, %10 : vector<10x1xf32>
    %cst_4 = arith.constant 9.99999997E-7 : f32
    %12 = vector.broadcast %cst_4 : f32 to vector<10x1xf32>
    %13 = arith.addf %11, %12 : vector<10x1xf32>
    %14 = math.rsqrt %13 : vector<10x1xf32>
    %15 = vector.broadcast %14 : vector<10x1xf32> to vector<10x128xf32>
    %16 = arith.mulf %6, %15 : vector<10x128xf32>
    %c0_5 = arith.constant 0 : index
    %c0_6 = arith.constant 0 : index
    %17 = vector.load %arg3[%c0_5, %c0_6] : memref<1x128xf32, #tpu.memory_space<vmem>>, vector<1x128xf32>
    %18 = vector.broadcast %17 : vector<1x128xf32> to vector<10x128xf32>
    %19 = arith.mulf %16, %18 : vector<10x128xf32>
    %c0_7 = arith.constant 0 : index
    %c0_8 = arith.constant 0 : index
    %20 = vector.load %arg4[%c0_7, %c0_8] : memref<1x128xf32, #tpu.memory_space<vmem>>, vector<1x128xf32>
    %21 = vector.broadcast %20 : vector<1x128xf32> to vector<10x128xf32>
    %22 = arith.addf %19, %21 : vector<10x128xf32>
    %23 = arith.truncf %22 : vector<10x128xf32> to vector<10x128xbf16>
    %c0_9 = arith.constant 0 : index
    %c0_10 = arith.constant 0 : index
    %24 = vector.load %arg5[%c0_9, %c0_10] : memref<128x128xbf16, #tpu.memory_space<vmem>>, vector<128x128xbf16>
    %cst_11 = arith.constant dense<0.000000e+00> : vector<10x128xf32>
    %25 = tpu.matmul %23, %24, %cst_11 {dimension_numbers = #tpu.dot_dimension_numbers<[1], [0], [0], [1], [0, 0, 1, 1], [], []>} : vector<10x128xbf16>, vector<128x128xbf16>, vector<10x128xf32> -> vector<10x128xf32>
    %c0_12 = arith.constant 0 : index
    %c0_13 = arith.constant 0 : index
    %26 = vector.load %arg6[%c0_12, %c0_13] : memref<1x128xf32, #tpu.memory_space<vmem>>, vector<1x128xf32>
    %27 = vector.broadcast %26 : vector<1x128xf32> to vector<10x128xf32>
    %28 = arith.addf %25, %27 : vector<10x128xf32>
    %c0_14 = arith.constant 0 : index
    %c0_15 = arith.constant 0 : index
    %29 = vector.load %arg7[%c0_14, %c0_15] : memref<10x128xf32, #tpu.memory_space<vmem>>, vector<10x128xf32>
    tpu.vector_store %arg7[%c0_14, %c0_15], %28 {strides = array<i32>} : memref<10x128xf32, #tpu.memory_space<vmem>>, vector<10x128xf32>,
    return
  }
  func.func @transform_0(%arg0: i32, %arg1: i32) -> (i32, i32) {
    %c0_i32 = arith.constant 0 : i32
    %c0_i32_0 = arith.constant 0 : i32
    return %arg0, %c0_i32 : i32, i32
  }
  func.func @transform_1(%arg0: i32, %arg1: i32) -> (i32, i32) {
    %c0_i32 = arith.constant 0 : i32
    %c0_i32_0 = arith.constant 0 : i32
    %c0_i32_1 = arith.constant 0 : i32
    return %c0_i32, %c0_i32_0 : i32, i32
  }
  func.func @transform_2(%arg0: i32, %arg1: i32) -> (i32, i32) {
    %c0_i32 = arith.constant 0 : i32
    %c0_i32_0 = arith.constant 0 : i32
    %c0_i32_1 = arith.constant 0 : i32
    return %c0_i32, %c0_i32_0 : i32, i32
  }
  func.func @transform_3(%arg0: i32, %arg1: i32) -> (i32, i32) {
    %c0_i32 = arith.constant 0 : i32
    %c0_i32_0 = arith.constant 0 : i32
    return %c0_i32, %arg1 : i32, i32
  }
  func.func @transform_4(%arg0: i32, %arg1: i32) -> (i32, i32) {
    %c0_i32 = arith.constant 0 : i32
    %c0_i32_0 = arith.constant 0 : i32
    return %c0_i32, %arg1 : i32, i32
  }
  func.func @transform_5(%arg0: i32, %arg1: i32) -> (i32, i32) {
    %c0_i32 = arith.constant 0 : i32
    return %arg0, %arg1 : i32, i32
  }
}

module attributes {stable_mosaic.version = 11 : i64} {
  func.func @_fused_matmul_kernel(%arg0: i32, %arg1: i32, %arg2: memref<10x128xbf16, #tpu.memory_space<vmem>>, %arg3: memref<128x128xbf16, #tpu.memory_space<vmem>>, %arg4: memref<1x128xf32, #tpu.memory_space<vmem>>, %arg5: memref<10x128xf32, #tpu.memory_space<vmem>>, %arg6: memref<10x128xf32, #tpu.memory_space<vmem>>) attributes {dimension_semantics = [#tpu.dimension_semantics<parallel>, #tpu.dimension_semantics<parallel>], iteration_bounds = array<i64: 1, 1>, scalar_prefetch = 0 : i64, scratch_operands = 0 : i64, tpu.core_type = #tpu.core_type<tc>, window_params = [{transform_indices = @transform_0, window_bounds = array<i64: 10, 128>}, {transform_indices = @transform_1, window_bounds = array<i64: 128, 128>}, {transform_indices = @transform_2, window_bounds = array<i64: 1, 128>}, {transform_indices = @transform_3, window_bounds = array<i64: 10, 128>}, {transform_indices = @transform_4, window_bounds = array<i64: 10, 128>}]} {
    %c0 = arith.constant 0 : index
    %c0_0 = arith.constant 0 : index
    %0 = vector.load %arg2[%c0, %c0_0] : memref<10x128xbf16, #tpu.memory_space<vmem>>, vector<10x128xbf16>
    %c0_1 = arith.constant 0 : index
    %c0_2 = arith.constant 0 : index
    %1 = vector.load %arg3[%c0_1, %c0_2] : memref<128x128xbf16, #tpu.memory_space<vmem>>, vector<128x128xbf16>
    %cst = arith.constant dense<0.000000e+00> : vector<10x128xf32>
    %2 = tpu.matmul %0, %1, %cst {dimension_numbers = #tpu.dot_dimension_numbers<[1], [0], [0], [1], [0, 0, 1, 1], [], []>} : vector<10x128xbf16>, vector<128x128xbf16>, vector<10x128xf32> -> vector<10x128xf32>
    %c0_3 = arith.constant 0 : index
    %c0_4 = arith.constant 0 : index
    %3 = vector.load %arg4[%c0_3, %c0_4] : memref<1x128xf32, #tpu.memory_space<vmem>>, vector<1x128xf32>
    %4 = vector.broadcast %3 : vector<1x128xf32> to vector<10x128xf32>
    %5 = arith.addf %2, %4 : vector<10x128xf32>
    %c0_5 = arith.constant 0 : index
    %c0_6 = arith.constant 0 : index
    %6 = vector.load %arg5[%c0_5, %c0_6] : memref<10x128xf32, #tpu.memory_space<vmem>>, vector<10x128xf32>
    %7 = arith.addf %5, %6 : vector<10x128xf32>
    %c0_7 = arith.constant 0 : index
    %c0_8 = arith.constant 0 : index
    %8 = vector.load %arg6[%c0_7, %c0_8] : memref<10x128xf32, #tpu.memory_space<vmem>>, vector<10x128xf32>
    tpu.vector_store %arg6[%c0_7, %c0_8], %7 {strides = array<i32>} : memref<10x128xf32, #tpu.memory_space<vmem>>, vector<10x128xf32>,
    return
  }
  func.func @transform_0(%arg0: i32, %arg1: i32) -> (i32, i32) {
    %c0_i32 = arith.constant 0 : i32
    %c0_i32_0 = arith.constant 0 : i32
    return %arg0, %c0_i32 : i32, i32
  }
  func.func @transform_1(%arg0: i32, %arg1: i32) -> (i32, i32) {
    %c0_i32 = arith.constant 0 : i32
    %c0_i32_0 = arith.constant 0 : i32
    return %c0_i32, %arg1 : i32, i32
  }
  func.func @transform_2(%arg0: i32, %arg1: i32) -> (i32, i32) {
    %c0_i32 = arith.constant 0 : i32
    %c0_i32_0 = arith.constant 0 : i32
    return %c0_i32, %arg1 : i32, i32
  }
  func.func @transform_3(%arg0: i32, %arg1: i32) -> (i32, i32) {
    %c0_i32 = arith.constant 0 : i32
    return %arg0, %arg1 : i32, i32
  }
  func.func @transform_4(%arg0: i32, %arg1: i32) -> (i32, i32) {
    %c0_i32 = arith.constant 0 : i32
    return %arg0, %arg1 : i32, i32
  }
}

module attributes {stable_mosaic.version = 11 : i64} {
  func.func @_fused_matmul_kernel(%arg0: i32, %arg1: i32, %arg2: memref<10x256xbf16, #tpu.memory_space<vmem>>, %arg3: memref<256x128xbf16, #tpu.memory_space<vmem>>, %arg4: memref<1x128xf32, #tpu.memory_space<vmem>>, %arg5: memref<10x128xf32, #tpu.memory_space<vmem>>, %arg6: memref<10x128xf32, #tpu.memory_space<vmem>>) attributes {dimension_semantics = [#tpu.dimension_semantics<parallel>, #tpu.dimension_semantics<parallel>], iteration_bounds = array<i64: 1, 1>, scalar_prefetch = 0 : i64, scratch_operands = 0 : i64, tpu.core_type = #tpu.core_type<tc>, window_params = [{transform_indices = @transform_0, window_bounds = array<i64: 10, 256>}, {transform_indices = @transform_1, window_bounds = array<i64: 256, 128>}, {transform_indices = @transform_2, window_bounds = array<i64: 1, 128>}, {transform_indices = @transform_3, window_bounds = array<i64: 10, 128>}, {transform_indices = @transform_4, window_bounds = array<i64: 10, 128>}]} {
    %c0 = arith.constant 0 : index
    %c0_0 = arith.constant 0 : index
    %0 = vector.load %arg2[%c0, %c0_0] : memref<10x256xbf16, #tpu.memory_space<vmem>>, vector<10x256xbf16>
    %c0_1 = arith.constant 0 : index
    %c0_2 = arith.constant 0 : index
    %1 = vector.load %arg3[%c0_1, %c0_2] : memref<256x128xbf16, #tpu.memory_space<vmem>>, vector<256x128xbf16>
    %cst = arith.constant dense<0.000000e+00> : vector<10x128xf32>
    %2 = tpu.matmul %0, %1, %cst {dimension_numbers = #tpu.dot_dimension_numbers<[1], [0], [0], [1], [0, 0, 1, 1], [], []>} : vector<10x256xbf16>, vector<256x128xbf16>, vector<10x128xf32> -> vector<10x128xf32>
    %c0_3 = arith.constant 0 : index
    %c0_4 = arith.constant 0 : index
    %3 = vector.load %arg4[%c0_3, %c0_4] : memref<1x128xf32, #tpu.memory_space<vmem>>, vector<1x128xf32>
    %4 = vector.broadcast %3 : vector<1x128xf32> to vector<10x128xf32>
    %5 = arith.addf %2, %4 : vector<10x128xf32>
    %c0_5 = arith.constant 0 : index
    %c0_6 = arith.constant 0 : index
    %6 = vector.load %arg5[%c0_5, %c0_6] : memref<10x128xf32, #tpu.memory_space<vmem>>, vector<10x128xf32>
    %7 = arith.addf %5, %6 : vector<10x128xf32>
    %c0_7 = arith.constant 0 : index
    %c0_8 = arith.constant 0 : index
    %8 = vector.load %arg6[%c0_7, %c0_8] : memref<10x128xf32, #tpu.memory_space<vmem>>, vector<10x128xf32>
    tpu.vector_store %arg6[%c0_7, %c0_8], %7 {strides = array<i32>} : memref<10x128xf32, #tpu.memory_space<vmem>>, vector<10x128xf32>,
    return
  }
  func.func @transform_0(%arg0: i32, %arg1: i32) -> (i32, i32) {
    %c0_i32 = arith.constant 0 : i32
    %c0_i32_0 = arith.constant 0 : i32
    return %arg0, %c0_i32 : i32, i32
  }
  func.func @transform_1(%arg0: i32, %arg1: i32) -> (i32, i32) {
    %c0_i32 = arith.constant 0 : i32
    %c0_i32_0 = arith.constant 0 : i32
    return %c0_i32, %arg1 : i32, i32
  }
  func.func @transform_2(%arg0: i32, %arg1: i32) -> (i32, i32) {
    %c0_i32 = arith.constant 0 : i32
    %c0_i32_0 = arith.constant 0 : i32
    return %c0_i32, %arg1 : i32, i32
  }
  func.func @transform_3(%arg0: i32, %arg1: i32) -> (i32, i32) {
    %c0_i32 = arith.constant 0 : i32
    return %arg0, %arg1 : i32, i32
  }
  func.func @transform_4(%arg0: i32, %arg1: i32) -> (i32, i32) {
    %c0_i32 = arith.constant 0 : i32
    return %arg0, %arg1 : i32, i32
  }
}

module attributes {stable_mosaic.version = 11 : i64} {
  func.func @_layernorm_kernel(%arg0: i32, %arg1: memref<2x128xf32, #tpu.memory_space<vmem>>, %arg2: memref<1x128xf32, #tpu.memory_space<vmem>>, %arg3: memref<1x128xf32, #tpu.memory_space<vmem>>, %arg4: memref<2x128xf32, #tpu.memory_space<vmem>>) attributes {dimension_semantics = [#tpu.dimension_semantics<parallel>], iteration_bounds = array<i64: 1>, scalar_prefetch = 0 : i64, scratch_operands = 0 : i64, tpu.core_type = #tpu.core_type<tc>, window_params = [{transform_indices = @transform_0, window_bounds = array<i64: 2, 128>}, {pipeline_mode = #tpu.pipeline_mode<synchronous>, transform_indices = @transform_1, window_bounds = array<i64: 1, 128>}, {pipeline_mode = #tpu.pipeline_mode<synchronous>, transform_indices = @transform_2, window_bounds = array<i64: 1, 128>}, {transform_indices = @transform_3, window_bounds = array<i64: 2, 128>}]} {
    %c0 = arith.constant 0 : index
    %c0_0 = arith.constant 0 : index
    %0 = vector.load %arg1[%c0, %c0_0] : memref<2x128xf32, #tpu.memory_space<vmem>>, vector<2x128xf32>
    %cst = arith.constant dense<0.000000e+00> : vector<2xf32>
    %1 = vector.multi_reduction <add>, %0, %cst [1] : vector<2x128xf32> to vector<2xf32>
    %2 = vector.shape_cast %1 : vector<2xf32> to vector<2x1xf32>
    %cst_1 = arith.constant 1.280000e+02 : f32
    %3 = vector.broadcast %cst_1 : f32 to vector<2x1xf32>
    %4 = arith.divf %2, %3 : vector<2x1xf32>
    %5 = vector.broadcast %4 : vector<2x1xf32> to vector<2x128xf32>
    %6 = arith.subf %0, %5 : vector<2x128xf32>
    %7 = arith.mulf %6, %6 : vector<2x128xf32>
    %cst_2 = arith.constant dense<0.000000e+00> : vector<2xf32>
    %8 = vector.multi_reduction <add>, %7, %cst_2 [1] : vector<2x128xf32> to vector<2xf32>
    %9 = vector.shape_cast %8 : vector<2xf32> to vector<2x1xf32>
    %cst_3 = arith.constant 1.280000e+02 : f32
    %10 = vector.broadcast %cst_3 : f32 to vector<2x1xf32>
    %11 = arith.divf %9, %10 : vector<2x1xf32>
    %cst_4 = arith.constant 9.99999997E-7 : f32
    %12 = vector.broadcast %cst_4 : f32 to vector<2x1xf32>
    %13 = arith.addf %11, %12 : vector<2x1xf32>
    %14 = math.rsqrt %13 : vector<2x1xf32>
    %15 = vector.broadcast %14 : vector<2x1xf32> to vector<2x128xf32>
    %16 = arith.mulf %6, %15 : vector<2x128xf32>
    %c0_5 = arith.constant 0 : index
    %c0_6 = arith.constant 0 : index
    %17 = vector.load %arg2[%c0_5, %c0_6] : memref<1x128xf32, #tpu.memory_space<vmem>>, vector<1x128xf32>
    %18 = vector.broadcast %17 : vector<1x128xf32> to vector<2x128xf32>
    %19 = arith.mulf %16, %18 : vector<2x128xf32>
    %c0_7 = arith.constant 0 : index
    %c0_8 = arith.constant 0 : index
    %20 = vector.load %arg3[%c0_7, %c0_8] : memref<1x128xf32, #tpu.memory_space<vmem>>, vector<1x128xf32>
    %21 = vector.broadcast %20 : vector<1x128xf32> to vector<2x128xf32>
    %22 = arith.addf %19, %21 : vector<2x128xf32>
    %c0_9 = arith.constant 0 : index
    %c0_10 = arith.constant 0 : index
    %23 = vector.load %arg4[%c0_9, %c0_10] : memref<2x128xf32, #tpu.memory_space<vmem>>, vector<2x128xf32>
    tpu.vector_store %arg4[%c0_9, %c0_10], %22 {strides = array<i32>} : memref<2x128xf32, #tpu.memory_space<vmem>>, vector<2x128xf32>,
    return
  }
  func.func @transform_0(%arg0: i32) -> (i32, i32) {
    %c0_i32 = arith.constant 0 : i32
    %c0_i32_0 = arith.constant 0 : i32
    return %arg0, %c0_i32 : i32, i32
  }
  func.func @transform_1(%arg0: i32) -> (i32, i32) {
    %c0_i32 = arith.constant 0 : i32
    %c0_i32_0 = arith.constant 0 : i32
    %c0_i32_1 = arith.constant 0 : i32
    return %c0_i32, %c0_i32_0 : i32, i32
  }
  func.func @transform_2(%arg0: i32) -> (i32, i32) {
    %c0_i32 = arith.constant 0 : i32
    %c0_i32_0 = arith.constant 0 : i32
    %c0_i32_1 = arith.constant 0 : i32
    return %c0_i32, %c0_i32_0 : i32, i32
  }
  func.func @transform_3(%arg0: i32) -> (i32, i32) {
    %c0_i32 = arith.constant 0 : i32
    %c0_i32_0 = arith.constant 0 : i32
    return %arg0, %c0_i32 : i32, i32
  }
}

module attributes {stable_mosaic.version = 11 : i64} {
  func.func @_fused_matmul_kernel(%arg0: i32, %arg1: i32, %arg2: memref<2x128xf32, #tpu.memory_space<vmem>>, %arg3: memref<1x128xf32, #tpu.memory_space<vmem>>, %arg4: memref<1x128xf32, #tpu.memory_space<vmem>>, %arg5: memref<128x64xbf16, #tpu.memory_space<vmem>>, %arg6: memref<1x64xf32, #tpu.memory_space<vmem>>, %arg7: memref<2x64xf32, #tpu.memory_space<vmem>>) attributes {dimension_semantics = [#tpu.dimension_semantics<parallel>, #tpu.dimension_semantics<parallel>], iteration_bounds = array<i64: 1, 1>, scalar_prefetch = 0 : i64, scratch_operands = 0 : i64, tpu.core_type = #tpu.core_type<tc>, window_params = [{transform_indices = @transform_0, window_bounds = array<i64: 2, 128>}, {pipeline_mode = #tpu.pipeline_mode<synchronous>, transform_indices = @transform_1, window_bounds = array<i64: 1, 128>}, {pipeline_mode = #tpu.pipeline_mode<synchronous>, transform_indices = @transform_2, window_bounds = array<i64: 1, 128>}, {transform_indices = @transform_3, window_bounds = array<i64: 128, 64>}, {transform_indices = @transform_4, window_bounds = array<i64: 1, 64>}, {transform_indices = @transform_5, window_bounds = array<i64: 2, 64>}]} {
    %c0 = arith.constant 0 : index
    %c0_0 = arith.constant 0 : index
    %0 = vector.load %arg2[%c0, %c0_0] : memref<2x128xf32, #tpu.memory_space<vmem>>, vector<2x128xf32>
    %cst = arith.constant dense<0.000000e+00> : vector<2xf32>
    %1 = vector.multi_reduction <add>, %0, %cst [1] : vector<2x128xf32> to vector<2xf32>
    %2 = vector.shape_cast %1 : vector<2xf32> to vector<2x1xf32>
    %cst_1 = arith.constant 1.280000e+02 : f32
    %3 = vector.broadcast %cst_1 : f32 to vector<2x1xf32>
    %4 = arith.divf %2, %3 : vector<2x1xf32>
    %5 = vector.broadcast %4 : vector<2x1xf32> to vector<2x128xf32>
    %6 = arith.subf %0, %5 : vector<2x128xf32>
    %7 = arith.mulf %6, %6 : vector<2x128xf32>
    %cst_2 = arith.constant dense<0.000000e+00> : vector<2xf32>
    %8 = vector.multi_reduction <add>, %7, %cst_2 [1] : vector<2x128xf32> to vector<2xf32>
    %9 = vector.shape_cast %8 : vector<2xf32> to vector<2x1xf32>
    %cst_3 = arith.constant 1.280000e+02 : f32
    %10 = vector.broadcast %cst_3 : f32 to vector<2x1xf32>
    %11 = arith.divf %9, %10 : vector<2x1xf32>
    %cst_4 = arith.constant 9.99999974E-6 : f32
    %12 = vector.broadcast %cst_4 : f32 to vector<2x1xf32>
    %13 = arith.addf %11, %12 : vector<2x1xf32>
    %14 = math.rsqrt %13 : vector<2x1xf32>
    %15 = vector.broadcast %14 : vector<2x1xf32> to vector<2x128xf32>
    %16 = arith.mulf %6, %15 : vector<2x128xf32>
    %c0_5 = arith.constant 0 : index
    %c0_6 = arith.constant 0 : index
    %17 = vector.load %arg3[%c0_5, %c0_6] : memref<1x128xf32, #tpu.memory_space<vmem>>, vector<1x128xf32>
    %18 = vector.broadcast %17 : vector<1x128xf32> to vector<2x128xf32>
    %19 = arith.mulf %16, %18 : vector<2x128xf32>
    %c0_7 = arith.constant 0 : index
    %c0_8 = arith.constant 0 : index
    %20 = vector.load %arg4[%c0_7, %c0_8] : memref<1x128xf32, #tpu.memory_space<vmem>>, vector<1x128xf32>
    %21 = vector.broadcast %20 : vector<1x128xf32> to vector<2x128xf32>
    %22 = arith.addf %19, %21 : vector<2x128xf32>
    %23 = arith.truncf %22 : vector<2x128xf32> to vector<2x128xbf16>
    %c0_9 = arith.constant 0 : index
    %c0_10 = arith.constant 0 : index
    %24 = vector.load %arg5[%c0_9, %c0_10] : memref<128x64xbf16, #tpu.memory_space<vmem>>, vector<128x64xbf16>
    %cst_11 = arith.constant dense<0.000000e+00> : vector<2x64xf32>
    %25 = tpu.matmul %23, %24, %cst_11 {dimension_numbers = #tpu.dot_dimension_numbers<[1], [0], [0], [1], [0, 0, 1, 1], [], []>} : vector<2x128xbf16>, vector<128x64xbf16>, vector<2x64xf32> -> vector<2x64xf32>
    %c0_12 = arith.constant 0 : index
    %c0_13 = arith.constant 0 : index
    %26 = vector.load %arg6[%c0_12, %c0_13] : memref<1x64xf32, #tpu.memory_space<vmem>>, vector<1x64xf32>
    %27 = vector.broadcast %26 : vector<1x64xf32> to vector<2x64xf32>
    %28 = arith.addf %25, %27 : vector<2x64xf32>
    %c0_14 = arith.constant 0 : index
    %c0_15 = arith.constant 0 : index
    %29 = vector.load %arg7[%c0_14, %c0_15] : memref<2x64xf32, #tpu.memory_space<vmem>>, vector<2x64xf32>
    tpu.vector_store %arg7[%c0_14, %c0_15], %28 {strides = array<i32>} : memref<2x64xf32, #tpu.memory_space<vmem>>, vector<2x64xf32>,
    return
  }
  func.func @transform_0(%arg0: i32, %arg1: i32) -> (i32, i32) {
    %c0_i32 = arith.constant 0 : i32
    %c0_i32_0 = arith.constant 0 : i32
    return %arg0, %c0_i32 : i32, i32
  }
  func.func @transform_1(%arg0: i32, %arg1: i32) -> (i32, i32) {
    %c0_i32 = arith.constant 0 : i32
    %c0_i32_0 = arith.constant 0 : i32
    %c0_i32_1 = arith.constant 0 : i32
    return %c0_i32, %c0_i32_0 : i32, i32
  }
  func.func @transform_2(%arg0: i32, %arg1: i32) -> (i32, i32) {
    %c0_i32 = arith.constant 0 : i32
    %c0_i32_0 = arith.constant 0 : i32
    %c0_i32_1 = arith.constant 0 : i32
    return %c0_i32, %c0_i32_0 : i32, i32
  }
  func.func @transform_3(%arg0: i32, %arg1: i32) -> (i32, i32) {
    %c0_i32 = arith.constant 0 : i32
    %c0_i32_0 = arith.constant 0 : i32
    return %c0_i32, %arg1 : i32, i32
  }
  func.func @transform_4(%arg0: i32, %arg1: i32) -> (i32, i32) {
    %c0_i32 = arith.constant 0 : i32
    %c0_i32_0 = arith.constant 0 : i32
    return %c0_i32, %arg1 : i32, i32
  }
  func.func @transform_5(%arg0: i32, %arg1: i32) -> (i32, i32) {
    %c0_i32 = arith.constant 0 : i32
    return %arg0, %arg1 : i32, i32
  }
}

module attributes {stable_mosaic.version = 11 : i64} {
  func.func @_l2norm_kernel(%arg0: i32, %arg1: memref<2x64xf32, #tpu.memory_space<vmem>>, %arg2: memref<2x64xf32, #tpu.memory_space<vmem>>) attributes {dimension_semantics = [#tpu.dimension_semantics<parallel>], iteration_bounds = array<i64: 1>, scalar_prefetch = 0 : i64, scratch_operands = 0 : i64, tpu.core_type = #tpu.core_type<tc>, window_params = [{transform_indices = @transform_0, window_bounds = array<i64: 2, 64>}, {transform_indices = @transform_1, window_bounds = array<i64: 2, 64>}]} {
    %c0 = arith.constant 0 : index
    %c0_0 = arith.constant 0 : index
    %0 = vector.load %arg1[%c0, %c0_0] : memref<2x64xf32, #tpu.memory_space<vmem>>, vector<2x64xf32>
    %1 = arith.mulf %0, %0 : vector<2x64xf32>
    %cst = arith.constant dense<0.000000e+00> : vector<2xf32>
    %2 = vector.multi_reduction <add>, %1, %cst [1] : vector<2x64xf32> to vector<2xf32>
    %3 = vector.shape_cast %2 : vector<2xf32> to vector<2x1xf32>
    %4 = math.sqrt %3 : vector<2x1xf32>
    %cst_1 = arith.constant 9.99999996E-13 : f32
    %5 = vector.broadcast %cst_1 : f32 to vector<2x1xf32>
    %6 = arith.maximumf %4, %5 : vector<2x1xf32>
    %7 = vector.broadcast %6 : vector<2x1xf32> to vector<2x64xf32>
    %8 = arith.divf %0, %7 : vector<2x64xf32>
    %c0_2 = arith.constant 0 : index
    %c0_3 = arith.constant 0 : index
    %9 = vector.load %arg2[%c0_2, %c0_3] : memref<2x64xf32, #tpu.memory_space<vmem>>, vector<2x64xf32>
    tpu.vector_store %arg2[%c0_2, %c0_3], %8 {strides = array<i32>} : memref<2x64xf32, #tpu.memory_space<vmem>>, vector<2x64xf32>,
    return
  }
  func.func @transform_0(%arg0: i32) -> (i32, i32) {
    %c0_i32 = arith.constant 0 : i32
    %c0_i32_0 = arith.constant 0 : i32
    return %arg0, %c0_i32 : i32, i32
  }
  func.func @transform_1(%arg0: i32) -> (i32, i32) {
    %c0_i32 = arith.constant 0 : i32
    %c0_i32_0 = arith.constant 0 : i32
    return %arg0, %c0_i32 : i32, i32
  }
}

</mosaic_0001>

<llo_original>
// kernel: vit_b32_forward.15
$region0: #{vit_b32_forward.15}
  #allocation0 [shape = 'u32[]', space=smem, size = 0x4, offset = 0x4, fixed_abs, tag = 'smem constant byte address 0x4 - core index']
  #allocation1 [shape = 'u32[72,128]{1,0:T(1,128)}', space=vmem, size = 0x9000, scoped, tag = 'internal scratch']
  %s0 = inlined_call_operand.vmem [shape: f32[10,128], index: 0, kind: input, shape index: {}]
  %s1 = inlined_call_operand.vmem [shape: f32[1,128], index: 1, kind: input, shape index: {}]
  %s2 = inlined_call_operand.vmem [shape: f32[1,128], index: 2, kind: input, shape index: {}]
  %s3 = inlined_call_operand.vmem [shape: bf16[128,384], index: 3, kind: input, shape index: {}]
  %s4 = inlined_call_operand.vmem [shape: f32[1,384], index: 4, kind: input, shape index: {}]
  %s5 = inlined_call_operand.vmem [shape: bf16[10,384], index: 5, kind: output, shape index: {}]
  %s6 = sld [smem:[#allocation0]]
  $region131: #{vit_b32_forward.15} parent=0
    _
  %s8 = ssub.s32 1, %s6
  %s9 = scalar_select 0, %s8, %s6
  $region1: #{vit_b32_forward.15} parent=0
    #allocation2 [shape = 'u8[65536]{0}', space=vmem, size = 0x10000, scoped, tag = 'input window, operand 3']
    #allocation3 [shape = 'u8[8192]{0}', space=vmem, size = 0x2000, scoped, tag = 'output window, operand 0']
    loop: start=0, step=1, limit=5
    $region2: #{vit_b32_forward.15} parent=1 // loop_pre_header
      _
    $region3: #{vit_b32_forward.15} parent=1 // loop_header
      %s11 = sphi 0, %s15
      %p12 = scmp.ge.s32.totalorder %s11, 5
      %s18 = sphi 0, %s30
      %s19 = sphi 0, %s26
      %s20 = sphi 0, %s18
      %s21 = sphi 0, %s19
      %s22 = sphi 0, %s20
      %s23 = sphi 0, %s21
      %s33 = sphi 0, %s35
      %s36 = sphi 0, %s33
      %s37 = sphi 0, %s36
      %s53 = sphi 0, %s37
      %s57 = sphi 0, %s57
      %s59 = sphi 0, %s57
      %s60 = sphi 0, %s59
      %s74 = sphi 0, %s60
      %s78 = sphi 0, %s78
      %s80 = sphi 0, %s78
      %s81 = sphi 0, %s80
      %s95 = sphi 0, %s81
      %s101 = sphi 0, %s103
      %s104 = sphi 0, %s101
      %s105 = sphi 0, %s104
      %s121 = sphi 0, %s105
      %s127 = sphi 0, %s129
      %s130 = sphi 0, %s127
      %s131 = sphi 0, %s130
      %s147 = sphi 0, %s131
      %s155 = sphi 0, %s157
      %s158 = sphi 0, %s155
      %s159 = sphi 0, %s158
      %s175 = sphi 0, %s159
    $region4: #{vit_b32_forward.15} parent=1 // loop_header_branch
      %14 = sbr.rel (%p12) target = $region8
    $region5: #{vit_b32_forward.15} parent=1 // loop_body
      %s16 = ssub.s32 %s11, 1
      %s17 = ssub.s32 %s11, 2
      %s24 = sadd.s32 1, %s19
      %p25 = scmp.ge.s32.totalorder %s24, 3
      %s26 = scalar_select %p25, 0, %s24
      %s27 = sadd.s32 1, %s18
      %s28 = scalar_select %p25, %s27, %s18
      %p29 = scmp.ge.s32.totalorder %s28, 1
      %s30 = scalar_select %p29, 0, %s28
      %s31 = ssub.s32 %s18, %s30
      %p32 = scmp.eq.s32.totalorder %s31, 0
      %s34 = sadd.s32 %s33, 1
      %s35 = scalar_select %p32, %s33, %s34
      %p38 = pneg %p32
      %p39 = scmp.eq.s32.totalorder %s11, 2
      %p40 = por %p38, %p39
      %p41 = scmp.ne.s32.totalorder %s33, %s36
      %p42 = scmp.eq.s32.totalorder %s11, 0
      %p43 = por %p41, %p42
      %p44 = scmp.ne.s32.totalorder %s33, %s36
      %p45 = scmp.eq.s32.totalorder %s16, 2
      %p46 = por %p44, %p45
      %p47 = scmp.ne.s32.totalorder %s36, %s37
      %p48 = scmp.eq.s32.totalorder %s16, 0
      %p49 = por %p47, %p48
      %p50 = scmp.ne.s32.totalorder %s36, %s37
      %p51 = scmp.eq.s32.totalorder %s17, 2
      %p52 = por %p50, %p51
      %p54 = scmp.ne.s32.totalorder %s37, %s53
      %p55 = scmp.eq.s32.totalorder %s17, 0
      %p56 = por %p54, %p55
      %s58 = sadd.s32 %s57, 1
      %p61 = scmp.eq.s32.totalorder %s11, 2
      %p62 = scmp.ne.s32.totalorder %s57, %s59
      %p63 = scmp.eq.s32.totalorder %s11, 0
      %p64 = por %p62, %p63
      %p65 = scmp.ne.s32.totalorder %s57, %s59
      %p66 = scmp.eq.s32.totalorder %s16, 2
      %p67 = por %p65, %p66
      %p68 = scmp.ne.s32.totalorder %s59, %s60
      %p69 = scmp.eq.s32.totalorder %s16, 0
      %p70 = por %p68, %p69
      %p71 = scmp.ne.s32.totalorder %s59, %s60
      %p72 = scmp.eq.s32.totalorder %s17, 2
      %p73 = por %p71, %p72
      %p75 = scmp.ne.s32.totalorder %s60, %s74
      %p76 = scmp.eq.s32.totalorder %s17, 0
      %p77 = por %p75, %p76
      %s79 = sadd.s32 %s78, 1
      %p82 = scmp.eq.s32.totalorder %s11, 2
      %p83 = scmp.ne.s32.totalorder %s78, %s80
      %p84 = scmp.eq.s32.totalorder %s11, 0
      %p85 = por %p83, %p84
      %p86 = scmp.ne.s32.totalorder %s78, %s80
      %p87 = scmp.eq.s32.totalorder %s16, 2
      %p88 = por %p86, %p87
      %p89 = scmp.ne.s32.totalorder %s80, %s81
      %p90 = scmp.eq.s32.totalorder %s16, 0
      %p91 = por %p89, %p90
      %p92 = scmp.ne.s32.totalorder %s80, %s81
      %p93 = scmp.eq.s32.totalorder %s17, 2
      %p94 = por %p92, %p93
      %p96 = scmp.ne.s32.totalorder %s81, %s95
      %p97 = scmp.eq.s32.totalorder %s17, 0
      %p98 = por %p96, %p97
      %s99 = ssub.s32 %s19, %s26
      %p100 = scmp.eq.s32.totalorder %s99, 0
      %s102 = sadd.s32 %s101, 1
      %s103 = scalar_select %p100, %s101, %s102
      %p106 = pneg %p100
      %p107 = scmp.eq.s32.totalorder %s11, 2
      %p108 = por %p106, %p107
      %p109 = scmp.ne.s32.totalorder %s101, %s104
      %p110 = scmp.eq.s32.totalorder %s11, 0
      %p111 = por %p109, %p110
      %p112 = scmp.ne.s32.totalorder %s101, %s104
      %p113 = scmp.eq.s32.totalorder %s16, 2
      %p114 = por %p112, %p113
      %p115 = scmp.ne.s32.totalorder %s104, %s105
      %p116 = scmp.eq.s32.totalorder %s16, 0
      %p117 = por %p115, %p116
      %p118 = scmp.ne.s32.totalorder %s104, %s105
      %p119 = scmp.eq.s32.totalorder %s17, 2
      %p120 = por %p118, %p119
      %p122 = scmp.ne.s32.totalorder %s105, %s121
      %p123 = scmp.eq.s32.totalorder %s17, 0
      %p124 = por %p122, %p123
      %s125 = ssub.s32 %s19, %s26
      %p126 = scmp.eq.s32.totalorder %s125, 0
      %s128 = sadd.s32 %s127, 1
      %s129 = scalar_select %p126, %s127, %s128
      %p132 = pneg %p126
      %p133 = scmp.eq.s32.totalorder %s11, 2
      %p134 = por %p132, %p133
      %p135 = scmp.ne.s32.totalorder %s127, %s130
      %p136 = scmp.eq.s32.totalorder %s11, 0
      %p137 = por %p135, %p136
      %p138 = scmp.ne.s32.totalorder %s127, %s130
      %p139 = scmp.eq.s32.totalorder %s16, 2
      %p140 = por %p138, %p139
      %p141 = scmp.ne.s32.totalorder %s130, %s131
      %p142 = scmp.eq.s32.totalorder %s16, 0
      %p143 = por %p141, %p142
      %p144 = scmp.ne.s32.totalorder %s130, %s131
      %p145 = scmp.eq.s32.totalorder %s17, 2
      %p146 = por %p144, %p145
      %p148 = scmp.ne.s32.totalorder %s131, %s147
      %p149 = scmp.eq.s32.totalorder %s17, 0
      %p150 = por %p148, %p149
      %s151 = ssub.s32 %s18, %s30
      %s152 = ssub.s32 %s19, %s26
      %s153 = sor.u32 %s151, %s152
      %p154 = scmp.eq.s32.totalorder %s153, 0
      %s156 = sadd.s32 %s155, 1
      %s157 = scalar_select %p154, %s155, %s156
      %p160 = pneg %p154
      %p161 = scmp.eq.s32.totalorder %s11, 2
      %p162 = por %p160, %p161
      %p163 = scmp.ne.s32.totalorder %s155, %s158
      %p164 = scmp.eq.s32.totalorder %s11, 0
      %p165 = por %p163, %p164
      %p166 = scmp.ne.s32.totalorder %s155, %s158
      %p167 = scmp.eq.s32.totalorder %s16, 2
      %p168 = por %p166, %p167
      %p169 = scmp.ne.s32.totalorder %s158, %s159
      %p170 = scmp.eq.s32.totalorder %s16, 0
      %p171 = por %p169, %p170
      %p172 = scmp.ne.s32.totalorder %s158, %s159
      %p173 = scmp.eq.s32.totalorder %s17, 2
      %p174 = por %p172, %p173
      %p176 = scmp.ne.s32.totalorder %s159, %s175
      %p177 = scmp.eq.s32.totalorder %s17, 0
      %p178 = por %p176, %p177
      %p179 = scmp.le.s32.totalorder 1, %s11
      %p180 = scmp.lt.s32.totalorder %s11, 4
      %p181 = pnand %p179, %p180
      %p182 = pneg %p181
      // Predicated region
      $region9: #{vit_b32_forward.15} parent=5 // pred_check
        _
      $region10: #{vit_b32_forward.15} parent=5 // pred_check_branch
        %184 = sbr.rel (%p181) target = $region12
      $region11: #{vit_b32_forward.15} parent=5 // pred_region
        %s185 = ssub.s32 %s11, 1
        // Predicated region
        $region13: #{vit_b32_forward.15} parent=11 // pred_check
          %p186 = pneg %p49
        $region14: #{vit_b32_forward.15} parent=11 // pred_check_branch
          %188 = sbr.rel (%p186) target = $region16
        $region15: #{vit_b32_forward.15} parent=11 // pred_region
          %s189 = smul.u32 2, %s20
          %p190 = scmp.lt.s32.totalorder %s189, 1
          %s191 = scalar_select %p190, %s189, 1
          %s192 = smul.addr %s191, 8
          %s193 = scalar_lea.vmem %s0, %s192
          %s194 = smul.u32 2, %s20
        $region16: #{vit_b32_forward.15} parent=11 // pred_fallthru
          _
        // Predicated region
        $region17: #{vit_b32_forward.15} parent=11 // pred_check
          %p195 = pneg %p70
        $region18: #{vit_b32_forward.15} parent=11 // pred_check_branch
          %197 = sbr.rel (%p195) target = $region20
        $region19: #{vit_b32_forward.15} parent=11 // pred_region
          _
        $region20: #{vit_b32_forward.15} parent=11 // pred_fallthru
          _
        // Predicated region
        $region21: #{vit_b32_forward.15} parent=11 // pred_check
          %p198 = pneg %p91
        $region22: #{vit_b32_forward.15} parent=11 // pred_check_branch
          %200 = sbr.rel (%p198) target = $region24
        $region23: #{vit_b32_forward.15} parent=11 // pred_region
          _
        $region24: #{vit_b32_forward.15} parent=11 // pred_fallthru
          _
      $region12: #{vit_b32_forward.15} parent=5 // pred_fallthru
        _
      %p201 = scmp.lt.s32.totalorder %s11, 3
      // Predicated region
      $region25: #{vit_b32_forward.15} parent=5 // pred_check
        %p202 = pneg %p201
      $region26: #{vit_b32_forward.15} parent=5 // pred_check_branch
        %204 = sbr.rel (%p202) target = $region28
      $region27: #{vit_b32_forward.15} parent=5 // pred_region
        // Predicated region
        $region29: #{vit_b32_forward.15} parent=27 // pred_check
          %p205 = pneg %p111
        $region30: #{vit_b32_forward.15} parent=27 // pred_check_branch
          %207 = sbr.rel (%p205) target = $region32
        $region31: #{vit_b32_forward.15} parent=27 // pred_region
          %s208 = sand.u32 %s101, 1
          %s209 = sand.u32 %s101, 1
          %s210 = smul.addr %s209, 64
          %s211 = scalar_lea.vmem [#allocation2], %s210
          %s212 = smul.addr %s19, 4
          %s213 = scalar_lea.vmem %s3, %s212
          // Predicated region
          $region33: #{vit_b32_forward.15} parent=31 // pred_check
            _
          $region34: #{vit_b32_forward.15} parent=31 // pred_check_branch
            %215 = sbr.rel (0) target = $region36
          $region35: #{vit_b32_forward.15} parent=31 // pred_region
            // Predicated region
            $region37: #{vit_b32_forward.15} parent=35 // pred_check
              _
            $region38: #{vit_b32_forward.15} parent=35 // pred_check_branch
              %217 = sbr.rel target = $region40
            $region39: #{vit_b32_forward.15} parent=35 // pred_region
              // Predicated region
              $region52: #{vit_b32_forward.15} parent=39 // pred_check
                _
              $region53: #{vit_b32_forward.15} parent=39 // pred_check_branch
                %263 = sbr.rel (0) target = $region55
              $region54: #{vit_b32_forward.15} parent=39 // pred_region
                loop: start=0, step=1, limit=1
                $region56: #{vit_b32_forward.15} parent=54 // loop_pre_header
                  _
                $region57: #{vit_b32_forward.15} parent=54 // loop_header
                  %s265 = sphi 0, %s269
                  %p266 = scmp.ge.s32.totalorder %s265, 1
                  %s270 = sphi %s213, %s213
                  %s271 = sphi %s211, %s211
                $region58: #{vit_b32_forward.15} parent=54 // loop_header_branch
                  %268 = sbr.rel (%p266) target = $region62
                $region59: #{vit_b32_forward.15} parent=54 // loop_body
                  _
                $region60: #{vit_b32_forward.15} parent=54 // loop_footer
                  %s269 = sadd.s32 1, %s265
                $region61: #{vit_b32_forward.15} parent=54 // loop_footer_branch
                  %264 = sbr.rel target = $region57
                $region62: #{vit_b32_forward.15} parent=54 // loop_exit
                  _
                %s273 = ssub.s32 16, 1
                loop: start=0, step=1, limit=1
                $region63: #{vit_b32_forward.15} parent=54 // loop_pre_header
                  _
                $region64: #{vit_b32_forward.15} parent=54 // loop_header
                  %s275 = sphi 0, %s279
                  %p276 = scmp.ge.s32.totalorder %s275, 1
                  %s280 = sphi %s213, %s213
                  %s281 = sphi %s211, %s211
                $region65: #{vit_b32_forward.15} parent=54 // loop_header_branch
                  %278 = sbr.rel (%p276) target = $region69
                $region66: #{vit_b32_forward.15} parent=54 // loop_body
                  %v282 = vld [vmem:[%s280] sm:%s273]
                  %283 = vst [vmem:[%s281] sm:%s273] %v282
                  %v284 = vld [vmem:[%s280 + $0xc] sm:%s273]
                  %285 = vst [vmem:[%s281 + $0x4] sm:%s273] %v284
                  %v286 = vld [vmem:[%s280 + $0x18] sm:%s273]
                  %287 = vst [vmem:[%s281 + $0x8] sm:%s273] %v286
                  %v288 = vld [vmem:[%s280 + $0x24] sm:%s273]
                  %289 = vst [vmem:[%s281 + $0xc] sm:%s273] %v288
                  %v290 = vld [vmem:[%s280 + $0x30] sm:%s273]
                  %291 = vst [vmem:[%s281 + $0x10] sm:%s273] %v290
                  %v292 = vld [vmem:[%s280 + $0x3c] sm:%s273]
                  %293 = vst [vmem:[%s281 + $0x14] sm:%s273] %v292
                  %v294 = vld [vmem:[%s280 + $0x48] sm:%s273]
                  %295 = vst [vmem:[%s281 + $0x18] sm:%s273] %v294
                  %v296 = vld [vmem:[%s280 + $0x54] sm:%s273]
                  %297 = vst [vmem:[%s281 + $0x1c] sm:%s273] %v296
                  %v298 = vld [vmem:[%s280 + $0x60] sm:%s273]
                  %299 = vst [vmem:[%s281 + $0x20] sm:%s273] %v298
                  %v300 = vld [vmem:[%s280 + $0x6c] sm:%s273]
                  %301 = vst [vmem:[%s281 + $0x24] sm:%s273] %v300
                  %v302 = vld [vmem:[%s280 + $0x78] sm:%s273]
                  %303 = vst [vmem:[%s281 + $0x28] sm:%s273] %v302
                  %v304 = vld [vmem:[%s280 + $0x84] sm:%s273]
                  %305 = vst [vmem:[%s281 + $0x2c] sm:%s273] %v304
                  %v306 = vld [vmem:[%s280 + $0x90] sm:%s273]
                  %307 = vst [vmem:[%s281 + $0x30] sm:%s273] %v306
                  %v308 = vld [vmem:[%s280 + $0x9c] sm:%s273]
                  %309 = vst [vmem:[%s281 + $0x34] sm:%s273] %v308
                  %v310 = vld [vmem:[%s280 + $0xa8] sm:%s273]
                  %311 = vst [vmem:[%s281 + $0x38] sm:%s273] %v310
                  %v312 = vld [vmem:[%s280 + $0xb4] sm:%s273]
                  %313 = vst [vmem:[%s281 + $0x3c] sm:%s273] %v312
                $region67: #{vit_b32_forward.15} parent=54 // loop_footer
                  %s279 = sadd.s32 1, %s275
                $region68: #{vit_b32_forward.15} parent=54 // loop_footer_branch
                  %274 = sbr.rel target = $region64
                $region69: #{vit_b32_forward.15} parent=54 // loop_exit
                  _
              $region55: #{vit_b32_forward.15} parent=39 // pred_fallthru
                _
            $region40: #{vit_b32_forward.15} parent=35 // pred_fallthru
              _
            // Predicated region
            $region41: #{vit_b32_forward.15} parent=35 // pred_check
              _
            $region42: #{vit_b32_forward.15} parent=35 // pred_check_branch
              %219 = sbr.rel (0) target = $region44
            $region43: #{vit_b32_forward.15} parent=35 // pred_region
              %s221 = ssub.s32 16, 1
              loop: start=0, step=1, limit=1
              $region45: #{vit_b32_forward.15} parent=43 // loop_pre_header
                _
              $region46: #{vit_b32_forward.15} parent=43 // loop_header
                %s223 = sphi 0, %s227
                %p224 = scmp.ge.s32.totalorder %s223, 1
                %s228 = sphi %s213, %s213
                %s229 = sphi %s211, %s211
              $region47: #{vit_b32_forward.15} parent=43 // loop_header_branch
                %226 = sbr.rel (%p224) target = $region51
              $region48: #{vit_b32_forward.15} parent=43 // loop_body
                %v230 = vld [vmem:[%s228] sm:%s221]
                %231 = vst [vmem:[%s229] sm:%s221] %v230
                %v232 = vld [vmem:[%s228 + $0xc] sm:%s221]
                %233 = vst [vmem:[%s229 + $0x4] sm:%s221] %v232
                %v234 = vld [vmem:[%s228 + $0x18] sm:%s221]
                %235 = vst [vmem:[%s229 + $0x8] sm:%s221] %v234
                %v236 = vld [vmem:[%s228 + $0x24] sm:%s221]
                %237 = vst [vmem:[%s229 + $0xc] sm:%s221] %v236
                %v238 = vld [vmem:[%s228 + $0x30] sm:%s221]
                %239 = vst [vmem:[%s229 + $0x10] sm:%s221] %v238
                %v240 = vld [vmem:[%s228 + $0x3c] sm:%s221]
                %241 = vst [vmem:[%s229 + $0x14] sm:%s221] %v240
                %v242 = vld [vmem:[%s228 + $0x48] sm:%s221]
                %243 = vst [vmem:[%s229 + $0x18] sm:%s221] %v242
                %v244 = vld [vmem:[%s228 + $0x54] sm:%s221]
                %245 = vst [vmem:[%s229 + $0x1c] sm:%s221] %v244
                %v246 = vld [vmem:[%s228 + $0x60] sm:%s221]
                %247 = vst [vmem:[%s229 + $0x20] sm:%s221] %v246
                %v248 = vld [vmem:[%s228 + $0x6c] sm:%s221]
                %249 = vst [vmem:[%s229 + $0x24] sm:%s221] %v248
                %v250 = vld [vmem:[%s228 + $0x78] sm:%s221]
                %251 = vst [vmem:[%s229 + $0x28] sm:%s221] %v250
                %v252 = vld [vmem:[%s228 + $0x84] sm:%s221]
                %253 = vst [vmem:[%s229 + $0x2c] sm:%s221] %v252
                %v254 = vld [vmem:[%s228 + $0x90] sm:%s221]
                %255 = vst [vmem:[%s229 + $0x30] sm:%s221] %v254
                %v256 = vld [vmem:[%s228 + $0x9c] sm:%s221]
                %257 = vst [vmem:[%s229 + $0x34] sm:%s221] %v256
                %v258 = vld [vmem:[%s228 + $0xa8] sm:%s221]
                %259 = vst [vmem:[%s229 + $0x38] sm:%s221] %v258
                %v260 = vld [vmem:[%s228 + $0xb4] sm:%s221]
                %261 = vst [vmem:[%s229 + $0x3c] sm:%s221] %v260
              $region49: #{vit_b32_forward.15} parent=43 // loop_footer
                %s227 = sadd.s32 1, %s223
              $region50: #{vit_b32_forward.15} parent=43 // loop_footer_branch
                %222 = sbr.rel target = $region46
              $region51: #{vit_b32_forward.15} parent=43 // loop_exit
                _
            $region44: #{vit_b32_forward.15} parent=35 // pred_fallthru
              _
          $region36: #{vit_b32_forward.15} parent=31 // pred_fallthru
            _
          %314 = vnop
        $region32: #{vit_b32_forward.15} parent=27 // pred_fallthru
          _
        // Predicated region
        $region70: #{vit_b32_forward.15} parent=27 // pred_check
          %p315 = pneg %p137
        $region71: #{vit_b32_forward.15} parent=27 // pred_check_branch
          %317 = sbr.rel (%p315) target = $region73
        $region72: #{vit_b32_forward.15} parent=27 // pred_region
          %p318 = scmp.lt.s32.totalorder %s19, 2
          %s319 = scalar_select %p318, %s19, 2
          %s320 = scalar_lea.vmem %s4, %s319
        $region73: #{vit_b32_forward.15} parent=27 // pred_fallthru
          _
      $region28: #{vit_b32_forward.15} parent=5 // pred_fallthru
        _
      %p321 = scmp.le.s32.totalorder 1, %s11
      %p322 = scmp.lt.s32.totalorder %s11, 4
      %p323 = pnand %p321, %p322
      %p324 = pneg %p323
      // Predicated region
      $region74: #{vit_b32_forward.15} parent=5 // pred_check
        _
      $region75: #{vit_b32_forward.15} parent=5 // pred_check_branch
        %326 = sbr.rel (%p323) target = $region77
      $region76: #{vit_b32_forward.15} parent=5 // pred_region
        %s327 = ssub.s32 %s11, 1
        %s328 = sand.u32 %s104, 1
        %s329 = sand.u32 %s104, 1
        %s330 = smul.addr %s329, 64
        %s331 = scalar_lea.vmem [#allocation2], %s330
        // Predicated region
        $region78: #{vit_b32_forward.15} parent=76 // pred_check
          %p332 = pneg %p117
        $region79: #{vit_b32_forward.15} parent=76 // pred_check_branch
          %334 = sbr.rel (%p332) target = $region81
        $region80: #{vit_b32_forward.15} parent=76 // pred_region
          _
        $region81: #{vit_b32_forward.15} parent=76 // pred_fallthru
          _
        %s335 = smul.u32 2, %s20
        %p336 = scmp.lt.s32.totalorder %s335, 1
        %s337 = scalar_select %p336, %s335, 1
        %s338 = smul.addr %s337, 8
        %s339 = scalar_lea.vmem %s0, %s338
        %p340 = pneg %p49
        %p341 = pneg %p46
        %p342 = pneg %p70
        %p343 = pneg %p67
        %p344 = pneg %p91
        %p345 = pneg %p88
        %s346 = sand.u32 %s104, 1
        %s347 = sand.u32 %s104, 1
        %s348 = smul.addr %s347, 64
        %s349 = scalar_lea.vmem [#allocation2], %s348
        %p350 = pneg %p117
        %p351 = pneg %p114
        %p352 = scmp.lt.s32.totalorder %s21, 2
        %s353 = scalar_select %p352, %s21, 2
        %s354 = scalar_lea.vmem %s4, %s353
        %p355 = pneg %p143
        %p356 = pneg %p140
        %p357 = pneg %p171
        %p358 = pneg %p168
        %s359 = sand.u32 %s158, 1
        %s360 = sand.u32 %s158, 1
        %s361 = smul.addr %s360, 8
        %s362 = scalar_lea.vmem [#allocation3], %s361
        %s363 = smul.u32 2, %s20
        %p364 = scmp.lt.s32.totalorder %s363, 1
        %s365 = scalar_select %p364, %s363, 1
        %s366 = smul.addr %s365, 8
        %s367 = scalar_lea.vmem %s0, %s366
        %s368 = smul.u32 2, %s20
        %p369 = scmp.lt.s32.totalorder %s21, 2
        %s370 = scalar_select %p369, %s21, 2
        %s371 = scalar_lea.vmem %s4, %s370
        %s372 = smul.u32 2, %s20
        %v373 = vld [vmem:[%s367] sm:$0xff]
        %v374 = vld [vmem:[%s367 + $0x8] sm:$0x3]
        %375 = vadd.xlane.f32.xlu0 %v373
        %v376 = vpop.xlane.xlu0 %375
        %vm377 = vcmask 1041408
        %v378 = vsel %vm377, %v374, 0.0
        %379 = vadd.xlane.f32.xlu0 %v378
        %v380 = vpop.xlane.xlu0 %379
        %v381 = vrcp.pop 128.0
        %v382 = vmul.f32 128.0, %v381
        %v383 = vsub.f32 1.0, %v382
        %v384 = vmul.f32 %v381, %v383
        %v385 = vadd.f32 %v381, %v384
        %vm386 = vweird.f32 %v381
        %v387 = vsel %vm386, %v381, %v385
        %v388 = vmul.f32 %v376, %v387
        %v389 = vmul.f32 %v380, %v387
        %v390 = vsub.f32 %v373, %v388
        %v391 = vsub.f32 %v374, %v389
        %v392 = vmul.f32 %v390, %v390
        %v393 = vmul.f32 %v391, %v391
        %394 = vadd.xlane.f32.xlu0 %v392
        %v395 = vpop.xlane.xlu0 %394
        %v396 = vsel %vm377, %v393, 0.0
        %397 = vadd.xlane.f32.xlu0 %v396
        %v398 = vpop.xlane.xlu0 %397
        %v399 = vmul.f32 %v395, %v387
        %v400 = vmul.f32 %v398, %v387
        %v401 = vadd.f32 %v399, 1e-06
        %v402 = vadd.f32 %v400, 1e-06
        %v403 = vrsqrt.pop %v401
        %v404 = vmul.f32 %v403, %v401
        %v405 = vmul.f32 %v404, %v403
        %v406 = vmul.f32 0.5, %v405
        %v407 = vsub.f32 1.5, %v406
        %v408 = vmul.f32 %v403, %v407
        %vm409 = vweird.f32 %v401
        %vm410 = vweird.f32 %v403
        %vm411 = vmor %vm409, %vm410
        %v412 = vsel %vm411, %v403, %v408
        %v413 = vrsqrt.pop %v402
        %v414 = vmul.f32 %v413, %v402
        %v415 = vmul.f32 %v414, %v413
        %v416 = vmul.f32 0.5, %v415
        %v417 = vsub.f32 1.5, %v416
        %v418 = vmul.f32 %v413, %v417
        %vm419 = vweird.f32 %v402
        %vm420 = vweird.f32 %v413
        %vm421 = vmor %vm419, %vm420
        %v422 = vsel %vm421, %v413, %v418
        %v423 = vmul.f32 %v390, %v412
        %v424 = vmul.f32 %v391, %v422
        %v425 = vld [vmem:[%s1] sm:$0x1]
        %v427 = vperm.slane %v425, 0
        %v429 = vmul.f32 %v423, %v427
        %v430 = vmul.f32 %v424, %v427
        %v431 = vld [vmem:[%s2] sm:$0x1]
        %v433 = vperm.slane %v431, 0
        %v435 = vadd.f32 %v429, %v433
        %v436 = vadd.f32 %v430, %v433
        %v437 = vpack.c.bf16 %v436, %v435
        %v438 = vld [vmem:[%s331] sm:$0xf]
        %v439 = vld [vmem:[%s331 + $0x4] sm:$0xf]
        %v440 = vld [vmem:[%s331 + $0x8] sm:$0xf]
        %v441 = vld [vmem:[%s331 + $0xc] sm:$0xf]
        %v442 = vld [vmem:[%s331 + $0x10] sm:$0xf]
        %v443 = vld [vmem:[%s331 + $0x14] sm:$0xf]
        %v444 = vld [vmem:[%s331 + $0x18] sm:$0xf]
        %v445 = vld [vmem:[%s331 + $0x1c] sm:$0xf]
        %v446 = vld [vmem:[%s331 + $0x20] sm:$0xf]
        %v447 = vld [vmem:[%s331 + $0x24] sm:$0xf]
        %v448 = vld [vmem:[%s331 + $0x28] sm:$0xf]
        %v449 = vld [vmem:[%s331 + $0x2c] sm:$0xf]
        %v450 = vld [vmem:[%s331 + $0x30] sm:$0xf]
        %v451 = vld [vmem:[%s331 + $0x34] sm:$0xf]
        %v452 = vld [vmem:[%s331 + $0x38] sm:$0xf]
        %v453 = vld [vmem:[%s331 + $0x3c] sm:$0xf]
        %v454 = vld [vmem:[%s371] sm:$0x1]
        %v456 = vperm.slane %v454, 0
        %v474 = vunpack.c.l.b16 %v438
        %v475 = vunpack.c.l.b16 %v439
        %v476 = vunpack.c.l.b16 %v440
        %v477 = vunpack.c.l.b16 %v441
        %v478 = vunpack.c.l.b16 %v442
        %v479 = vunpack.c.l.b16 %v443
        %v480 = vunpack.c.l.b16 %v444
        %v481 = vunpack.c.l.b16 %v445
        %v482 = vunpack.c.l.b16 %v446
        %v483 = vunpack.c.l.b16 %v447
        %v484 = vunpack.c.l.b16 %v448
        %v485 = vunpack.c.l.b16 %v449
        %v486 = vunpack.c.l.b16 %v450
        %v487 = vunpack.c.l.b16 %v451
        %v488 = vunpack.c.l.b16 %v452
        %v489 = vunpack.c.l.b16 %v453
        %v490 = vpack.c.b16 %v475, %v474
        %v491 = vpack.c.b16 %v477, %v476
        %v492 = vpack.c.b16 %v479, %v478
        %v493 = vpack.c.b16 %v481, %v480
        %v494 = vpack.c.b16 %v483, %v482
        %v495 = vpack.c.b16 %v485, %v484
        %v496 = vpack.c.b16 %v487, %v486
        %v497 = vpack.c.b16 %v489, %v488
        %506 = vmatpush.bf16.msra.mxu0 %v497
        %507 = vmatpush.bf16.msra.mxu0 %v496
        %508 = vmatpush.bf16.msra.mxu0 %v495
        %509 = vmatpush.bf16.msra.mxu0 %v494
        %510 = vmatpush.bf16.msra.mxu0 %v493
        %511 = vmatpush.bf16.msra.mxu0 %v492
        %512 = vmatpush.bf16.msra.mxu0 %v491
        %513 = vmatpush.bf16.msra.mxu0 %v490
        %514 = vmatmul.bf16.gmra.mxu0 %v437
        %v515 = vpop.f32.mrf.mxu0
        %v516 = vadd.f32 %v456, %v515
        %v517 = vpop.f32.mrf.mxu0
        %v518 = vadd.f32 %v456, %v517
        %519 = vdwg.mxu0
        %v520 = vpack.c.bf16 %v516, %v516
        %v521 = vpack.c.bf16 %v518, %v518
        %522 = vst [vmem:[%s362] sm:$0xf] %v520
        %523 = vst [vmem:[%s362 + $0x4] sm:$0x1] %v521
        %s524 = sand.u32 %s158, 1
        %s525 = sand.u32 %s158, 1
        %s526 = smul.addr %s525, 8
        %s527 = scalar_lea.vmem [#allocation3], %s526
        // Predicated region
        $region82: #{vit_b32_forward.15} parent=76 // pred_check
          %p528 = pneg %p168
        $region83: #{vit_b32_forward.15} parent=76 // pred_check_branch
          %530 = sbr.rel (%p528) target = $region85
        $region84: #{vit_b32_forward.15} parent=76 // pred_region
          %s531 = smul.u32 2, %s20
          %s532 = smul.addr %s531, 3
          %s533 = sadd.s32 %s21, %s532
          %s534 = smul.addr %s533, 4
          %s535 = scalar_lea.vmem %s5, %s534
          // Predicated region
          $region86: #{vit_b32_forward.15} parent=84 // pred_check
            _
          $region87: #{vit_b32_forward.15} parent=84 // pred_check_branch
            %537 = sbr.rel (0) target = $region89
          $region88: #{vit_b32_forward.15} parent=84 // pred_region
            // Predicated region
            $region90: #{vit_b32_forward.15} parent=88 // pred_check
              _
            $region91: #{vit_b32_forward.15} parent=88 // pred_check_branch
              %539 = sbr.rel target = $region93
            $region92: #{vit_b32_forward.15} parent=88 // pred_region
              // Predicated region
              $region105: #{vit_b32_forward.15} parent=92 // pred_check
                _
              $region106: #{vit_b32_forward.15} parent=92 // pred_check_branch
                %557 = sbr.rel (0) target = $region108
              $region107: #{vit_b32_forward.15} parent=92 // pred_region
                loop: start=0, step=1, limit=1
                $region109: #{vit_b32_forward.15} parent=107 // loop_pre_header
                  _
                $region110: #{vit_b32_forward.15} parent=107 // loop_header
                  %s559 = sphi 0, %s563
                  %p560 = scmp.ge.s32.totalorder %s559, 1
                  %s564 = sphi %s527, %s527
                  %s565 = sphi %s535, %s535
                $region111: #{vit_b32_forward.15} parent=107 // loop_header_branch
                  %562 = sbr.rel (%p560) target = $region115
                $region112: #{vit_b32_forward.15} parent=107 // loop_body
                  _
                $region113: #{vit_b32_forward.15} parent=107 // loop_footer
                  %s563 = sadd.s32 1, %s559
                $region114: #{vit_b32_forward.15} parent=107 // loop_footer_branch
                  %558 = sbr.rel target = $region110
                $region115: #{vit_b32_forward.15} parent=107 // loop_exit
                  _
                %s567 = ssub.s32 16, 1
                loop: start=0, step=1, limit=1
                $region116: #{vit_b32_forward.15} parent=107 // loop_pre_header
                  _
                $region117: #{vit_b32_forward.15} parent=107 // loop_header
                  %s569 = sphi 0, %s573
                  %p570 = scmp.ge.s32.totalorder %s569, 1
                  %s574 = sphi %s527, %s527
                  %s575 = sphi %s535, %s535
                $region118: #{vit_b32_forward.15} parent=107 // loop_header_branch
                  %572 = sbr.rel (%p570) target = $region122
                $region119: #{vit_b32_forward.15} parent=107 // loop_body
                  %v576 = vld [vmem:[%s574] sm:%s567]
                  %577 = vst [vmem:[%s575] sm:%s567] %v576
                  %v578 = vld [vmem:[%s574 + $0x4] sm:%s567]
                  %579 = vst [vmem:[%s575 + $0xc] sm:%s567] %v578
                $region120: #{vit_b32_forward.15} parent=107 // loop_footer
                  %s573 = sadd.s32 1, %s569
                $region121: #{vit_b32_forward.15} parent=107 // loop_footer_branch
                  %568 = sbr.rel target = $region117
                $region122: #{vit_b32_forward.15} parent=107 // loop_exit
                  _
              $region108: #{vit_b32_forward.15} parent=92 // pred_fallthru
                _
            $region93: #{vit_b32_forward.15} parent=88 // pred_fallthru
              _
            // Predicated region
            $region94: #{vit_b32_forward.15} parent=88 // pred_check
              _
            $region95: #{vit_b32_forward.15} parent=88 // pred_check_branch
              %541 = sbr.rel (0) target = $region97
            $region96: #{vit_b32_forward.15} parent=88 // pred_region
              %s543 = ssub.s32 16, 1
              loop: start=0, step=1, limit=1
              $region98: #{vit_b32_forward.15} parent=96 // loop_pre_header
                _
              $region99: #{vit_b32_forward.15} parent=96 // loop_header
                %s545 = sphi 0, %s549
                %p546 = scmp.ge.s32.totalorder %s545, 1
                %s550 = sphi %s527, %s527
                %s551 = sphi %s535, %s535
              $region100: #{vit_b32_forward.15} parent=96 // loop_header_branch
                %548 = sbr.rel (%p546) target = $region104
              $region101: #{vit_b32_forward.15} parent=96 // loop_body
                %v552 = vld [vmem:[%s550] sm:%s543]
                %553 = vst [vmem:[%s551] sm:%s543] %v552
                %v554 = vld [vmem:[%s550 + $0x4] sm:%s543]
                %555 = vst [vmem:[%s551 + $0xc] sm:%s543] %v554
              $region102: #{vit_b32_forward.15} parent=96 // loop_footer
                %s549 = sadd.s32 1, %s545
              $region103: #{vit_b32_forward.15} parent=96 // loop_footer_branch
                %544 = sbr.rel target = $region99
              $region104: #{vit_b32_forward.15} parent=96 // loop_exit
                _
            $region97: #{vit_b32_forward.15} parent=88 // pred_fallthru
              _
          $region89: #{vit_b32_forward.15} parent=84 // pred_fallthru
            _
          %580 = vnop
        $region85: #{vit_b32_forward.15} parent=76 // pred_fallthru
          _
      $region77: #{vit_b32_forward.15} parent=5 // pred_fallthru
        _
      %p581 = scmp.le.s32.totalorder 2, %s11
      // Predicated region
      $region123: #{vit_b32_forward.15} parent=5 // pred_check
        %p582 = pneg %p581
      $region124: #{vit_b32_forward.15} parent=5 // pred_check_branch
        %584 = sbr.rel (%p582) target = $region126
      $region125: #{vit_b32_forward.15} parent=5 // pred_region
        %s585 = ssub.s32 %s11, 2
        // Predicated region
        $region127: #{vit_b32_forward.15} parent=125 // pred_check
          %p586 = pneg %p174
        $region128: #{vit_b32_forward.15} parent=125 // pred_check_branch
          %588 = sbr.rel (%p586) target = $region130
        $region129: #{vit_b32_forward.15} parent=125 // pred_region
          %s589 = sand.u32 %s159, 1
          %s590 = sand.u32 %s159, 1
          %s591 = smul.addr %s590, 8
          %s592 = scalar_lea.vmem [#allocation3], %s591
        $region130: #{vit_b32_forward.15} parent=125 // pred_fallthru
          _
      $region126: #{vit_b32_forward.15} parent=5 // pred_fallthru
        _
    $region6: #{vit_b32_forward.15} parent=1 // loop_footer
      %s15 = sadd.s32 1, %s11
    $region7: #{vit_b32_forward.15} parent=1 // loop_footer_branch
      %10 = sbr.rel target = $region3
    $region8: #{vit_b32_forward.15} parent=1 // loop_exit
      _

// kernel: vit_b32_forward.16
$region0: #{vit_b32_forward.16}
  #allocation0 [shape = 'u32[]', space=smem, size = 0x4, offset = 0x4, fixed_abs, tag = 'smem constant byte address 0x4 - core index']
  #allocation1 [shape = 'u32[72,128]{1,0:T(1,128)}', space=vmem, size = 0x9000, scoped, tag = 'internal scratch']
  %s0 = inlined_call_operand.vmem [shape: bf16[2,5,384], index: 0, kind: input, shape index: {}]
  %s1 = inlined_call_operand.vmem [shape: bf16[2,5,128], index: 1, kind: output, shape index: {}]
  %s2 = sld [smem:[#allocation0]]
  $region37: #{vit_b32_forward.16} parent=0
    _
  %s4 = ssub.s32 1, %s2
  %s5 = scalar_select 0, %s4, %s2
  loop: start=0, step=1, limit=4
  $region2: #{vit_b32_forward.16} parent=0 // loop_pre_header
    _
  $region3: #{vit_b32_forward.16} parent=0 // loop_header
    %s7 = sphi 0, %s11
    %p8 = scmp.ge.s32.totalorder %s7, 4
    %s14 = sphi 0, %s26
    %s15 = sphi 0, %s22
    %s16 = sphi 0, %s14
    %s17 = sphi 0, %s15
    %s18 = sphi 0, %s16
    %s19 = sphi 0, %s17
    %s29 = sphi 0, %s31
    %s32 = sphi 0, %s29
    %s33 = sphi 0, %s32
    %s49 = sphi 0, %s33
    %s57 = sphi 0, %s59
    %s60 = sphi 0, %s57
    %s61 = sphi 0, %s60
    %s77 = sphi 0, %s61
  $region4: #{vit_b32_forward.16} parent=0 // loop_header_branch
    %10 = sbr.rel (%p8) target = $region8
  $region5: #{vit_b32_forward.16} parent=0 // loop_body
    %s12 = ssub.s32 %s7, 1
    %s13 = ssub.s32 %s7, 2
    %s20 = sadd.s32 1, %s15
    %p21 = scmp.ge.s32.totalorder %s20, 1
    %s22 = scalar_select %p21, 0, %s20
    %s23 = sadd.s32 1, %s14
    %s24 = scalar_select %p21, %s23, %s14
    %p25 = scmp.ge.s32.totalorder %s24, 2
    %s26 = scalar_select %p25, 0, %s24
    %s27 = ssub.s32 %s14, %s26
    %p28 = scmp.eq.s32.totalorder %s27, 0
    %s30 = sadd.s32 %s29, 1
    %s31 = scalar_select %p28, %s29, %s30
    %p34 = pneg %p28
    %p35 = scmp.eq.s32.totalorder %s7, 1
    %p36 = por %p34, %p35
    %p37 = scmp.ne.s32.totalorder %s29, %s32
    %p38 = scmp.eq.s32.totalorder %s7, 0
    %p39 = por %p37, %p38
    %p40 = scmp.ne.s32.totalorder %s29, %s32
    %p41 = scmp.eq.s32.totalorder %s12, 1
    %p42 = por %p40, %p41
    %p43 = scmp.ne.s32.totalorder %s32, %s33
    %p44 = scmp.eq.s32.totalorder %s12, 0
    %p45 = por %p43, %p44
    %p46 = scmp.ne.s32.totalorder %s32, %s33
    %p47 = scmp.eq.s32.totalorder %s13, 1
    %p48 = por %p46, %p47
    %p50 = scmp.ne.s32.totalorder %s33, %s49
    %p51 = scmp.eq.s32.totalorder %s13, 0
    %p52 = por %p50, %p51
    %s53 = ssub.s32 %s14, %s26
    %s54 = ssub.s32 %s15, %s22
    %s55 = sor.u32 %s53, %s54
    %p56 = scmp.eq.s32.totalorder %s55, 0
    %s58 = sadd.s32 %s57, 1
    %s59 = scalar_select %p56, %s57, %s58
    %p62 = pneg %p56
    %p63 = scmp.eq.s32.totalorder %s7, 1
    %p64 = por %p62, %p63
    %p65 = scmp.ne.s32.totalorder %s57, %s60
    %p66 = scmp.eq.s32.totalorder %s7, 0
    %p67 = por %p65, %p66
    %p68 = scmp.ne.s32.totalorder %s57, %s60
    %p69 = scmp.eq.s32.totalorder %s12, 1
    %p70 = por %p68, %p69
    %p71 = scmp.ne.s32.totalorder %s60, %s61
    %p72 = scmp.eq.s32.totalorder %s12, 0
    %p73 = por %p71, %p72
    %p74 = scmp.ne.s32.totalorder %s60, %s61
    %p75 = scmp.eq.s32.totalorder %s13, 1
    %p76 = por %p74, %p75
    %p78 = scmp.ne.s32.totalorder %s61, %s77
    %p79 = scmp.eq.s32.totalorder %s13, 0
    %p80 = por %p78, %p79
    %p81 = scmp.le.s32.totalorder 1, %s7
    %p82 = scmp.lt.s32.totalorder %s7, 3
    %p83 = pnand %p81, %p82
    %p84 = pneg %p83
    // Predicated region
    $region9: #{vit_b32_forward.16} parent=5 // pred_check
      _
    $region10: #{vit_b32_forward.16} parent=5 // pred_check_branch
      %86 = sbr.rel (%p83) target = $region12
    $region11: #{vit_b32_forward.16} parent=5 // pred_region
      %s87 = ssub.s32 %s7, 1
    $region12: #{vit_b32_forward.16} parent=5 // pred_fallthru
      _
    %p88 = scmp.lt.s32.totalorder %s7, 2
    // Predicated region
    $region13: #{vit_b32_forward.16} parent=5 // pred_check
      %p89 = pneg %p88
    $region14: #{vit_b32_forward.16} parent=5 // pred_check_branch
      %91 = sbr.rel (%p89) target = $region16
    $region15: #{vit_b32_forward.16} parent=5 // pred_region
      // Predicated region
      $region17: #{vit_b32_forward.16} parent=15 // pred_check
        %p92 = pneg %p39
      $region18: #{vit_b32_forward.16} parent=15 // pred_check_branch
        %94 = sbr.rel (%p92) target = $region20
      $region19: #{vit_b32_forward.16} parent=15 // pred_region
        %p95 = scmp.lt.s32.totalorder %s14, 1
        %s96 = scalar_select %p95, %s14, 1
        %s97 = smul.addr %s96, 3
        %s98 = smul.addr %s97, 4
        %s99 = scalar_lea.vmem %s0, %s98
      $region20: #{vit_b32_forward.16} parent=15 // pred_fallthru
        _
    $region16: #{vit_b32_forward.16} parent=5 // pred_fallthru
      _
    %p100 = scmp.le.s32.totalorder 1, %s7
    %p101 = scmp.lt.s32.totalorder %s7, 3
    %p102 = pnand %p100, %p101
    %p103 = pneg %p102
    // Predicated region
    $region21: #{vit_b32_forward.16} parent=5 // pred_check
      _
    $region22: #{vit_b32_forward.16} parent=5 // pred_check_branch
      %105 = sbr.rel (%p102) target = $region24
    $region23: #{vit_b32_forward.16} parent=5 // pred_region
      %s106 = ssub.s32 %s7, 1
      %p107 = scmp.lt.s32.totalorder %s16, 1
      %s108 = scalar_select %p107, %s16, 1
      %s109 = smul.addr %s108, 3
      %s110 = smul.addr %s109, 4
      %s111 = scalar_lea.vmem %s0, %s110
      %p112 = pneg %p45
      %p113 = pneg %p42
      %p114 = pneg %p73
      %p115 = pneg %p70
      %p116 = scmp.lt.s32.totalorder %s16, 1
      %s117 = scalar_select %p116, %s16, 1
      %p118 = scmp.lt.s32.totalorder %s17, 0
      %s119 = scalar_select %p118, %s17, 0
      %s120 = sadd.s32 %s119, %s117
      %s121 = smul.addr %s120, 4
      %s122 = scalar_lea.vmem %s1, %s121
      %p123 = scmp.lt.s32.totalorder %s16, 1
      %s124 = scalar_select %p123, %s16, 1
      %s125 = smul.addr %s124, 3
      %s126 = smul.addr %s125, 4
      %s127 = scalar_lea.vmem %s0, %s126
      %p128 = scmp.lt.s32.totalorder %s16, 1
      %s129 = scalar_select %p128, %s16, 1
      %p130 = scmp.lt.s32.totalorder %s17, 0
      %s131 = scalar_select %p130, %s17, 0
      %s132 = sadd.s32 %s131, %s129
      %s133 = smul.addr %s132, 4
      %s134 = scalar_lea.vmem %s1, %s133
      %v136 = vld [vmem:[%s127] sm:$0x7]
      %v137 = vld [vmem:[%s127 + $0x4] sm:$0x7]
      %v138 = vld [vmem:[%s127 + $0x8] sm:$0x7]
      %v139 = vunpack.c.l.bf16 %v136
      %v140 = vmul.f32 %v139, 0.17675781
      %v141 = vpack.c.bf16 %v140, %v140
      %vm142 = vcmask 261120
      %v144 = vsel %vm142, %v141, 0
      %v147 = vsel %vm142, %v137, 0
      %149 = vmatpush.bf16.xpose.msra.mxu0 0
      %150 = vmatpush.bf16.xpose.msra.mxu0 0
      %151 = vmatpush.bf16.xpose.msra.mxu0 0
      %152 = vmatpush.bf16.xpose.msra.mxu0 0
      %153 = vmatpush.bf16.xpose.msra.mxu0 0
      %154 = vmatpush.bf16.xpose.msra.mxu0 0
      %155 = vmatpush.bf16.xpose.msra.mxu0 0
      %156 = vmatpush.bf16.xpose.msra.mxu0 %v147
      %157 = vmatmul.bf16.gmra.mxu0 %v144
      %v158 = vpop.f32.mrf.mxu0
      %v159 = vadd.f32 0.0, %v158
      %v160 = vpop.f32.mrf.mxu0
      %161 = vdwg.mxu0
      %vm162 = vcmask 36864
      %v163 = vsel %vm162, %v159, -inf
      %164 = vmax.xlane.f32.xlu0 %v163
      %v165 = vpop.xlane.xlu0 %164
      %v166 = vsub.f32 %v159, %v165
      %v167 = vmul.f32 %v166, 1.442695
      %v168 = vpow.pop %v167
      %v169 = vsel %vm162, %v168, 0.0
      %170 = vadd.xlane.f32.xlu0 %v169
      %v171 = vpop.xlane.xlu0 %170
      %v172 = vrcp.pop %v171
      %v173 = vmul.f32 %v168, %v172
      %v174 = vpack.c.bf16 %v173, %v173
      %vm175 = vcmask 39936
      %v177 = vsel %vm175, %v174, 0
      %vm179 = vcmask 1041408
      %vm180 = vcmask 1042432
      %v181 = vsel %vm179, 4294967295, 65535
      %v182 = vsel %vm180, %v181, 0
      %v184 = vand.u32 %v138, %v182
      %186 = vmatpush.bf16.msra.mxu0 0
      %187 = vmatpush.bf16.msra.mxu0 0
      %188 = vmatpush.bf16.msra.mxu0 0
      %189 = vmatpush.bf16.msra.mxu0 0
      %190 = vmatpush.bf16.msra.mxu0 0
      %191 = vmatpush.bf16.msra.mxu0 0
      %192 = vmatpush.bf16.msra.mxu0 0
      %193 = vmatpush.bf16.msra.mxu0 %v184
      %194 = vmatmul.bf16.gmra.mxu0 %v177
      %v195 = vpop.f32.mrf.mxu0
      %v196 = vadd.f32 0.0, %v195
      %v197 = vpop.f32.mrf.mxu0
      %198 = vdwg.mxu0
      %v199 = vpack.c.bf16 %v196, %v196
      %v201 = vunpack.c.l.b16 %v141
      %v202 = vpack.c.b16 %v201, %v201
      %203 = vrot.lane.b32.xlu0 %v202, 96
      %v204 = vpop.permute.xlu0 %203
      %v206 = vunpack.c.l.b16 %v137
      %v207 = vpack.c.b16 %v206, %v206
      %208 = vrot.lane.b32.xlu0 %v207, 96
      %v209 = vpop.permute.xlu0 %208
      %v211 = vsel %vm142, %v204, 0
      %v214 = vsel %vm142, %v209, 0
      %216 = vmatpush.bf16.xpose.msra.mxu0 0
      %217 = vmatpush.bf16.xpose.msra.mxu0 0
      %218 = vmatpush.bf16.xpose.msra.mxu0 0
      %219 = vmatpush.bf16.xpose.msra.mxu0 0
      %220 = vmatpush.bf16.xpose.msra.mxu0 0
      %221 = vmatpush.bf16.xpose.msra.mxu0 0
      %222 = vmatpush.bf16.xpose.msra.mxu0 0
      %223 = vmatpush.bf16.xpose.msra.mxu0 %v214
      %224 = vmatmul.bf16.gmra.mxu0 %v211
      %v225 = vpop.f32.mrf.mxu0
      %v226 = vadd.f32 0.0, %v225
      %v227 = vpop.f32.mrf.mxu0
      %228 = vdwg.mxu0
      %v229 = vsel %vm162, %v226, -inf
      %230 = vmax.xlane.f32.xlu0 %v229
      %v231 = vpop.xlane.xlu0 %230
      %v232 = vsub.f32 %v226, %v231
      %v233 = vmul.f32 %v232, 1.442695
      %v234 = vpow.pop %v233
      %v235 = vsel %vm162, %v234, 0.0
      %236 = vadd.xlane.f32.xlu0 %v235
      %v237 = vpop.xlane.xlu0 %236
      %v238 = vrcp.pop %v237
      %v239 = vmul.f32 %v234, %v238
      %v240 = vpack.c.bf16 %v239, %v239
      %v242 = vunpack.c.l.b16 %v138
      %v243 = vpack.c.b16 %v242, %v242
      %244 = vrot.lane.b32.xlu0 %v243, 96
      %v245 = vpop.permute.xlu0 %244
      %v247 = vsel %vm175, %v240, 0
      %v250 = vand.u32 %v245, %v182
      %252 = vmatpush.bf16.msra.mxu0 0
      %253 = vmatpush.bf16.msra.mxu0 0
      %254 = vmatpush.bf16.msra.mxu0 0
      %255 = vmatpush.bf16.msra.mxu0 0
      %256 = vmatpush.bf16.msra.mxu0 0
      %257 = vmatpush.bf16.msra.mxu0 0
      %258 = vmatpush.bf16.msra.mxu0 0
      %259 = vmatpush.bf16.msra.mxu0 %v250
      %260 = vmatmul.bf16.gmra.mxu0 %v247
      %v261 = vpop.f32.mrf.mxu0
      %v262 = vadd.f32 0.0, %v261
      %v263 = vpop.f32.mrf.mxu0
      %264 = vdwg.mxu0
      %v265 = vpack.c.bf16 %v262, %v262
      %266 = vrot.lane.b32.xlu0 %v202, 64
      %v267 = vpop.permute.xlu0 %266
      %268 = vrot.lane.b32.xlu0 %v207, 64
      %v269 = vpop.permute.xlu0 %268
      %v271 = vsel %vm142, %v267, 0
      %v274 = vsel %vm142, %v269, 0
      %276 = vmatpush.bf16.xpose.msra.mxu0 0
      %277 = vmatpush.bf16.xpose.msra.mxu0 0
      %278 = vmatpush.bf16.xpose.msra.mxu0 0
      %279 = vmatpush.bf16.xpose.msra.mxu0 0
      %280 = vmatpush.bf16.xpose.msra.mxu0 0
      %281 = vmatpush.bf16.xpose.msra.mxu0 0
      %282 = vmatpush.bf16.xpose.msra.mxu0 0
      %283 = vmatpush.bf16.xpose.msra.mxu0 %v274
      %284 = vmatmul.bf16.gmra.mxu0 %v271
      %v285 = vpop.f32.mrf.mxu0
      %v286 = vadd.f32 0.0, %v285
      %v287 = vpop.f32.mrf.mxu0
      %288 = vdwg.mxu0
      %v289 = vsel %vm162, %v286, -inf
      %290 = vmax.xlane.f32.xlu0 %v289
      %v291 = vpop.xlane.xlu0 %290
      %v292 = vsub.f32 %v286, %v291
      %v293 = vmul.f32 %v292, 1.442695
      %v294 = vpow.pop %v293
      %v295 = vsel %vm162, %v294, 0.0
      %296 = vadd.xlane.f32.xlu0 %v295
      %v297 = vpop.xlane.xlu0 %296
      %v298 = vrcp.pop %v297
      %v299 = vmul.f32 %v294, %v298
      %v300 = vpack.c.bf16 %v299, %v299
      %301 = vrot.lane.b32.xlu0 %v243, 64
      %v302 = vpop.permute.xlu0 %301
      %v304 = vsel %vm175, %v300, 0
      %v307 = vand.u32 %v302, %v182
      %309 = vmatpush.bf16.msra.mxu0 0
      %310 = vmatpush.bf16.msra.mxu0 0
      %311 = vmatpush.bf16.msra.mxu0 0
      %312 = vmatpush.bf16.msra.mxu0 0
      %313 = vmatpush.bf16.msra.mxu0 0
      %314 = vmatpush.bf16.msra.mxu0 0
      %315 = vmatpush.bf16.msra.mxu0 0
      %316 = vmatpush.bf16.msra.mxu0 %v307
      %317 = vmatmul.bf16.gmra.mxu0 %v304
      %v318 = vpop.f32.mrf.mxu0
      %v319 = vadd.f32 0.0, %v318
      %v320 = vpop.f32.mrf.mxu0
      %321 = vdwg.mxu0
      %v322 = vpack.c.bf16 %v319, %v319
      %323 = vrot.lane.b32.xlu0 %v202, 32
      %v324 = vpop.permute.xlu0 %323
      %325 = vrot.lane.b32.xlu0 %v207, 32
      %v326 = vpop.permute.xlu0 %325
      %v328 = vsel %vm142, %v324, 0
      %v331 = vsel %vm142, %v326, 0
      %333 = vmatpush.bf16.xpose.msra.mxu0 0
      %334 = vmatpush.bf16.xpose.msra.mxu0 0
      %335 = vmatpush.bf16.xpose.msra.mxu0 0
      %336 = vmatpush.bf16.xpose.msra.mxu0 0
      %337 = vmatpush.bf16.xpose.msra.mxu0 0
      %338 = vmatpush.bf16.xpose.msra.mxu0 0
      %339 = vmatpush.bf16.xpose.msra.mxu0 0
      %340 = vmatpush.bf16.xpose.msra.mxu0 %v331
      %341 = vmatmul.bf16.gmra.mxu0 %v328
      %v342 = vpop.f32.mrf.mxu0
      %v343 = vadd.f32 0.0, %v342
      %v344 = vpop.f32.mrf.mxu0
      %345 = vdwg.mxu0
      %v346 = vsel %vm162, %v343, -inf
      %347 = vmax.xlane.f32.xlu0 %v346
      %v348 = vpop.xlane.xlu0 %347
      %v349 = vsub.f32 %v343, %v348
      %v350 = vmul.f32 %v349, 1.442695
      %v351 = vpow.pop %v350
      %v352 = vsel %vm162, %v351, 0.0
      %353 = vadd.xlane.f32.xlu0 %v352
      %v354 = vpop.xlane.xlu0 %353
      %v355 = vrcp.pop %v354
      %v356 = vmul.f32 %v351, %v355
      %v357 = vpack.c.bf16 %v356, %v356
      %358 = vrot.lane.b32.xlu0 %v243, 32
      %v359 = vpop.permute.xlu0 %358
      %v361 = vsel %vm175, %v357, 0
      %v364 = vand.u32 %v359, %v182
      %366 = vmatpush.bf16.msra.mxu0 0
      %367 = vmatpush.bf16.msra.mxu0 0
      %368 = vmatpush.bf16.msra.mxu0 0
      %369 = vmatpush.bf16.msra.mxu0 0
      %370 = vmatpush.bf16.msra.mxu0 0
      %371 = vmatpush.bf16.msra.mxu0 0
      %372 = vmatpush.bf16.msra.mxu0 0
      %373 = vmatpush.bf16.msra.mxu0 %v364
      %374 = vmatmul.bf16.gmra.mxu0 %v361
      %v375 = vpop.f32.mrf.mxu0
      %v376 = vadd.f32 0.0, %v375
      %v377 = vpop.f32.mrf.mxu0
      %378 = vdwg.mxu0
      %v379 = vpack.c.bf16 %v376, %v376
      %v381 = vunpack.c.l.b16 %v265
      %v382 = vpack.c.b16 %v381, %v381
      %383 = vrot.lane.b32.xlu0 %v382, 32
      %v384 = vpop.permute.xlu0 %383
      %v386 = vunpack.c.l.b16 %v322
      %v387 = vpack.c.b16 %v386, %v386
      %388 = vrot.lane.b32.xlu0 %v387, 64
      %v389 = vpop.permute.xlu0 %388
      %v391 = vunpack.c.l.b16 %v379
      %v392 = vpack.c.b16 %v391, %v391
      %393 = vrot.lane.b32.xlu0 %v392, 96
      %v394 = vpop.permute.xlu0 %393
      %v397 = vsel %vm142, %v199, %v384
      %vm398 = vcmask 523264
      %v400 = vsel %vm398, %v397, %v389
      %vm401 = vcmask 785408
      %v403 = vsel %vm401, %v400, %v394
      %vm405 = vcmask 1042432
      %vm406 = vsmask.f32 2304
      %vm407 = vmand %vm405, %vm406
      %v408 = vld [vmem:[%s134] sm:$0x7]
      %v409 = vsel %vm407, %v403, %v408
      %410 = vst [vmem:[%s134] sm:$0x7] %v409
      %p411 = scmp.lt.s32.totalorder %s16, 1
      %s412 = scalar_select %p411, %s16, 1
      %p413 = scmp.lt.s32.totalorder %s17, 0
      %s414 = scalar_select %p413, %s17, 0
      %s415 = sadd.s32 %s414, %s412
      %s416 = smul.addr %s415, 4
      %s417 = scalar_lea.vmem %s1, %s416
      // Predicated region
      $region25: #{vit_b32_forward.16} parent=23 // pred_check
        %p418 = pneg %p70
      $region26: #{vit_b32_forward.16} parent=23 // pred_check_branch
        %420 = sbr.rel (%p418) target = $region28
      $region27: #{vit_b32_forward.16} parent=23 // pred_region
        _
      $region28: #{vit_b32_forward.16} parent=23 // pred_fallthru
        _
    $region24: #{vit_b32_forward.16} parent=5 // pred_fallthru
      _
    %p421 = scmp.le.s32.totalorder 2, %s7
    // Predicated region
    $region29: #{vit_b32_forward.16} parent=5 // pred_check
      %p422 = pneg %p421
    $region30: #{vit_b32_forward.16} parent=5 // pred_check_branch
      %424 = sbr.rel (%p422) target = $region32
    $region31: #{vit_b32_forward.16} parent=5 // pred_region
      %s425 = ssub.s32 %s7, 2
      // Predicated region
      $region33: #{vit_b32_forward.16} parent=31 // pred_check
        %p426 = pneg %p76
      $region34: #{vit_b32_forward.16} parent=31 // pred_check_branch
        %428 = sbr.rel (%p426) target = $region36
      $region35: #{vit_b32_forward.16} parent=31 // pred_region
        %p429 = scmp.lt.s32.totalorder %s18, 1
        %s430 = scalar_select %p429, %s18, 1
        %p431 = scmp.lt.s32.totalorder %s19, 0
        %s432 = scalar_select %p431, %s19, 0
        %s433 = sadd.s32 %s432, %s430
        %s434 = smul.addr %s433, 4
        %s435 = scalar_lea.vmem %s1, %s434
      $region36: #{vit_b32_forward.16} parent=31 // pred_fallthru
        _
    $region32: #{vit_b32_forward.16} parent=5 // pred_fallthru
      _
  $region6: #{vit_b32_forward.16} parent=0 // loop_footer
    %s11 = sadd.s32 1, %s7
  $region7: #{vit_b32_forward.16} parent=0 // loop_footer_branch
    %6 = sbr.rel target = $region3
  $region8: #{vit_b32_forward.16} parent=0 // loop_exit
    _

// kernel: vit_b32_forward.18
$region0: #{vit_b32_forward.18}
  #allocation0 [shape = 'u32[]', space=smem, size = 0x4, offset = 0x4, fixed_abs, tag = 'smem constant byte address 0x4 - core index']
  #allocation1 [shape = 'u32[72,128]{1,0:T(1,128)}', space=vmem, size = 0x9000, scoped, tag = 'internal scratch']
  %s0 = inlined_call_operand.vmem [shape: f32[10,128], index: 0, kind: input, shape index: {}]
  %s1 = inlined_call_operand.vmem [shape: f32[1,128], index: 1, kind: input, shape index: {}]
  %s2 = inlined_call_operand.vmem [shape: f32[1,128], index: 2, kind: input, shape index: {}]
  %s3 = inlined_call_operand.vmem [shape: bf16[128,256], index: 3, kind: input, shape index: {}]
  %s4 = inlined_call_operand.vmem [shape: f32[1,256], index: 4, kind: input, shape index: {}]
  %s5 = inlined_call_operand.vmem [shape: f32[10,256], index: 5, kind: output, shape index: {}]
  %s6 = sld [smem:[#allocation0]]
  $region128: #{vit_b32_forward.18} parent=0
    _
  %s8 = ssub.s32 1, %s6
  %s9 = scalar_select 0, %s8, %s6
  $region1: #{vit_b32_forward.18} parent=0
    #allocation2 [shape = 'u8[65536]{0}', space=vmem, size = 0x10000, scoped, tag = 'input window, operand 3']
    #allocation3 [shape = 'u8[16384]{0}', space=vmem, size = 0x4000, scoped, tag = 'output window, operand 0']
    loop: start=0, step=1, limit=4
    $region2: #{vit_b32_forward.18} parent=1 // loop_pre_header
      _
    $region3: #{vit_b32_forward.18} parent=1 // loop_header
      %s11 = sphi 0, %s15
      %p12 = scmp.ge.s32.totalorder %s11, 4
      %s18 = sphi 0, %s30
      %s19 = sphi 0, %s26
      %s20 = sphi 0, %s18
      %s21 = sphi 0, %s19
      %s22 = sphi 0, %s20
      %s23 = sphi 0, %s21
      %s33 = sphi 0, %s35
      %s36 = sphi 0, %s33
      %s37 = sphi 0, %s36
      %s53 = sphi 0, %s37
      %s57 = sphi 0, %s57
      %s59 = sphi 0, %s57
      %s60 = sphi 0, %s59
      %s74 = sphi 0, %s60
      %s78 = sphi 0, %s78
      %s80 = sphi 0, %s78
      %s81 = sphi 0, %s80
      %s95 = sphi 0, %s81
      %s101 = sphi 0, %s103
      %s104 = sphi 0, %s101
      %s105 = sphi 0, %s104
      %s121 = sphi 0, %s105
      %s127 = sphi 0, %s129
      %s130 = sphi 0, %s127
      %s131 = sphi 0, %s130
      %s147 = sphi 0, %s131
      %s155 = sphi 0, %s157
      %s158 = sphi 0, %s155
      %s159 = sphi 0, %s158
      %s175 = sphi 0, %s159
    $region4: #{vit_b32_forward.18} parent=1 // loop_header_branch
      %14 = sbr.rel (%p12) target = $region8
    $region5: #{vit_b32_forward.18} parent=1 // loop_body
      %s16 = ssub.s32 %s11, 1
      %s17 = ssub.s32 %s11, 2
      %s24 = sadd.s32 1, %s19
      %p25 = scmp.ge.s32.totalorder %s24, 2
      %s26 = scalar_select %p25, 0, %s24
      %s27 = sadd.s32 1, %s18
      %s28 = scalar_select %p25, %s27, %s18
      %p29 = scmp.ge.s32.totalorder %s28, 1
      %s30 = scalar_select %p29, 0, %s28
      %s31 = ssub.s32 %s18, %s30
      %p32 = scmp.eq.s32.totalorder %s31, 0
      %s34 = sadd.s32 %s33, 1
      %s35 = scalar_select %p32, %s33, %s34
      %p38 = pneg %p32
      %p39 = scmp.eq.s32.totalorder %s11, 1
      %p40 = por %p38, %p39
      %p41 = scmp.ne.s32.totalorder %s33, %s36
      %p42 = scmp.eq.s32.totalorder %s11, 0
      %p43 = por %p41, %p42
      %p44 = scmp.ne.s32.totalorder %s33, %s36
      %p45 = scmp.eq.s32.totalorder %s16, 1
      %p46 = por %p44, %p45
      %p47 = scmp.ne.s32.totalorder %s36, %s37
      %p48 = scmp.eq.s32.totalorder %s16, 0
      %p49 = por %p47, %p48
      %p50 = scmp.ne.s32.totalorder %s36, %s37
      %p51 = scmp.eq.s32.totalorder %s17, 1
      %p52 = por %p50, %p51
      %p54 = scmp.ne.s32.totalorder %s37, %s53
      %p55 = scmp.eq.s32.totalorder %s17, 0
      %p56 = por %p54, %p55
      %s58 = sadd.s32 %s57, 1
      %p61 = scmp.eq.s32.totalorder %s11, 1
      %p62 = scmp.ne.s32.totalorder %s57, %s59
      %p63 = scmp.eq.s32.totalorder %s11, 0
      %p64 = por %p62, %p63
      %p65 = scmp.ne.s32.totalorder %s57, %s59
      %p66 = scmp.eq.s32.totalorder %s16, 1
      %p67 = por %p65, %p66
      %p68 = scmp.ne.s32.totalorder %s59, %s60
      %p69 = scmp.eq.s32.totalorder %s16, 0
      %p70 = por %p68, %p69
      %p71 = scmp.ne.s32.totalorder %s59, %s60
      %p72 = scmp.eq.s32.totalorder %s17, 1
      %p73 = por %p71, %p72
      %p75 = scmp.ne.s32.totalorder %s60, %s74
      %p76 = scmp.eq.s32.totalorder %s17, 0
      %p77 = por %p75, %p76
      %s79 = sadd.s32 %s78, 1
      %p82 = scmp.eq.s32.totalorder %s11, 1
      %p83 = scmp.ne.s32.totalorder %s78, %s80
      %p84 = scmp.eq.s32.totalorder %s11, 0
      %p85 = por %p83, %p84
      %p86 = scmp.ne.s32.totalorder %s78, %s80
      %p87 = scmp.eq.s32.totalorder %s16, 1
      %p88 = por %p86, %p87
      %p89 = scmp.ne.s32.totalorder %s80, %s81
      %p90 = scmp.eq.s32.totalorder %s16, 0
      %p91 = por %p89, %p90
      %p92 = scmp.ne.s32.totalorder %s80, %s81
      %p93 = scmp.eq.s32.totalorder %s17, 1
      %p94 = por %p92, %p93
      %p96 = scmp.ne.s32.totalorder %s81, %s95
      %p97 = scmp.eq.s32.totalorder %s17, 0
      %p98 = por %p96, %p97
      %s99 = ssub.s32 %s19, %s26
      %p100 = scmp.eq.s32.totalorder %s99, 0
      %s102 = sadd.s32 %s101, 1
      %s103 = scalar_select %p100, %s101, %s102
      %p106 = pneg %p100
      %p107 = scmp.eq.s32.totalorder %s11, 1
      %p108 = por %p106, %p107
      %p109 = scmp.ne.s32.totalorder %s101, %s104
      %p110 = scmp.eq.s32.totalorder %s11, 0
      %p111 = por %p109, %p110
      %p112 = scmp.ne.s32.totalorder %s101, %s104
      %p113 = scmp.eq.s32.totalorder %s16, 1
      %p114 = por %p112, %p113
      %p115 = scmp.ne.s32.totalorder %s104, %s105
      %p116 = scmp.eq.s32.totalorder %s16, 0
      %p117 = por %p115, %p116
      %p118 = scmp.ne.s32.totalorder %s104, %s105
      %p119 = scmp.eq.s32.totalorder %s17, 1
      %p120 = por %p118, %p119
      %p122 = scmp.ne.s32.totalorder %s105, %s121
      %p123 = scmp.eq.s32.totalorder %s17, 0
      %p124 = por %p122, %p123
      %s125 = ssub.s32 %s19, %s26
      %p126 = scmp.eq.s32.totalorder %s125, 0
      %s128 = sadd.s32 %s127, 1
      %s129 = scalar_select %p126, %s127, %s128
      %p132 = pneg %p126
      %p133 = scmp.eq.s32.totalorder %s11, 1
      %p134 = por %p132, %p133
      %p135 = scmp.ne.s32.totalorder %s127, %s130
      %p136 = scmp.eq.s32.totalorder %s11, 0
      %p137 = por %p135, %p136
      %p138 = scmp.ne.s32.totalorder %s127, %s130
      %p139 = scmp.eq.s32.totalorder %s16, 1
      %p140 = por %p138, %p139
      %p141 = scmp.ne.s32.totalorder %s130, %s131
      %p142 = scmp.eq.s32.totalorder %s16, 0
      %p143 = por %p141, %p142
      %p144 = scmp.ne.s32.totalorder %s130, %s131
      %p145 = scmp.eq.s32.totalorder %s17, 1
      %p146 = por %p144, %p145
      %p148 = scmp.ne.s32.totalorder %s131, %s147
      %p149 = scmp.eq.s32.totalorder %s17, 0
      %p150 = por %p148, %p149
      %s151 = ssub.s32 %s18, %s30
      %s152 = ssub.s32 %s19, %s26
      %s153 = sor.u32 %s151, %s152
      %p154 = scmp.eq.s32.totalorder %s153, 0
      %s156 = sadd.s32 %s155, 1
      %s157 = scalar_select %p154, %s155, %s156
      %p160 = pneg %p154
      %p161 = scmp.eq.s32.totalorder %s11, 1
      %p162 = por %p160, %p161
      %p163 = scmp.ne.s32.totalorder %s155, %s158
      %p164 = scmp.eq.s32.totalorder %s11, 0
      %p165 = por %p163, %p164
      %p166 = scmp.ne.s32.totalorder %s155, %s158
      %p167 = scmp.eq.s32.totalorder %s16, 1
      %p168 = por %p166, %p167
      %p169 = scmp.ne.s32.totalorder %s158, %s159
      %p170 = scmp.eq.s32.totalorder %s16, 0
      %p171 = por %p169, %p170
      %p172 = scmp.ne.s32.totalorder %s158, %s159
      %p173 = scmp.eq.s32.totalorder %s17, 1
      %p174 = por %p172, %p173
      %p176 = scmp.ne.s32.totalorder %s159, %s175
      %p177 = scmp.eq.s32.totalorder %s17, 0
      %p178 = por %p176, %p177
      %p179 = scmp.le.s32.totalorder 1, %s11
      %p180 = scmp.lt.s32.totalorder %s11, 3
      %p181 = pnand %p179, %p180
      %p182 = pneg %p181
      // Predicated region
      $region9: #{vit_b32_forward.18} parent=5 // pred_check
        _
      $region10: #{vit_b32_forward.18} parent=5 // pred_check_branch
        %184 = sbr.rel (%p181) target = $region12
      $region11: #{vit_b32_forward.18} parent=5 // pred_region
        %s185 = ssub.s32 %s11, 1
        // Predicated region
        $region13: #{vit_b32_forward.18} parent=11 // pred_check
          %p186 = pneg %p49
        $region14: #{vit_b32_forward.18} parent=11 // pred_check_branch
          %188 = sbr.rel (%p186) target = $region16
        $region15: #{vit_b32_forward.18} parent=11 // pred_region
          %s189 = smul.u32 2, %s20
          %p190 = scmp.lt.s32.totalorder %s189, 1
          %s191 = scalar_select %p190, %s189, 1
          %s192 = smul.addr %s191, 8
          %s193 = scalar_lea.vmem %s0, %s192
          %s194 = smul.u32 2, %s20
        $region16: #{vit_b32_forward.18} parent=11 // pred_fallthru
          _
        // Predicated region
        $region17: #{vit_b32_forward.18} parent=11 // pred_check
          %p195 = pneg %p70
        $region18: #{vit_b32_forward.18} parent=11 // pred_check_branch
          %197 = sbr.rel (%p195) target = $region20
        $region19: #{vit_b32_forward.18} parent=11 // pred_region
          _
        $region20: #{vit_b32_forward.18} parent=11 // pred_fallthru
          _
        // Predicated region
        $region21: #{vit_b32_forward.18} parent=11 // pred_check
          %p198 = pneg %p91
        $region22: #{vit_b32_forward.18} parent=11 // pred_check_branch
          %200 = sbr.rel (%p198) target = $region24
        $region23: #{vit_b32_forward.18} parent=11 // pred_region
          _
        $region24: #{vit_b32_forward.18} parent=11 // pred_fallthru
          _
      $region12: #{vit_b32_forward.18} parent=5 // pred_fallthru
        _
      %p201 = scmp.lt.s32.totalorder %s11, 2
      // Predicated region
      $region25: #{vit_b32_forward.18} parent=5 // pred_check
        %p202 = pneg %p201
      $region26: #{vit_b32_forward.18} parent=5 // pred_check_branch
        %204 = sbr.rel (%p202) target = $region28
      $region27: #{vit_b32_forward.18} parent=5 // pred_region
        // Predicated region
        $region29: #{vit_b32_forward.18} parent=27 // pred_check
          %p205 = pneg %p111
        $region30: #{vit_b32_forward.18} parent=27 // pred_check_branch
          %207 = sbr.rel (%p205) target = $region32
        $region31: #{vit_b32_forward.18} parent=27 // pred_region
          %s208 = sand.u32 %s101, 1
          %s209 = sand.u32 %s101, 1
          %s210 = smul.addr %s209, 64
          %s211 = scalar_lea.vmem [#allocation2], %s210
          %s212 = smul.addr %s19, 4
          %s213 = scalar_lea.vmem %s3, %s212
          // Predicated region
          $region33: #{vit_b32_forward.18} parent=31 // pred_check
            _
          $region34: #{vit_b32_forward.18} parent=31 // pred_check_branch
            %215 = sbr.rel (0) target = $region36
          $region35: #{vit_b32_forward.18} parent=31 // pred_region
            // Predicated region
            $region37: #{vit_b32_forward.18} parent=35 // pred_check
              _
            $region38: #{vit_b32_forward.18} parent=35 // pred_check_branch
              %217 = sbr.rel target = $region40
            $region39: #{vit_b32_forward.18} parent=35 // pred_region
              // Predicated region
              $region52: #{vit_b32_forward.18} parent=39 // pred_check
                _
              $region53: #{vit_b32_forward.18} parent=39 // pred_check_branch
                %263 = sbr.rel (0) target = $region55
              $region54: #{vit_b32_forward.18} parent=39 // pred_region
                loop: start=0, step=1, limit=1
                $region56: #{vit_b32_forward.18} parent=54 // loop_pre_header
                  _
                $region57: #{vit_b32_forward.18} parent=54 // loop_header
                  %s265 = sphi 0, %s269
                  %p266 = scmp.ge.s32.totalorder %s265, 1
                  %s270 = sphi %s213, %s213
                  %s271 = sphi %s211, %s211
                $region58: #{vit_b32_forward.18} parent=54 // loop_header_branch
                  %268 = sbr.rel (%p266) target = $region62
                $region59: #{vit_b32_forward.18} parent=54 // loop_body
                  _
                $region60: #{vit_b32_forward.18} parent=54 // loop_footer
                  %s269 = sadd.s32 1, %s265
                $region61: #{vit_b32_forward.18} parent=54 // loop_footer_branch
                  %264 = sbr.rel target = $region57
                $region62: #{vit_b32_forward.18} parent=54 // loop_exit
                  _
                %s273 = ssub.s32 16, 1
                loop: start=0, step=1, limit=1
                $region63: #{vit_b32_forward.18} parent=54 // loop_pre_header
                  _
                $region64: #{vit_b32_forward.18} parent=54 // loop_header
                  %s275 = sphi 0, %s279
                  %p276 = scmp.ge.s32.totalorder %s275, 1
                  %s280 = sphi %s213, %s213
                  %s281 = sphi %s211, %s211
                $region65: #{vit_b32_forward.18} parent=54 // loop_header_branch
                  %278 = sbr.rel (%p276) target = $region69
                $region66: #{vit_b32_forward.18} parent=54 // loop_body
                  %v282 = vld [vmem:[%s280] sm:%s273]
                  %283 = vst [vmem:[%s281] sm:%s273] %v282
                  %v284 = vld [vmem:[%s280 + $0x8] sm:%s273]
                  %285 = vst [vmem:[%s281 + $0x4] sm:%s273] %v284
                  %v286 = vld [vmem:[%s280 + $0x10] sm:%s273]
                  %287 = vst [vmem:[%s281 + $0x8] sm:%s273] %v286
                  %v288 = vld [vmem:[%s280 + $0x18] sm:%s273]
                  %289 = vst [vmem:[%s281 + $0xc] sm:%s273] %v288
                  %v290 = vld [vmem:[%s280 + $0x20] sm:%s273]
                  %291 = vst [vmem:[%s281 + $0x10] sm:%s273] %v290
                  %v292 = vld [vmem:[%s280 + $0x28] sm:%s273]
                  %293 = vst [vmem:[%s281 + $0x14] sm:%s273] %v292
                  %v294 = vld [vmem:[%s280 + $0x30] sm:%s273]
                  %295 = vst [vmem:[%s281 + $0x18] sm:%s273] %v294
                  %v296 = vld [vmem:[%s280 + $0x38] sm:%s273]
                  %297 = vst [vmem:[%s281 + $0x1c] sm:%s273] %v296
                  %v298 = vld [vmem:[%s280 + $0x40] sm:%s273]
                  %299 = vst [vmem:[%s281 + $0x20] sm:%s273] %v298
                  %v300 = vld [vmem:[%s280 + $0x48] sm:%s273]
                  %301 = vst [vmem:[%s281 + $0x24] sm:%s273] %v300
                  %v302 = vld [vmem:[%s280 + $0x50] sm:%s273]
                  %303 = vst [vmem:[%s281 + $0x28] sm:%s273] %v302
                  %v304 = vld [vmem:[%s280 + $0x58] sm:%s273]
                  %305 = vst [vmem:[%s281 + $0x2c] sm:%s273] %v304
                  %v306 = vld [vmem:[%s280 + $0x60] sm:%s273]
                  %307 = vst [vmem:[%s281 + $0x30] sm:%s273] %v306
                  %v308 = vld [vmem:[%s280 + $0x68] sm:%s273]
                  %309 = vst [vmem:[%s281 + $0x34] sm:%s273] %v308
                  %v310 = vld [vmem:[%s280 + $0x70] sm:%s273]
                  %311 = vst [vmem:[%s281 + $0x38] sm:%s273] %v310
                  %v312 = vld [vmem:[%s280 + $0x78] sm:%s273]
                  %313 = vst [vmem:[%s281 + $0x3c] sm:%s273] %v312
                $region67: #{vit_b32_forward.18} parent=54 // loop_footer
                  %s279 = sadd.s32 1, %s275
                $region68: #{vit_b32_forward.18} parent=54 // loop_footer_branch
                  %274 = sbr.rel target = $region64
                $region69: #{vit_b32_forward.18} parent=54 // loop_exit
                  _
              $region55: #{vit_b32_forward.18} parent=39 // pred_fallthru
                _
            $region40: #{vit_b32_forward.18} parent=35 // pred_fallthru
              _
            // Predicated region
            $region41: #{vit_b32_forward.18} parent=35 // pred_check
              _
            $region42: #{vit_b32_forward.18} parent=35 // pred_check_branch
              %219 = sbr.rel (0) target = $region44
            $region43: #{vit_b32_forward.18} parent=35 // pred_region
              %s221 = ssub.s32 16, 1
              loop: start=0, step=1, limit=1
              $region45: #{vit_b32_forward.18} parent=43 // loop_pre_header
                _
              $region46: #{vit_b32_forward.18} parent=43 // loop_header
                %s223 = sphi 0, %s227
                %p224 = scmp.ge.s32.totalorder %s223, 1
                %s228 = sphi %s213, %s213
                %s229 = sphi %s211, %s211
              $region47: #{vit_b32_forward.18} parent=43 // loop_header_branch
                %226 = sbr.rel (%p224) target = $region51
              $region48: #{vit_b32_forward.18} parent=43 // loop_body
                %v230 = vld [vmem:[%s228] sm:%s221]
                %231 = vst [vmem:[%s229] sm:%s221] %v230
                %v232 = vld [vmem:[%s228 + $0x8] sm:%s221]
                %233 = vst [vmem:[%s229 + $0x4] sm:%s221] %v232
                %v234 = vld [vmem:[%s228 + $0x10] sm:%s221]
                %235 = vst [vmem:[%s229 + $0x8] sm:%s221] %v234
                %v236 = vld [vmem:[%s228 + $0x18] sm:%s221]
                %237 = vst [vmem:[%s229 + $0xc] sm:%s221] %v236
                %v238 = vld [vmem:[%s228 + $0x20] sm:%s221]
                %239 = vst [vmem:[%s229 + $0x10] sm:%s221] %v238
                %v240 = vld [vmem:[%s228 + $0x28] sm:%s221]
                %241 = vst [vmem:[%s229 + $0x14] sm:%s221] %v240
                %v242 = vld [vmem:[%s228 + $0x30] sm:%s221]
                %243 = vst [vmem:[%s229 + $0x18] sm:%s221] %v242
                %v244 = vld [vmem:[%s228 + $0x38] sm:%s221]
                %245 = vst [vmem:[%s229 + $0x1c] sm:%s221] %v244
                %v246 = vld [vmem:[%s228 + $0x40] sm:%s221]
                %247 = vst [vmem:[%s229 + $0x20] sm:%s221] %v246
                %v248 = vld [vmem:[%s228 + $0x48] sm:%s221]
                %249 = vst [vmem:[%s229 + $0x24] sm:%s221] %v248
                %v250 = vld [vmem:[%s228 + $0x50] sm:%s221]
                %251 = vst [vmem:[%s229 + $0x28] sm:%s221] %v250
                %v252 = vld [vmem:[%s228 + $0x58] sm:%s221]
                %253 = vst [vmem:[%s229 + $0x2c] sm:%s221] %v252
                %v254 = vld [vmem:[%s228 + $0x60] sm:%s221]
                %255 = vst [vmem:[%s229 + $0x30] sm:%s221] %v254
                %v256 = vld [vmem:[%s228 + $0x68] sm:%s221]
                %257 = vst [vmem:[%s229 + $0x34] sm:%s221] %v256
                %v258 = vld [vmem:[%s228 + $0x70] sm:%s221]
                %259 = vst [vmem:[%s229 + $0x38] sm:%s221] %v258
                %v260 = vld [vmem:[%s228 + $0x78] sm:%s221]
                %261 = vst [vmem:[%s229 + $0x3c] sm:%s221] %v260
              $region49: #{vit_b32_forward.18} parent=43 // loop_footer
                %s227 = sadd.s32 1, %s223
              $region50: #{vit_b32_forward.18} parent=43 // loop_footer_branch
                %222 = sbr.rel target = $region46
              $region51: #{vit_b32_forward.18} parent=43 // loop_exit
                _
            $region44: #{vit_b32_forward.18} parent=35 // pred_fallthru
              _
          $region36: #{vit_b32_forward.18} parent=31 // pred_fallthru
            _
          %314 = vnop
        $region32: #{vit_b32_forward.18} parent=27 // pred_fallthru
          _
        // Predicated region
        $region70: #{vit_b32_forward.18} parent=27 // pred_check
          %p315 = pneg %p137
        $region71: #{vit_b32_forward.18} parent=27 // pred_check_branch
          %317 = sbr.rel (%p315) target = $region73
        $region72: #{vit_b32_forward.18} parent=27 // pred_region
          %p318 = scmp.lt.s32.totalorder %s19, 1
          %s319 = scalar_select %p318, %s19, 1
          %s320 = scalar_lea.vmem %s4, %s319
        $region73: #{vit_b32_forward.18} parent=27 // pred_fallthru
          _
      $region28: #{vit_b32_forward.18} parent=5 // pred_fallthru
        _
      %p321 = scmp.le.s32.totalorder 1, %s11
      %p322 = scmp.lt.s32.totalorder %s11, 3
      %p323 = pnand %p321, %p322
      %p324 = pneg %p323
      // Predicated region
      $region74: #{vit_b32_forward.18} parent=5 // pred_check
        _
      $region75: #{vit_b32_forward.18} parent=5 // pred_check_branch
        %326 = sbr.rel (%p323) target = $region77
      $region76: #{vit_b32_forward.18} parent=5 // pred_region
        %s327 = ssub.s32 %s11, 1
        %s328 = sand.u32 %s104, 1
        %s329 = sand.u32 %s104, 1
        %s330 = smul.addr %s329, 64
        %s331 = scalar_lea.vmem [#allocation2], %s330
        // Predicated region
        $region78: #{vit_b32_forward.18} parent=76 // pred_check
          %p332 = pneg %p117
        $region79: #{vit_b32_forward.18} parent=76 // pred_check_branch
          %334 = sbr.rel (%p332) target = $region81
        $region80: #{vit_b32_forward.18} parent=76 // pred_region
          _
        $region81: #{vit_b32_forward.18} parent=76 // pred_fallthru
          _
        %s335 = smul.u32 2, %s20
        %p336 = scmp.lt.s32.totalorder %s335, 1
        %s337 = scalar_select %p336, %s335, 1
        %s338 = smul.addr %s337, 8
        %s339 = scalar_lea.vmem %s0, %s338
        %p340 = pneg %p49
        %p341 = pneg %p46
        %p342 = pneg %p70
        %p343 = pneg %p67
        %p344 = pneg %p91
        %p345 = pneg %p88
        %s346 = sand.u32 %s104, 1
        %s347 = sand.u32 %s104, 1
        %s348 = smul.addr %s347, 64
        %s349 = scalar_lea.vmem [#allocation2], %s348
        %p350 = pneg %p117
        %p351 = pneg %p114
        %p352 = scmp.lt.s32.totalorder %s21, 1
        %s353 = scalar_select %p352, %s21, 1
        %s354 = scalar_lea.vmem %s4, %s353
        %p355 = pneg %p143
        %p356 = pneg %p140
        %p357 = pneg %p171
        %p358 = pneg %p168
        %s359 = sand.u32 %s158, 1
        %s360 = sand.u32 %s158, 1
        %s361 = smul.addr %s360, 16
        %s362 = scalar_lea.vmem [#allocation3], %s361
        %s363 = smul.u32 2, %s20
        %p364 = scmp.lt.s32.totalorder %s363, 1
        %s365 = scalar_select %p364, %s363, 1
        %s366 = smul.addr %s365, 8
        %s367 = scalar_lea.vmem %s0, %s366
        %s368 = smul.u32 2, %s20
        %p369 = scmp.lt.s32.totalorder %s21, 1
        %s370 = scalar_select %p369, %s21, 1
        %s371 = scalar_lea.vmem %s4, %s370
        %s372 = smul.u32 2, %s20
        %v373 = vld [vmem:[%s367] sm:$0xff]
        %v374 = vld [vmem:[%s367 + $0x8] sm:$0x3]
        %375 = vadd.xlane.f32.xlu0 %v373
        %v376 = vpop.xlane.xlu0 %375
        %vm377 = vcmask 1041408
        %v378 = vsel %vm377, %v374, 0.0
        %379 = vadd.xlane.f32.xlu0 %v378
        %v380 = vpop.xlane.xlu0 %379
        %v381 = vrcp.pop 128.0
        %v382 = vmul.f32 128.0, %v381
        %v383 = vsub.f32 1.0, %v382
        %v384 = vmul.f32 %v381, %v383
        %v385 = vadd.f32 %v381, %v384
        %vm386 = vweird.f32 %v381
        %v387 = vsel %vm386, %v381, %v385
        %v388 = vmul.f32 %v376, %v387
        %v389 = vmul.f32 %v380, %v387
        %v390 = vsub.f32 %v373, %v388
        %v391 = vsub.f32 %v374, %v389
        %v392 = vmul.f32 %v390, %v390
        %v393 = vmul.f32 %v391, %v391
        %394 = vadd.xlane.f32.xlu0 %v392
        %v395 = vpop.xlane.xlu0 %394
        %v396 = vsel %vm377, %v393, 0.0
        %397 = vadd.xlane.f32.xlu0 %v396
        %v398 = vpop.xlane.xlu0 %397
        %v399 = vmul.f32 %v395, %v387
        %v400 = vmul.f32 %v398, %v387
        %v401 = vadd.f32 %v399, 1e-06
        %v402 = vadd.f32 %v400, 1e-06
        %v403 = vrsqrt.pop %v401
        %v404 = vmul.f32 %v403, %v401
        %v405 = vmul.f32 %v404, %v403
        %v406 = vmul.f32 0.5, %v405
        %v407 = vsub.f32 1.5, %v406
        %v408 = vmul.f32 %v403, %v407
        %vm409 = vweird.f32 %v401
        %vm410 = vweird.f32 %v403
        %vm411 = vmor %vm409, %vm410
        %v412 = vsel %vm411, %v403, %v408
        %v413 = vrsqrt.pop %v402
        %v414 = vmul.f32 %v413, %v402
        %v415 = vmul.f32 %v414, %v413
        %v416 = vmul.f32 0.5, %v415
        %v417 = vsub.f32 1.5, %v416
        %v418 = vmul.f32 %v413, %v417
        %vm419 = vweird.f32 %v402
        %vm420 = vweird.f32 %v413
        %vm421 = vmor %vm419, %vm420
        %v422 = vsel %vm421, %v413, %v418
        %v423 = vmul.f32 %v390, %v412
        %v424 = vmul.f32 %v391, %v422
        %v425 = vld [vmem:[%s1] sm:$0x1]
        %v427 = vperm.slane %v425, 0
        %v429 = vmul.f32 %v423, %v427
        %v430 = vmul.f32 %v424, %v427
        %v431 = vld [vmem:[%s2] sm:$0x1]
        %v433 = vperm.slane %v431, 0
        %v435 = vadd.f32 %v429, %v433
        %v436 = vadd.f32 %v430, %v433
        %v437 = vpack.c.bf16 %v436, %v435
        %v438 = vld [vmem:[%s331] sm:$0xf]
        %v439 = vld [vmem:[%s331 + $0x4] sm:$0xf]
        %v440 = vld [vmem:[%s331 + $0x8] sm:$0xf]
        %v441 = vld [vmem:[%s331 + $0xc] sm:$0xf]
        %v442 = vld [vmem:[%s331 + $0x10] sm:$0xf]
        %v443 = vld [vmem:[%s331 + $0x14] sm:$0xf]
        %v444 = vld [vmem:[%s331 + $0x18] sm:$0xf]
        %v445 = vld [vmem:[%s331 + $0x1c] sm:$0xf]
        %v446 = vld [vmem:[%s331 + $0x20] sm:$0xf]
        %v447 = vld [vmem:[%s331 + $0x24] sm:$0xf]
        %v448 = vld [vmem:[%s331 + $0x28] sm:$0xf]
        %v449 = vld [vmem:[%s331 + $0x2c] sm:$0xf]
        %v450 = vld [vmem:[%s331 + $0x30] sm:$0xf]
        %v451 = vld [vmem:[%s331 + $0x34] sm:$0xf]
        %v452 = vld [vmem:[%s331 + $0x38] sm:$0xf]
        %v453 = vld [vmem:[%s331 + $0x3c] sm:$0xf]
        %v454 = vld [vmem:[%s371] sm:$0x1]
        %v456 = vperm.slane %v454, 0
        %v474 = vunpack.c.l.b16 %v438
        %v475 = vunpack.c.l.b16 %v439
        %v476 = vunpack.c.l.b16 %v440
        %v477 = vunpack.c.l.b16 %v441
        %v478 = vunpack.c.l.b16 %v442
        %v479 = vunpack.c.l.b16 %v443
        %v480 = vunpack.c.l.b16 %v444
        %v481 = vunpack.c.l.b16 %v445
        %v482 = vunpack.c.l.b16 %v446
        %v483 = vunpack.c.l.b16 %v447
        %v484 = vunpack.c.l.b16 %v448
        %v485 = vunpack.c.l.b16 %v449
        %v486 = vunpack.c.l.b16 %v450
        %v487 = vunpack.c.l.b16 %v451
        %v488 = vunpack.c.l.b16 %v452
        %v489 = vunpack.c.l.b16 %v453
        %v490 = vpack.c.b16 %v475, %v474
        %v491 = vpack.c.b16 %v477, %v476
        %v492 = vpack.c.b16 %v479, %v478
        %v493 = vpack.c.b16 %v481, %v480
        %v494 = vpack.c.b16 %v483, %v482
        %v495 = vpack.c.b16 %v485, %v484
        %v496 = vpack.c.b16 %v487, %v486
        %v497 = vpack.c.b16 %v489, %v488
        %506 = vmatpush.bf16.msra.mxu0 %v497
        %507 = vmatpush.bf16.msra.mxu0 %v496
        %508 = vmatpush.bf16.msra.mxu0 %v495
        %509 = vmatpush.bf16.msra.mxu0 %v494
        %510 = vmatpush.bf16.msra.mxu0 %v493
        %511 = vmatpush.bf16.msra.mxu0 %v492
        %512 = vmatpush.bf16.msra.mxu0 %v491
        %513 = vmatpush.bf16.msra.mxu0 %v490
        %514 = vmatmul.bf16.gmra.mxu0 %v437
        %v515 = vpop.f32.mrf.mxu0
        %v516 = vadd.f32 %v456, %v515
        %v517 = vpop.f32.mrf.mxu0
        %v518 = vadd.f32 %v456, %v517
        %519 = vdwg.mxu0
        %520 = vst [vmem:[%s362] sm:$0xff] %v516
        %521 = vst [vmem:[%s362 + $0x8] sm:$0x3] %v518
        %s522 = sand.u32 %s158, 1
        %s523 = sand.u32 %s158, 1
        %s524 = smul.addr %s523, 16
        %s525 = scalar_lea.vmem [#allocation3], %s524
        // Predicated region
        $region82: #{vit_b32_forward.18} parent=76 // pred_check
          %p526 = pneg %p168
        $region83: #{vit_b32_forward.18} parent=76 // pred_check_branch
          %528 = sbr.rel (%p526) target = $region85
        $region84: #{vit_b32_forward.18} parent=76 // pred_region
          %s529 = smul.u32 2, %s20
          %s530 = smul.addr %s529, 2
          %s531 = sadd.s32 %s21, %s530
          %s532 = smul.addr %s531, 8
          %s533 = scalar_lea.vmem %s5, %s532
          // Predicated region
          $region86: #{vit_b32_forward.18} parent=84 // pred_check
            _
          $region87: #{vit_b32_forward.18} parent=84 // pred_check_branch
            %535 = sbr.rel (0) target = $region89
          $region88: #{vit_b32_forward.18} parent=84 // pred_region
            // Predicated region
            $region90: #{vit_b32_forward.18} parent=88 // pred_check
              _
            $region91: #{vit_b32_forward.18} parent=88 // pred_check_branch
              %537 = sbr.rel (0) target = $region93
            $region92: #{vit_b32_forward.18} parent=88 // pred_region
              // Predicated region
              $region105: #{vit_b32_forward.18} parent=92 // pred_check
                _
              $region106: #{vit_b32_forward.18} parent=92 // pred_check_branch
                %555 = sbr.rel (0) target = $region108
              $region107: #{vit_b32_forward.18} parent=92 // pred_region
                loop: start=0, step=1, limit=1
                $region109: #{vit_b32_forward.18} parent=107 // loop_pre_header
                  _
                $region110: #{vit_b32_forward.18} parent=107 // loop_header
                  %s557 = sphi 0, %s561
                  %p558 = scmp.ge.s32.totalorder %s557, 1
                  %s562 = sphi %s525, %s525
                  %s563 = sphi %s533, %s533
                $region111: #{vit_b32_forward.18} parent=107 // loop_header_branch
                  %560 = sbr.rel (%p558) target = $region115
                $region112: #{vit_b32_forward.18} parent=107 // loop_body
                  %v564 = vld [vmem:[%s562] sm:$0xff]
                  %565 = vst [vmem:[%s563] sm:$0xff] %v564
                  %v566 = vld [vmem:[%s562 + $0x8] sm:$0xff]
                  %567 = vst [vmem:[%s563 + $0x10] sm:$0xff] %v566
                $region113: #{vit_b32_forward.18} parent=107 // loop_footer
                  %s561 = sadd.s32 1, %s557
                $region114: #{vit_b32_forward.18} parent=107 // loop_footer_branch
                  %556 = sbr.rel target = $region110
                $region115: #{vit_b32_forward.18} parent=107 // loop_exit
                  _
              $region108: #{vit_b32_forward.18} parent=92 // pred_fallthru
                _
              // Predicated region
              $region116: #{vit_b32_forward.18} parent=92 // pred_check
                _
              $region117: #{vit_b32_forward.18} parent=92 // pred_check_branch
                %569 = sbr.rel target = $region119
              $region118: #{vit_b32_forward.18} parent=92 // pred_region
                _
              $region119: #{vit_b32_forward.18} parent=92 // pred_fallthru
                _
            $region93: #{vit_b32_forward.18} parent=88 // pred_fallthru
              _
            // Predicated region
            $region94: #{vit_b32_forward.18} parent=88 // pred_check
              _
            $region95: #{vit_b32_forward.18} parent=88 // pred_check_branch
              %539 = sbr.rel target = $region97
            $region96: #{vit_b32_forward.18} parent=88 // pred_region
              %s541 = ssub.s32 256, 1
              loop: start=0, step=1, limit=1
              $region98: #{vit_b32_forward.18} parent=96 // loop_pre_header
                _
              $region99: #{vit_b32_forward.18} parent=96 // loop_header
                %s543 = sphi 0, %s547
                %p544 = scmp.ge.s32.totalorder %s543, 1
                %s548 = sphi %s525, %s525
                %s549 = sphi %s533, %s533
              $region100: #{vit_b32_forward.18} parent=96 // loop_header_branch
                %546 = sbr.rel (%p544) target = $region104
              $region101: #{vit_b32_forward.18} parent=96 // loop_body
                %v550 = vld [vmem:[%s548] sm:%s541]
                %551 = vst [vmem:[%s549] sm:%s541] %v550
                %v552 = vld [vmem:[%s548 + $0x8] sm:%s541]
                %553 = vst [vmem:[%s549 + $0x10] sm:%s541] %v552
              $region102: #{vit_b32_forward.18} parent=96 // loop_footer
                %s547 = sadd.s32 1, %s543
              $region103: #{vit_b32_forward.18} parent=96 // loop_footer_branch
                %542 = sbr.rel target = $region99
              $region104: #{vit_b32_forward.18} parent=96 // loop_exit
                _
            $region97: #{vit_b32_forward.18} parent=88 // pred_fallthru
              _
          $region89: #{vit_b32_forward.18} parent=84 // pred_fallthru
            _
          %570 = vnop
        $region85: #{vit_b32_forward.18} parent=76 // pred_fallthru
          _
      $region77: #{vit_b32_forward.18} parent=5 // pred_fallthru
        _
      %p571 = scmp.le.s32.totalorder 2, %s11
      // Predicated region
      $region120: #{vit_b32_forward.18} parent=5 // pred_check
        %p572 = pneg %p571
      $region121: #{vit_b32_forward.18} parent=5 // pred_check_branch
        %574 = sbr.rel (%p572) target = $region123
      $region122: #{vit_b32_forward.18} parent=5 // pred_region
        %s575 = ssub.s32 %s11, 2
        // Predicated region
        $region124: #{vit_b32_forward.18} parent=122 // pred_check
          %p576 = pneg %p174
        $region125: #{vit_b32_forward.18} parent=122 // pred_check_branch
          %578 = sbr.rel (%p576) target = $region127
        $region126: #{vit_b32_forward.18} parent=122 // pred_region
          %s579 = sand.u32 %s159, 1
          %s580 = sand.u32 %s159, 1
          %s581 = smul.addr %s580, 16
          %s582 = scalar_lea.vmem [#allocation3], %s581
        $region127: #{vit_b32_forward.18} parent=122 // pred_fallthru
          _
      $region123: #{vit_b32_forward.18} parent=5 // pred_fallthru
        _
    $region6: #{vit_b32_forward.18} parent=1 // loop_footer
      %s15 = sadd.s32 1, %s11
    $region7: #{vit_b32_forward.18} parent=1 // loop_footer_branch
      %10 = sbr.rel target = $region3
    $region8: #{vit_b32_forward.18} parent=1 // loop_exit
      _

// kernel: vit_b32_forward.17
$region0: #{vit_b32_forward.17}
  #allocation0 [shape = 'u32[]', space=smem, size = 0x4, offset = 0x4, fixed_abs, tag = 'smem constant byte address 0x4 - core index']
  #allocation1 [shape = 'u32[72,128]{1,0:T(1,128)}', space=vmem, size = 0x9000, scoped, tag = 'internal scratch']
  %s0 = inlined_call_operand.vmem [shape: bf16[10,128], index: 0, kind: input, shape index: {}]
  %s1 = inlined_call_operand.vmem [shape: bf16[128,128], index: 1, kind: input, shape index: {}]
  %s2 = inlined_call_operand.vmem [shape: f32[1,128], index: 2, kind: input, shape index: {}]
  %s3 = inlined_call_operand.vmem [shape: f32[10,128], index: 3, kind: input, shape index: {}]
  %s4 = inlined_call_operand.vmem [shape: f32[10,128], index: 4, kind: output, shape index: {}]
  %s5 = sld [smem:[#allocation0]]
  $region26: #{vit_b32_forward.17} parent=0
    _
  %s7 = ssub.s32 1, %s5
  %s8 = scalar_select 0, %s7, %s5
  // Predicated region
  $region2: #{vit_b32_forward.17} parent=0 // pred_check
    _
  $region3: #{vit_b32_forward.17} parent=0 // pred_check_branch
    %10 = sbr.rel (0) target = $region5
  $region4: #{vit_b32_forward.17} parent=0 // pred_region
    _
  $region5: #{vit_b32_forward.17} parent=0 // pred_fallthru
    _
  // Predicated region
  $region6: #{vit_b32_forward.17} parent=0 // pred_check
    _
  $region7: #{vit_b32_forward.17} parent=0 // pred_check_branch
    %12 = sbr.rel (0) target = $region9
  $region8: #{vit_b32_forward.17} parent=0 // pred_region
    _
  $region9: #{vit_b32_forward.17} parent=0 // pred_fallthru
    _
  // Predicated region
  $region10: #{vit_b32_forward.17} parent=0 // pred_check
    _
  $region11: #{vit_b32_forward.17} parent=0 // pred_check_branch
    %14 = sbr.rel (0) target = $region13
  $region12: #{vit_b32_forward.17} parent=0 // pred_region
    _
  $region13: #{vit_b32_forward.17} parent=0 // pred_fallthru
    _
  // Predicated region
  $region14: #{vit_b32_forward.17} parent=0 // pred_check
    _
  $region15: #{vit_b32_forward.17} parent=0 // pred_check_branch
    %16 = sbr.rel (0) target = $region17
  $region16: #{vit_b32_forward.17} parent=0 // pred_region
    _
  $region17: #{vit_b32_forward.17} parent=0 // pred_fallthru
    _
  %v17 = vld [vmem:[%s0] sm:$0xf]
  %v18 = vld [vmem:[%s0 + $0x4] sm:$0x1]
  %v19 = vld [vmem:[%s1] sm:$0xf]
  %v20 = vld [vmem:[%s1 + $0x4] sm:$0xf]
  %v21 = vld [vmem:[%s1 + $0x8] sm:$0xf]
  %v22 = vld [vmem:[%s1 + $0xc] sm:$0xf]
  %v23 = vld [vmem:[%s1 + $0x10] sm:$0xf]
  %v24 = vld [vmem:[%s1 + $0x14] sm:$0xf]
  %v25 = vld [vmem:[%s1 + $0x18] sm:$0xf]
  %v26 = vld [vmem:[%s1 + $0x1c] sm:$0xf]
  %v27 = vld [vmem:[%s1 + $0x20] sm:$0xf]
  %v28 = vld [vmem:[%s1 + $0x24] sm:$0xf]
  %v29 = vld [vmem:[%s1 + $0x28] sm:$0xf]
  %v30 = vld [vmem:[%s1 + $0x2c] sm:$0xf]
  %v31 = vld [vmem:[%s1 + $0x30] sm:$0xf]
  %v32 = vld [vmem:[%s1 + $0x34] sm:$0xf]
  %v33 = vld [vmem:[%s1 + $0x38] sm:$0xf]
  %v34 = vld [vmem:[%s1 + $0x3c] sm:$0xf]
  %v35 = vld [vmem:[%s2] sm:$0x1]
  %v37 = vperm.slane %v35, 0
  %v41 = vunpack.c.l.b16 %v17
  %v42 = vunpack.c.l.b16 %v18
  %v43 = vpack.c.b16 %v42, %v41
  %v61 = vunpack.c.l.b16 %v19
  %v62 = vunpack.c.l.b16 %v20
  %v63 = vunpack.c.l.b16 %v21
  %v64 = vunpack.c.l.b16 %v22
  %v65 = vunpack.c.l.b16 %v23
  %v66 = vunpack.c.l.b16 %v24
  %v67 = vunpack.c.l.b16 %v25
  %v68 = vunpack.c.l.b16 %v26
  %v69 = vunpack.c.l.b16 %v27
  %v70 = vunpack.c.l.b16 %v28
  %v71 = vunpack.c.l.b16 %v29
  %v72 = vunpack.c.l.b16 %v30
  %v73 = vunpack.c.l.b16 %v31
  %v74 = vunpack.c.l.b16 %v32
  %v75 = vunpack.c.l.b16 %v33
  %v76 = vunpack.c.l.b16 %v34
  %v77 = vpack.c.b16 %v62, %v61
  %v78 = vpack.c.b16 %v64, %v63
  %v79 = vpack.c.b16 %v66, %v65
  %v80 = vpack.c.b16 %v68, %v67
  %v81 = vpack.c.b16 %v70, %v69
  %v82 = vpack.c.b16 %v72, %v71
  %v83 = vpack.c.b16 %v74, %v73
  %v84 = vpack.c.b16 %v76, %v75
  %93 = vmatpush.bf16.msra.mxu0 %v84
  %94 = vmatpush.bf16.msra.mxu0 %v83
  %95 = vmatpush.bf16.msra.mxu0 %v82
  %96 = vmatpush.bf16.msra.mxu0 %v81
  %97 = vmatpush.bf16.msra.mxu0 %v80
  %98 = vmatpush.bf16.msra.mxu0 %v79
  %99 = vmatpush.bf16.msra.mxu0 %v78
  %100 = vmatpush.bf16.msra.mxu0 %v77
  %101 = vmatmul.bf16.gmra.mxu0 %v43
  %v102 = vpop.f32.mrf.mxu0
  %v103 = vadd.f32 %v37, %v102
  %v104 = vpop.f32.mrf.mxu0
  %v105 = vadd.f32 %v37, %v104
  %106 = vdwg.mxu0
  %v107 = vld [vmem:[%s3] sm:$0xff]
  %v108 = vld [vmem:[%s3 + $0x8] sm:$0x3]
  %v109 = vadd.f32 %v103, %v107
  %v110 = vadd.f32 %v105, %v108
  %111 = vst [vmem:[%s4] sm:$0xff] %v109
  %112 = vst [vmem:[%s4 + $0x8] sm:$0x3] %v110
  // Predicated region
  $region18: #{vit_b32_forward.17} parent=0 // pred_check
    _
  $region19: #{vit_b32_forward.17} parent=0 // pred_check_branch
    %114 = sbr.rel (0) target = $region21
  $region20: #{vit_b32_forward.17} parent=0 // pred_region
    _
  $region21: #{vit_b32_forward.17} parent=0 // pred_fallthru
    _
  // Predicated region
  $region22: #{vit_b32_forward.17} parent=0 // pred_check
    _
  $region23: #{vit_b32_forward.17} parent=0 // pred_check_branch
    %116 = sbr.rel (0) target = $region25
  $region24: #{vit_b32_forward.17} parent=0 // pred_region
    _
  $region25: #{vit_b32_forward.17} parent=0 // pred_fallthru
    _

// kernel: vit_b32_forward.14
$region0: #{vit_b32_forward.14}
  #allocation0 [shape = 'u32[]', space=smem, size = 0x4, offset = 0x4, fixed_abs, tag = 'smem constant byte address 0x4 - core index']
  #allocation1 [shape = 'u32[72,128]{1,0:T(1,128)}', space=vmem, size = 0x9000, scoped, tag = 'internal scratch']
  %s0 = inlined_call_operand.vmem [shape: bf16[8,3072], index: 0, kind: input, shape index: {}]
  %s1 = inlined_call_operand.vmem [shape: bf16[3072,128], index: 1, kind: input, shape index: {}]
  %s2 = inlined_call_operand.vmem [shape: f32[1,128], index: 2, kind: input, shape index: {}]
  %s3 = inlined_call_operand.vmem [shape: f32[8,128], index: 3, kind: output, shape index: {}]
  %s4 = sld [smem:[#allocation0]]
  $region22: #{vit_b32_forward.14} parent=0
    _
  %s6 = ssub.s32 1, %s4
  %s7 = scalar_select 0, %s6, %s4
  // Predicated region
  $region2: #{vit_b32_forward.14} parent=0 // pred_check
    _
  $region3: #{vit_b32_forward.14} parent=0 // pred_check_branch
    %9 = sbr.rel (0) target = $region5
  $region4: #{vit_b32_forward.14} parent=0 // pred_region
    _
  $region5: #{vit_b32_forward.14} parent=0 // pred_fallthru
    _
  // Predicated region
  $region6: #{vit_b32_forward.14} parent=0 // pred_check
    _
  $region7: #{vit_b32_forward.14} parent=0 // pred_check_branch
    %11 = sbr.rel (0) target = $region9
  $region8: #{vit_b32_forward.14} parent=0 // pred_region
    _
  $region9: #{vit_b32_forward.14} parent=0 // pred_fallthru
    _
  // Predicated region
  $region10: #{vit_b32_forward.14} parent=0 // pred_check
    _
  $region11: #{vit_b32_forward.14} parent=0 // pred_check_branch
    %13 = sbr.rel (0) target = $region13
  $region12: #{vit_b32_forward.14} parent=0 // pred_region
    _
  $region13: #{vit_b32_forward.14} parent=0 // pred_fallthru
    _
  %v14 = vld [vmem:[%s0] sm:$0xff]
  %v15 = vld [vmem:[%s0 + $0x8] sm:$0xff]
  %v16 = vld [vmem:[%s0 + $0x10] sm:$0xff]
  %v17 = vld [vmem:[%s0 + $0x18] sm:$0xff]
  %v18 = vld [vmem:[%s0 + $0x20] sm:$0xff]
  %v19 = vld [vmem:[%s0 + $0x28] sm:$0xff]
  %v20 = vld [vmem:[%s0 + $0x30] sm:$0xff]
  %v21 = vld [vmem:[%s0 + $0x38] sm:$0xff]
  %v22 = vld [vmem:[%s0 + $0x40] sm:$0xff]
  %v23 = vld [vmem:[%s0 + $0x48] sm:$0xff]
  %v24 = vld [vmem:[%s0 + $0x50] sm:$0xff]
  %v25 = vld [vmem:[%s0 + $0x58] sm:$0xff]
  %v26 = vld [vmem:[%s1] sm:$0xf]
  %v27 = vld [vmem:[%s1 + $0x4] sm:$0xf]
  %v28 = vld [vmem:[%s1 + $0x8] sm:$0xf]
  %v29 = vld [vmem:[%s1 + $0xc] sm:$0xf]
  %v30 = vld [vmem:[%s1 + $0x10] sm:$0xf]
  %v31 = vld [vmem:[%s1 + $0x14] sm:$0xf]
  %v32 = vld [vmem:[%s1 + $0x18] sm:$0xf]
  %v33 = vld [vmem:[%s1 + $0x1c] sm:$0xf]
  %v34 = vld [vmem:[%s1 + $0x20] sm:$0xf]
  %v35 = vld [vmem:[%s1 + $0x24] sm:$0xf]
  %v36 = vld [vmem:[%s1 + $0x28] sm:$0xf]
  %v37 = vld [vmem:[%s1 + $0x2c] sm:$0xf]
  %v38 = vld [vmem:[%s1 + $0x30] sm:$0xf]
  %v39 = vld [vmem:[%s1 + $0x34] sm:$0xf]
  %v40 = vld [vmem:[%s1 + $0x38] sm:$0xf]
  %v41 = vld [vmem:[%s1 + $0x3c] sm:$0xf]
  %v42 = vld [vmem:[%s1 + $0x40] sm:$0xf]
  %v43 = vld [vmem:[%s1 + $0x44] sm:$0xf]
  %v44 = vld [vmem:[%s1 + $0x48] sm:$0xf]
  %v45 = vld [vmem:[%s1 + $0x4c] sm:$0xf]
  %v46 = vld [vmem:[%s1 + $0x50] sm:$0xf]
  %v47 = vld [vmem:[%s1 + $0x54] sm:$0xf]
  %v48 = vld [vmem:[%s1 + $0x58] sm:$0xf]
  %v49 = vld [vmem:[%s1 + $0x5c] sm:$0xf]
  %v50 = vld [vmem:[%s1 + $0x60] sm:$0xf]
  %v51 = vld [vmem:[%s1 + $0x64] sm:$0xf]
  %v52 = vld [vmem:[%s1 + $0x68] sm:$0xf]
  %v53 = vld [vmem:[%s1 + $0x6c] sm:$0xf]
  %v54 = vld [vmem:[%s1 + $0x70] sm:$0xf]
  %v55 = vld [vmem:[%s1 + $0x74] sm:$0xf]
  %v56 = vld [vmem:[%s1 + $0x78] sm:$0xf]
  %v57 = vld [vmem:[%s1 + $0x7c] sm:$0xf]
  %v58 = vld [vmem:[%s1 + $0x80] sm:$0xf]
  %v59 = vld [vmem:[%s1 + $0x84] sm:$0xf]
  %v60 = vld [vmem:[%s1 + $0x88] sm:$0xf]
  %v61 = vld [vmem:[%s1 + $0x8c] sm:$0xf]
  %v62 = vld [vmem:[%s1 + $0x90] sm:$0xf]
  %v63 = vld [vmem:[%s1 + $0x94] sm:$0xf]
  %v64 = vld [vmem:[%s1 + $0x98] sm:$0xf]
  %v65 = vld [vmem:[%s1 + $0x9c] sm:$0xf]
  %v66 = vld [vmem:[%s1 + $0xa0] sm:$0xf]
  %v67 = vld [vmem:[%s1 + $0xa4] sm:$0xf]
  %v68 = vld [vmem:[%s1 + $0xa8] sm:$0xf]
  %v69 = vld [vmem:[%s1 + $0xac] sm:$0xf]
  %v70 = vld [vmem:[%s1 + $0xb0] sm:$0xf]
  %v71 = vld [vmem:[%s1 + $0xb4] sm:$0xf]
  %v72 = vld [vmem:[%s1 + $0xb8] sm:$0xf]
  %v73 = vld [vmem:[%s1 + $0xbc] sm:$0xf]
  %v74 = vld [vmem:[%s1 + $0xc0] sm:$0xf]
  %v75 = vld [vmem:[%s1 + $0xc4] sm:$0xf]
  %v76 = vld [vmem:[%s1 + $0xc8] sm:$0xf]
  %v77 = vld [vmem:[%s1 + $0xcc] sm:$0xf]
  %v78 = vld [vmem:[%s1 + $0xd0] sm:$0xf]
  %v79 = vld [vmem:[%s1 + $0xd4] sm:$0xf]
  %v80 = vld [vmem:[%s1 + $0xd8] sm:$0xf]
  %v81 = vld [vmem:[%s1 + $0xdc] sm:$0xf]
  %v82 = vld [vmem:[%s1 + $0xe0] sm:$0xf]
  %v83 = vld [vmem:[%s1 + $0xe4] sm:$0xf]
  %v84 = vld [vmem:[%s1 + $0xe8] sm:$0xf]
  %v85 = vld [vmem:[%s1 + $0xec] sm:$0xf]
  %v86 = vld [vmem:[%s1 + $0xf0] sm:$0xf]
  %v87 = vld [vmem:[%s1 + $0xf4] sm:$0xf]
  %v88 = vld [vmem:[%s1 + $0xf8] sm:$0xf]
  %v89 = vld [vmem:[%s1 + $0xfc] sm:$0xf]
  %v90 = vld [vmem:[%s1 + $0x100] sm:$0xf]
  %v91 = vld [vmem:[%s1 + $0x104] sm:$0xf]
  %v92 = vld [vmem:[%s1 + $0x108] sm:$0xf]
  %v93 = vld [vmem:[%s1 + $0x10c] sm:$0xf]
  %v94 = vld [vmem:[%s1 + $0x110] sm:$0xf]
  %v95 = vld [vmem:[%s1 + $0x114] sm:$0xf]
  %v96 = vld [vmem:[%s1 + $0x118] sm:$0xf]
  %v97 = vld [vmem:[%s1 + $0x11c] sm:$0xf]
  %v98 = vld [vmem:[%s1 + $0x120] sm:$0xf]
  %v99 = vld [vmem:[%s1 + $0x124] sm:$0xf]
  %v100 = vld [vmem:[%s1 + $0x128] sm:$0xf]
  %v101 = vld [vmem:[%s1 + $0x12c] sm:$0xf]
  %v102 = vld [vmem:[%s1 + $0x130] sm:$0xf]
  %v103 = vld [vmem:[%s1 + $0x134] sm:$0xf]
  %v104 = vld [vmem:[%s1 + $0x138] sm:$0xf]
  %v105 = vld [vmem:[%s1 + $0x13c] sm:$0xf]
  %v106 = vld [vmem:[%s1 + $0x140] sm:$0xf]
  %v107 = vld [vmem:[%s1 + $0x144] sm:$0xf]
  %v108 = vld [vmem:[%s1 + $0x148] sm:$0xf]
  %v109 = vld [vmem:[%s1 + $0x14c] sm:$0xf]
  %v110 = vld [vmem:[%s1 + $0x150] sm:$0xf]
  %v111 = vld [vmem:[%s1 + $0x154] sm:$0xf]
  %v112 = vld [vmem:[%s1 + $0x158] sm:$0xf]
  %v113 = vld [vmem:[%s1 + $0x15c] sm:$0xf]
  %v114 = vld [vmem:[%s1 + $0x160] sm:$0xf]
  %v115 = vld [vmem:[%s1 + $0x164] sm:$0xf]
  %v116 = vld [vmem:[%s1 + $0x168] sm:$0xf]
  %v117 = vld [vmem:[%s1 + $0x16c] sm:$0xf]
  %v118 = vld [vmem:[%s1 + $0x170] sm:$0xf]
  %v119 = vld [vmem:[%s1 + $0x174] sm:$0xf]
  %v120 = vld [vmem:[%s1 + $0x178] sm:$0xf]
  %v121 = vld [vmem:[%s1 + $0x17c] sm:$0xf]
  %v122 = vld [vmem:[%s1 + $0x180] sm:$0xf]
  %v123 = vld [vmem:[%s1 + $0x184] sm:$0xf]
  %v124 = vld [vmem:[%s1 + $0x188] sm:$0xf]
  %v125 = vld [vmem:[%s1 + $0x18c] sm:$0xf]
  %v126 = vld [vmem:[%s1 + $0x190] sm:$0xf]
  %v127 = vld [vmem:[%s1 + $0x194] sm:$0xf]
  %v128 = vld [vmem:[%s1 + $0x198] sm:$0xf]
  %v129 = vld [vmem:[%s1 + $0x19c] sm:$0xf]
  %v130 = vld [vmem:[%s1 + $0x1a0] sm:$0xf]
  %v131 = vld [vmem:[%s1 + $0x1a4] sm:$0xf]
  %v132 = vld [vmem:[%s1 + $0x1a8] sm:$0xf]
  %v133 = vld [vmem:[%s1 + $0x1ac] sm:$0xf]
  %v134 = vld [vmem:[%s1 + $0x1b0] sm:$0xf]
  %v135 = vld [vmem:[%s1 + $0x1b4] sm:$0xf]
  %v136 = vld [vmem:[%s1 + $0x1b8] sm:$0xf]
  %v137 = vld [vmem:[%s1 + $0x1bc] sm:$0xf]
  %v138 = vld [vmem:[%s1 + $0x1c0] sm:$0xf]
  %v139 = vld [vmem:[%s1 + $0x1c4] sm:$0xf]
  %v140 = vld [vmem:[%s1 + $0x1c8] sm:$0xf]
  %v141 = vld [vmem:[%s1 + $0x1cc] sm:$0xf]
  %v142 = vld [vmem:[%s1 + $0x1d0] sm:$0xf]
  %v143 = vld [vmem:[%s1 + $0x1d4] sm:$0xf]
  %v144 = vld [vmem:[%s1 + $0x1d8] sm:$0xf]
  %v145 = vld [vmem:[%s1 + $0x1dc] sm:$0xf]
  %v146 = vld [vmem:[%s1 + $0x1e0] sm:$0xf]
  %v147 = vld [vmem:[%s1 + $0x1e4] sm:$0xf]
  %v148 = vld [vmem:[%s1 + $0x1e8] sm:$0xf]
  %v149 = vld [vmem:[%s1 + $0x1ec] sm:$0xf]
  %v150 = vld [vmem:[%s1 + $0x1f0] sm:$0xf]
  %v151 = vld [vmem:[%s1 + $0x1f4] sm:$0xf]
  %v152 = vld [vmem:[%s1 + $0x1f8] sm:$0xf]
  %v153 = vld [vmem:[%s1 + $0x1fc] sm:$0xf]
  %v154 = vld [vmem:[%s1 + $0x200] sm:$0xf]
  %v155 = vld [vmem:[%s1 + $0x204] sm:$0xf]
  %v156 = vld [vmem:[%s1 + $0x208] sm:$0xf]
  %v157 = vld [vmem:[%s1 + $0x20c] sm:$0xf]
  %v158 = vld [vmem:[%s1 + $0x210] sm:$0xf]
  %v159 = vld [vmem:[%s1 + $0x214] sm:$0xf]
  %v160 = vld [vmem:[%s1 + $0x218] sm:$0xf]
  %v161 = vld [vmem:[%s1 + $0x21c] sm:$0xf]
  %v162 = vld [vmem:[%s1 + $0x220] sm:$0xf]
  %v163 = vld [vmem:[%s1 + $0x224] sm:$0xf]
  %v164 = vld [vmem:[%s1 + $0x228] sm:$0xf]
  %v165 = vld [vmem:[%s1 + $0x22c] sm:$0xf]
  %v166 = vld [vmem:[%s1 + $0x230] sm:$0xf]
  %v167 = vld [vmem:[%s1 + $0x234] sm:$0xf]
  %v168 = vld [vmem:[%s1 + $0x238] sm:$0xf]
  %v169 = vld [vmem:[%s1 + $0x23c] sm:$0xf]
  %v170 = vld [vmem:[%s1 + $0x240] sm:$0xf]
  %v171 = vld [vmem:[%s1 + $0x244] sm:$0xf]
  %v172 = vld [vmem:[%s1 + $0x248] sm:$0xf]
  %v173 = vld [vmem:[%s1 + $0x24c] sm:$0xf]
  %v174 = vld [vmem:[%s1 + $0x250] sm:$0xf]
  %v175 = vld [vmem:[%s1 + $0x254] sm:$0xf]
  %v176 = vld [vmem:[%s1 + $0x258] sm:$0xf]
  %v177 = vld [vmem:[%s1 + $0x25c] sm:$0xf]
  %v178 = vld [vmem:[%s1 + $0x260] sm:$0xf]
  %v179 = vld [vmem:[%s1 + $0x264] sm:$0xf]
  %v180 = vld [vmem:[%s1 + $0x268] sm:$0xf]
  %v181 = vld [vmem:[%s1 + $0x26c] sm:$0xf]
  %v182 = vld [vmem:[%s1 + $0x270] sm:$0xf]
  %v183 = vld [vmem:[%s1 + $0x274] sm:$0xf]
  %v184 = vld [vmem:[%s1 + $0x278] sm:$0xf]
  %v185 = vld [vmem:[%s1 + $0x27c] sm:$0xf]
  %v186 = vld [vmem:[%s1 + $0x280] sm:$0xf]
  %v187 = vld [vmem:[%s1 + $0x284] sm:$0xf]
  %v188 = vld [vmem:[%s1 + $0x288] sm:$0xf]
  %v189 = vld [vmem:[%s1 + $0x28c] sm:$0xf]
  %v190 = vld [vmem:[%s1 + $0x290] sm:$0xf]
  %v191 = vld [vmem:[%s1 + $0x294] sm:$0xf]
  %v192 = vld [vmem:[%s1 + $0x298] sm:$0xf]
  %v193 = vld [vmem:[%s1 + $0x29c] sm:$0xf]
  %v194 = vld [vmem:[%s1 + $0x2a0] sm:$0xf]
  %v195 = vld [vmem:[%s1 + $0x2a4] sm:$0xf]
  %v196 = vld [vmem:[%s1 + $0x2a8] sm:$0xf]
  %v197 = vld [vmem:[%s1 + $0x2ac] sm:$0xf]
  %v198 = vld [vmem:[%s1 + $0x2b0] sm:$0xf]
  %v199 = vld [vmem:[%s1 + $0x2b4] sm:$0xf]
  %v200 = vld [vmem:[%s1 + $0x2b8] sm:$0xf]
  %v201 = vld [vmem:[%s1 + $0x2bc] sm:$0xf]
  %v202 = vld [vmem:[%s1 + $0x2c0] sm:$0xf]
  %v203 = vld [vmem:[%s1 + $0x2c4] sm:$0xf]
  %v204 = vld [vmem:[%s1 + $0x2c8] sm:$0xf]
  %v205 = vld [vmem:[%s1 + $0x2cc] sm:$0xf]
  %v206 = vld [vmem:[%s1 + $0x2d0] sm:$0xf]
  %v207 = vld [vmem:[%s1 + $0x2d4] sm:$0xf]
  %v208 = vld [vmem:[%s1 + $0x2d8] sm:$0xf]
  %v209 = vld [vmem:[%s1 + $0x2dc] sm:$0xf]
  %v210 = vld [vmem:[%s1 + $0x2e0] sm:$0xf]
  %v211 = vld [vmem:[%s1 + $0x2e4] sm:$0xf]
  %v212 = vld [vmem:[%s1 + $0x2e8] sm:$0xf]
  %v213 = vld [vmem:[%s1 + $0x2ec] sm:$0xf]
  %v214 = vld [vmem:[%s1 + $0x2f0] sm:$0xf]
  %v215 = vld [vmem:[%s1 + $0x2f4] sm:$0xf]
  %v216 = vld [vmem:[%s1 + $0x2f8] sm:$0xf]
  %v217 = vld [vmem:[%s1 + $0x2fc] sm:$0xf]
  %v218 = vld [vmem:[%s1 + $0x300] sm:$0xf]
  %v219 = vld [vmem:[%s1 + $0x304] sm:$0xf]
  %v220 = vld [vmem:[%s1 + $0x308] sm:$0xf]
  %v221 = vld [vmem:[%s1 + $0x30c] sm:$0xf]
  %v222 = vld [vmem:[%s1 + $0x310] sm:$0xf]
  %v223 = vld [vmem:[%s1 + $0x314] sm:$0xf]
  %v224 = vld [vmem:[%s1 + $0x318] sm:$0xf]
  %v225 = vld [vmem:[%s1 + $0x31c] sm:$0xf]
  %v226 = vld [vmem:[%s1 + $0x320] sm:$0xf]
  %v227 = vld [vmem:[%s1 + $0x324] sm:$0xf]
  %v228 = vld [vmem:[%s1 + $0x328] sm:$0xf]
  %v229 = vld [vmem:[%s1 + $0x32c] sm:$0xf]
  %v230 = vld [vmem:[%s1 + $0x330] sm:$0xf]
  %v231 = vld [vmem:[%s1 + $0x334] sm:$0xf]
  %v232 = vld [vmem:[%s1 + $0x338] sm:$0xf]
  %v233 = vld [vmem:[%s1 + $0x33c] sm:$0xf]
  %v234 = vld [vmem:[%s1 + $0x340] sm:$0xf]
  %v235 = vld [vmem:[%s1 + $0x344] sm:$0xf]
  %v236 = vld [vmem:[%s1 + $0x348] sm:$0xf]
  %v237 = vld [vmem:[%s1 + $0x34c] sm:$0xf]
  %v238 = vld [vmem:[%s1 + $0x350] sm:$0xf]
  %v239 = vld [vmem:[%s1 + $0x354] sm:$0xf]
  %v240 = vld [vmem:[%s1 + $0x358] sm:$0xf]
  %v241 = vld [vmem:[%s1 + $0x35c] sm:$0xf]
  %v242 = vld [vmem:[%s1 + $0x360] sm:$0xf]
  %v243 = vld [vmem:[%s1 + $0x364] sm:$0xf]
  %v244 = vld [vmem:[%s1 + $0x368] sm:$0xf]
  %v245 = vld [vmem:[%s1 + $0x36c] sm:$0xf]
  %v246 = vld [vmem:[%s1 + $0x370] sm:$0xf]
  %v247 = vld [vmem:[%s1 + $0x374] sm:$0xf]
  %v248 = vld [vmem:[%s1 + $0x378] sm:$0xf]
  %v249 = vld [vmem:[%s1 + $0x37c] sm:$0xf]
  %v250 = vld [vmem:[%s1 + $0x380] sm:$0xf]
  %v251 = vld [vmem:[%s1 + $0x384] sm:$0xf]
  %v252 = vld [vmem:[%s1 + $0x388] sm:$0xf]
  %v253 = vld [vmem:[%s1 + $0x38c] sm:$0xf]
  %v254 = vld [vmem:[%s1 + $0x390] sm:$0xf]
  %v255 = vld [vmem:[%s1 + $0x394] sm:$0xf]
  %v256 = vld [vmem:[%s1 + $0x398] sm:$0xf]
  %v257 = vld [vmem:[%s1 + $0x39c] sm:$0xf]
  %v258 = vld [vmem:[%s1 + $0x3a0] sm:$0xf]
  %v259 = vld [vmem:[%s1 + $0x3a4] sm:$0xf]
  %v260 = vld [vmem:[%s1 + $0x3a8] sm:$0xf]
  %v261 = vld [vmem:[%s1 + $0x3ac] sm:$0xf]
  %v262 = vld [vmem:[%s1 + $0x3b0] sm:$0xf]
  %v263 = vld [vmem:[%s1 + $0x3b4] sm:$0xf]
  %v264 = vld [vmem:[%s1 + $0x3b8] sm:$0xf]
  %v265 = vld [vmem:[%s1 + $0x3bc] sm:$0xf]
  %v266 = vld [vmem:[%s1 + $0x3c0] sm:$0xf]
  %v267 = vld [vmem:[%s1 + $0x3c4] sm:$0xf]
  %v268 = vld [vmem:[%s1 + $0x3c8] sm:$0xf]
  %v269 = vld [vmem:[%s1 + $0x3cc] sm:$0xf]
  %v270 = vld [vmem:[%s1 + $0x3d0] sm:$0xf]
  %v271 = vld [vmem:[%s1 + $0x3d4] sm:$0xf]
  %v272 = vld [vmem:[%s1 + $0x3d8] sm:$0xf]
  %v273 = vld [vmem:[%s1 + $0x3dc] sm:$0xf]
  %v274 = vld [vmem:[%s1 + $0x3e0] sm:$0xf]
  %v275 = vld [vmem:[%s1 + $0x3e4] sm:$0xf]
  %v276 = vld [vmem:[%s1 + $0x3e8] sm:$0xf]
  %v277 = vld [vmem:[%s1 + $0x3ec] sm:$0xf]
  %v278 = vld [vmem:[%s1 + $0x3f0] sm:$0xf]
  %v279 = vld [vmem:[%s1 + $0x3f4] sm:$0xf]
  %v280 = vld [vmem:[%s1 + $0x3f8] sm:$0xf]
  %v281 = vld [vmem:[%s1 + $0x3fc] sm:$0xf]
  %v282 = vld [vmem:[%s1 + $0x400] sm:$0xf]
  %v283 = vld [vmem:[%s1 + $0x404] sm:$0xf]
  %v284 = vld [vmem:[%s1 + $0x408] sm:$0xf]
  %v285 = vld [vmem:[%s1 + $0x40c] sm:$0xf]
  %v286 = vld [vmem:[%s1 + $0x410] sm:$0xf]
  %v287 = vld [vmem:[%s1 + $0x414] sm:$0xf]
  %v288 = vld [vmem:[%s1 + $0x418] sm:$0xf]
  %v289 = vld [vmem:[%s1 + $0x41c] sm:$0xf]
  %v290 = vld [vmem:[%s1 + $0x420] sm:$0xf]
  %v291 = vld [vmem:[%s1 + $0x424] sm:$0xf]
  %v292 = vld [vmem:[%s1 + $0x428] sm:$0xf]
  %v293 = vld [vmem:[%s1 + $0x42c] sm:$0xf]
  %v294 = vld [vmem:[%s1 + $0x430] sm:$0xf]
  %v295 = vld [vmem:[%s1 + $0x434] sm:$0xf]
  %v296 = vld [vmem:[%s1 + $0x438] sm:$0xf]
  %v297 = vld [vmem:[%s1 + $0x43c] sm:$0xf]
  %v298 = vld [vmem:[%s1 + $0x440] sm:$0xf]
  %v299 = vld [vmem:[%s1 + $0x444] sm:$0xf]
  %v300 = vld [vmem:[%s1 + $0x448] sm:$0xf]
  %v301 = vld [vmem:[%s1 + $0x44c] sm:$0xf]
  %v302 = vld [vmem:[%s1 + $0x450] sm:$0xf]
  %v303 = vld [vmem:[%s1 + $0x454] sm:$0xf]
  %v304 = vld [vmem:[%s1 + $0x458] sm:$0xf]
  %v305 = vld [vmem:[%s1 + $0x45c] sm:$0xf]
  %v306 = vld [vmem:[%s1 + $0x460] sm:$0xf]
  %v307 = vld [vmem:[%s1 + $0x464] sm:$0xf]
  %v308 = vld [vmem:[%s1 + $0x468] sm:$0xf]
  %v309 = vld [vmem:[%s1 + $0x46c] sm:$0xf]
  %v310 = vld [vmem:[%s1 + $0x470] sm:$0xf]
  %v311 = vld [vmem:[%s1 + $0x474] sm:$0xf]
  %v312 = vld [vmem:[%s1 + $0x478] sm:$0xf]
  %v313 = vld [vmem:[%s1 + $0x47c] sm:$0xf]
  %v314 = vld [vmem:[%s1 + $0x480] sm:$0xf]
  %v315 = vld [vmem:[%s1 + $0x484] sm:$0xf]
  %v316 = vld [vmem:[%s1 + $0x488] sm:$0xf]
  %v317 = vld [vmem:[%s1 + $0x48c] sm:$0xf]
  %v318 = vld [vmem:[%s1 + $0x490] sm:$0xf]
  %v319 = vld [vmem:[%s1 + $0x494] sm:$0xf]
  %v320 = vld [vmem:[%s1 + $0x498] sm:$0xf]
  %v321 = vld [vmem:[%s1 + $0x49c] sm:$0xf]
  %v322 = vld [vmem:[%s1 + $0x4a0] sm:$0xf]
  %v323 = vld [vmem:[%s1 + $0x4a4] sm:$0xf]
  %v324 = vld [vmem:[%s1 + $0x4a8] sm:$0xf]
  %v325 = vld [vmem:[%s1 + $0x4ac] sm:$0xf]
  %v326 = vld [vmem:[%s1 + $0x4b0] sm:$0xf]
  %v327 = vld [vmem:[%s1 + $0x4b4] sm:$0xf]
  %v328 = vld [vmem:[%s1 + $0x4b8] sm:$0xf]
  %v329 = vld [vmem:[%s1 + $0x4bc] sm:$0xf]
  %v330 = vld [vmem:[%s1 + $0x4c0] sm:$0xf]
  %v331 = vld [vmem:[%s1 + $0x4c4] sm:$0xf]
  %v332 = vld [vmem:[%s1 + $0x4c8] sm:$0xf]
  %v333 = vld [vmem:[%s1 + $0x4cc] sm:$0xf]
  %v334 = vld [vmem:[%s1 + $0x4d0] sm:$0xf]
  %v335 = vld [vmem:[%s1 + $0x4d4] sm:$0xf]
  %v336 = vld [vmem:[%s1 + $0x4d8] sm:$0xf]
  %v337 = vld [vmem:[%s1 + $0x4dc] sm:$0xf]
  %v338 = vld [vmem:[%s1 + $0x4e0] sm:$0xf]
  %v339 = vld [vmem:[%s1 + $0x4e4] sm:$0xf]
  %v340 = vld [vmem:[%s1 + $0x4e8] sm:$0xf]
  %v341 = vld [vmem:[%s1 + $0x4ec] sm:$0xf]
  %v342 = vld [vmem:[%s1 + $0x4f0] sm:$0xf]
  %v343 = vld [vmem:[%s1 + $0x4f4] sm:$0xf]
  %v344 = vld [vmem:[%s1 + $0x4f8] sm:$0xf]
  %v345 = vld [vmem:[%s1 + $0x4fc] sm:$0xf]
  %v346 = vld [vmem:[%s1 + $0x500] sm:$0xf]
  %v347 = vld [vmem:[%s1 + $0x504] sm:$0xf]
  %v348 = vld [vmem:[%s1 + $0x508] sm:$0xf]
  %v349 = vld [vmem:[%s1 + $0x50c] sm:$0xf]
  %v350 = vld [vmem:[%s1 + $0x510] sm:$0xf]
  %v351 = vld [vmem:[%s1 + $0x514] sm:$0xf]
  %v352 = vld [vmem:[%s1 + $0x518] sm:$0xf]
  %v353 = vld [vmem:[%s1 + $0x51c] sm:$0xf]
  %v354 = vld [vmem:[%s1 + $0x520] sm:$0xf]
  %v355 = vld [vmem:[%s1 + $0x524] sm:$0xf]
  %v356 = vld [vmem:[%s1 + $0x528] sm:$0xf]
  %v357 = vld [vmem:[%s1 + $0x52c] sm:$0xf]
  %v358 = vld [vmem:[%s1 + $0x530] sm:$0xf]
  %v359 = vld [vmem:[%s1 + $0x534] sm:$0xf]
  %v360 = vld [vmem:[%s1 + $0x538] sm:$0xf]
  %v361 = vld [vmem:[%s1 + $0x53c] sm:$0xf]
  %v362 = vld [vmem:[%s1 + $0x540] sm:$0xf]
  %v363 = vld [vmem:[%s1 + $0x544] sm:$0xf]
  %v364 = vld [vmem:[%s1 + $0x548] sm:$0xf]
  %v365 = vld [vmem:[%s1 + $0x54c] sm:$0xf]
  %v366 = vld [vmem:[%s1 + $0x550] sm:$0xf]
  %v367 = vld [vmem:[%s1 + $0x554] sm:$0xf]
  %v368 = vld [vmem:[%s1 + $0x558] sm:$0xf]
  %v369 = vld [vmem:[%s1 + $0x55c] sm:$0xf]
  %v370 = vld [vmem:[%s1 + $0x560] sm:$0xf]
  %v371 = vld [vmem:[%s1 + $0x564] sm:$0xf]
  %v372 = vld [vmem:[%s1 + $0x568] sm:$0xf]
  %v373 = vld [vmem:[%s1 + $0x56c] sm:$0xf]
  %v374 = vld [vmem:[%s1 + $0x570] sm:$0xf]
  %v375 = vld [vmem:[%s1 + $0x574] sm:$0xf]
  %v376 = vld [vmem:[%s1 + $0x578] sm:$0xf]
  %v377 = vld [vmem:[%s1 + $0x57c] sm:$0xf]
  %v378 = vld [vmem:[%s1 + $0x580] sm:$0xf]
  %v379 = vld [vmem:[%s1 + $0x584] sm:$0xf]
  %v380 = vld [vmem:[%s1 + $0x588] sm:$0xf]
  %v381 = vld [vmem:[%s1 + $0x58c] sm:$0xf]
  %v382 = vld [vmem:[%s1 + $0x590] sm:$0xf]
  %v383 = vld [vmem:[%s1 + $0x594] sm:$0xf]
  %v384 = vld [vmem:[%s1 + $0x598] sm:$0xf]
  %v385 = vld [vmem:[%s1 + $0x59c] sm:$0xf]
  %v386 = vld [vmem:[%s1 + $0x5a0] sm:$0xf]
  %v387 = vld [vmem:[%s1 + $0x5a4] sm:$0xf]
  %v388 = vld [vmem:[%s1 + $0x5a8] sm:$0xf]
  %v389 = vld [vmem:[%s1 + $0x5ac] sm:$0xf]
  %v390 = vld [vmem:[%s1 + $0x5b0] sm:$0xf]
  %v391 = vld [vmem:[%s1 + $0x5b4] sm:$0xf]
  %v392 = vld [vmem:[%s1 + $0x5b8] sm:$0xf]
  %v393 = vld [vmem:[%s1 + $0x5bc] sm:$0xf]
  %v394 = vld [vmem:[%s1 + $0x5c0] sm:$0xf]
  %v395 = vld [vmem:[%s1 + $0x5c4] sm:$0xf]
  %v396 = vld [vmem:[%s1 + $0x5c8] sm:$0xf]
  %v397 = vld [vmem:[%s1 + $0x5cc] sm:$0xf]
  %v398 = vld [vmem:[%s1 + $0x5d0] sm:$0xf]
  %v399 = vld [vmem:[%s1 + $0x5d4] sm:$0xf]
  %v400 = vld [vmem:[%s1 + $0x5d8] sm:$0xf]
  %v401 = vld [vmem:[%s1 + $0x5dc] sm:$0xf]
  %v402 = vld [vmem:[%s1 + $0x5e0] sm:$0xf]
  %v403 = vld [vmem:[%s1 + $0x5e4] sm:$0xf]
  %v404 = vld [vmem:[%s1 + $0x5e8] sm:$0xf]
  %v405 = vld [vmem:[%s1 + $0x5ec] sm:$0xf]
  %v406 = vld [vmem:[%s1 + $0x5f0] sm:$0xf]
  %v407 = vld [vmem:[%s1 + $0x5f4] sm:$0xf]
  %v408 = vld [vmem:[%s1 + $0x5f8] sm:$0xf]
  %v409 = vld [vmem:[%s1 + $0x5fc] sm:$0xf]
  %v410 = vld [vmem:[%s2] sm:$0x1]
  %v412 = vperm.slane %v410, 0
  %v426 = vunpack.c.l.b16 %v14
  %v427 = vunpack.c.h.b16 %v14
  %v428 = vunpack.c.l.b16 %v15
  %v429 = vunpack.c.h.b16 %v15
  %v430 = vunpack.c.l.b16 %v16
  %v431 = vunpack.c.h.b16 %v16
  %v432 = vunpack.c.l.b16 %v17
  %v433 = vunpack.c.h.b16 %v17
  %v434 = vunpack.c.l.b16 %v18
  %v435 = vunpack.c.h.b16 %v18
  %v436 = vunpack.c.l.b16 %v19
  %v437 = vunpack.c.h.b16 %v19
  %v438 = vunpack.c.l.b16 %v20
  %v439 = vunpack.c.h.b16 %v20
  %v440 = vunpack.c.l.b16 %v21
  %v441 = vunpack.c.h.b16 %v21
  %v442 = vunpack.c.l.b16 %v22
  %v443 = vunpack.c.h.b16 %v22
  %v444 = vunpack.c.l.b16 %v23
  %v445 = vunpack.c.h.b16 %v23
  %v446 = vunpack.c.l.b16 %v24
  %v447 = vunpack.c.h.b16 %v24
  %v448 = vunpack.c.l.b16 %v25
  %v449 = vunpack.c.h.b16 %v25
  %v450 = vpack.c.b16 %v426, %v426
  %v451 = vpack.c.b16 %v427, %v427
  %v452 = vpack.c.b16 %v428, %v428
  %v453 = vpack.c.b16 %v429, %v429
  %v454 = vpack.c.b16 %v430, %v430
  %v455 = vpack.c.b16 %v431, %v431
  %v456 = vpack.c.b16 %v432, %v432
  %v457 = vpack.c.b16 %v433, %v433
  %v458 = vpack.c.b16 %v434, %v434
  %v459 = vpack.c.b16 %v435, %v435
  %v460 = vpack.c.b16 %v436, %v436
  %v461 = vpack.c.b16 %v437, %v437
  %v462 = vpack.c.b16 %v438, %v438
  %v463 = vpack.c.b16 %v439, %v439
  %v464 = vpack.c.b16 %v440, %v440
  %v465 = vpack.c.b16 %v441, %v441
  %v466 = vpack.c.b16 %v442, %v442
  %v467 = vpack.c.b16 %v443, %v443
  %v468 = vpack.c.b16 %v444, %v444
  %v469 = vpack.c.b16 %v445, %v445
  %v470 = vpack.c.b16 %v446, %v446
  %v471 = vpack.c.b16 %v447, %v447
  %v472 = vpack.c.b16 %v448, %v448
  %v473 = vpack.c.b16 %v449, %v449
  %v882 = vunpack.c.l.b16 %v26
  %v883 = vunpack.c.l.b16 %v27
  %v884 = vunpack.c.l.b16 %v28
  %v885 = vunpack.c.l.b16 %v29
  %v886 = vunpack.c.l.b16 %v30
  %v887 = vunpack.c.l.b16 %v31
  %v888 = vunpack.c.l.b16 %v32
  %v889 = vunpack.c.l.b16 %v33
  %v890 = vunpack.c.l.b16 %v34
  %v891 = vunpack.c.l.b16 %v35
  %v892 = vunpack.c.l.b16 %v36
  %v893 = vunpack.c.l.b16 %v37
  %v894 = vunpack.c.l.b16 %v38
  %v895 = vunpack.c.l.b16 %v39
  %v896 = vunpack.c.l.b16 %v40
  %v897 = vunpack.c.l.b16 %v41
  %v898 = vunpack.c.l.b16 %v42
  %v899 = vunpack.c.l.b16 %v43
  %v900 = vunpack.c.l.b16 %v44
  %v901 = vunpack.c.l.b16 %v45
  %v902 = vunpack.c.l.b16 %v46
  %v903 = vunpack.c.l.b16 %v47
  %v904 = vunpack.c.l.b16 %v48
  %v905 = vunpack.c.l.b16 %v49
  %v906 = vunpack.c.l.b16 %v50
  %v907 = vunpack.c.l.b16 %v51
  %v908 = vunpack.c.l.b16 %v52
  %v909 = vunpack.c.l.b16 %v53
  %v910 = vunpack.c.l.b16 %v54
  %v911 = vunpack.c.l.b16 %v55
  %v912 = vunpack.c.l.b16 %v56
  %v913 = vunpack.c.l.b16 %v57
  %v914 = vunpack.c.l.b16 %v58
  %v915 = vunpack.c.l.b16 %v59
  %v916 = vunpack.c.l.b16 %v60
  %v917 = vunpack.c.l.b16 %v61
  %v918 = vunpack.c.l.b16 %v62
  %v919 = vunpack.c.l.b16 %v63
  %v920 = vunpack.c.l.b16 %v64
  %v921 = vunpack.c.l.b16 %v65
  %v922 = vunpack.c.l.b16 %v66
  %v923 = vunpack.c.l.b16 %v67
  %v924 = vunpack.c.l.b16 %v68
  %v925 = vunpack.c.l.b16 %v69
  %v926 = vunpack.c.l.b16 %v70
  %v927 = vunpack.c.l.b16 %v71
  %v928 = vunpack.c.l.b16 %v72
  %v929 = vunpack.c.l.b16 %v73
  %v930 = vunpack.c.l.b16 %v74
  %v931 = vunpack.c.l.b16 %v75
  %v932 = vunpack.c.l.b16 %v76
  %v933 = vunpack.c.l.b16 %v77
  %v934 = vunpack.c.l.b16 %v78
  %v935 = vunpack.c.l.b16 %v79
  %v936 = vunpack.c.l.b16 %v80
  %v937 = vunpack.c.l.b16 %v81
  %v938 = vunpack.c.l.b16 %v82
  %v939 = vunpack.c.l.b16 %v83
  %v940 = vunpack.c.l.b16 %v84
  %v941 = vunpack.c.l.b16 %v85
  %v942 = vunpack.c.l.b16 %v86
  %v943 = vunpack.c.l.b16 %v87
  %v944 = vunpack.c.l.b16 %v88
  %v945 = vunpack.c.l.b16 %v89
  %v946 = vunpack.c.l.b16 %v90
  %v947 = vunpack.c.l.b16 %v91
  %v948 = vunpack.c.l.b16 %v92
  %v949 = vunpack.c.l.b16 %v93
  %v950 = vunpack.c.l.b16 %v94
  %v951 = vunpack.c.l.b16 %v95
  %v952 = vunpack.c.l.b16 %v96
  %v953 = vunpack.c.l.b16 %v97
  %v954 = vunpack.c.l.b16 %v98
  %v955 = vunpack.c.l.b16 %v99
  %v956 = vunpack.c.l.b16 %v100
  %v957 = vunpack.c.l.b16 %v101
  %v958 = vunpack.c.l.b16 %v102
  %v959 = vunpack.c.l.b16 %v103
  %v960 = vunpack.c.l.b16 %v104
  %v961 = vunpack.c.l.b16 %v105
  %v962 = vunpack.c.l.b16 %v106
  %v963 = vunpack.c.l.b16 %v107
  %v964 = vunpack.c.l.b16 %v108
  %v965 = vunpack.c.l.b16 %v109
  %v966 = vunpack.c.l.b16 %v110
  %v967 = vunpack.c.l.b16 %v111
  %v968 = vunpack.c.l.b16 %v112
  %v969 = vunpack.c.l.b16 %v113
  %v970 = vunpack.c.l.b16 %v114
  %v971 = vunpack.c.l.b16 %v115
  %v972 = vunpack.c.l.b16 %v116
  %v973 = vunpack.c.l.b16 %v117
  %v974 = vunpack.c.l.b16 %v118
  %v975 = vunpack.c.l.b16 %v119
  %v976 = vunpack.c.l.b16 %v120
  %v977 = vunpack.c.l.b16 %v121
  %v978 = vunpack.c.l.b16 %v122
  %v979 = vunpack.c.l.b16 %v123
  %v980 = vunpack.c.l.b16 %v124
  %v981 = vunpack.c.l.b16 %v125
  %v982 = vunpack.c.l.b16 %v126
  %v983 = vunpack.c.l.b16 %v127
  %v984 = vunpack.c.l.b16 %v128
  %v985 = vunpack.c.l.b16 %v129
  %v986 = vunpack.c.l.b16 %v130
  %v987 = vunpack.c.l.b16 %v131
  %v988 = vunpack.c.l.b16 %v132
  %v989 = vunpack.c.l.b16 %v133
  %v990 = vunpack.c.l.b16 %v134
  %v991 = vunpack.c.l.b16 %v135
  %v992 = vunpack.c.l.b16 %v136
  %v993 = vunpack.c.l.b16 %v137
  %v994 = vunpack.c.l.b16 %v138
  %v995 = vunpack.c.l.b16 %v139
  %v996 = vunpack.c.l.b16 %v140
  %v997 = vunpack.c.l.b16 %v141
  %v998 = vunpack.c.l.b16 %v142
  %v999 = vunpack.c.l.b16 %v143
  %v1000 = vunpack.c.l.b16 %v144
  %v1001 = vunpack.c.l.b16 %v145
  %v1002 = vunpack.c.l.b16 %v146
  %v1003 = vunpack.c.l.b16 %v147
  %v1004 = vunpack.c.l.b16 %v148
  %v1005 = vunpack.c.l.b16 %v149
  %v1006 = vunpack.c.l.b16 %v150
  %v1007 = vunpack.c.l.b16 %v151
  %v1008 = vunpack.c.l.b16 %v152
  %v1009 = vunpack.c.l.b16 %v153
  %v1010 = vunpack.c.l.b16 %v154
  %v1011 = vunpack.c.l.b16 %v155
  %v1012 = vunpack.c.l.b16 %v156
  %v1013 = vunpack.c.l.b16 %v157
  %v1014 = vunpack.c.l.b16 %v158
  %v1015 = vunpack.c.l.b16 %v159
  %v1016 = vunpack.c.l.b16 %v160
  %v1017 = vunpack.c.l.b16 %v161
  %v1018 = vunpack.c.l.b16 %v162
  %v1019 = vunpack.c.l.b16 %v163
  %v1020 = vunpack.c.l.b16 %v164
  %v1021 = vunpack.c.l.b16 %v165
  %v1022 = vunpack.c.l.b16 %v166
  %v1023 = vunpack.c.l.b16 %v167
  %v1024 = vunpack.c.l.b16 %v168
  %v1025 = vunpack.c.l.b16 %v169
  %v1026 = vunpack.c.l.b16 %v170
  %v1027 = vunpack.c.l.b16 %v171
  %v1028 = vunpack.c.l.b16 %v172
  %v1029 = vunpack.c.l.b16 %v173
  %v1030 = vunpack.c.l.b16 %v174
  %v1031 = vunpack.c.l.b16 %v175
  %v1032 = vunpack.c.l.b16 %v176
  %v1033 = vunpack.c.l.b16 %v177
  %v1034 = vunpack.c.l.b16 %v178
  %v1035 = vunpack.c.l.b16 %v179
  %v1036 = vunpack.c.l.b16 %v180
  %v1037 = vunpack.c.l.b16 %v181
  %v1038 = vunpack.c.l.b16 %v182
  %v1039 = vunpack.c.l.b16 %v183
  %v1040 = vunpack.c.l.b16 %v184
  %v1041 = vunpack.c.l.b16 %v185
  %v1042 = vunpack.c.l.b16 %v186
  %v1043 = vunpack.c.l.b16 %v187
  %v1044 = vunpack.c.l.b16 %v188
  %v1045 = vunpack.c.l.b16 %v189
  %v1046 = vunpack.c.l.b16 %v190
  %v1047 = vunpack.c.l.b16 %v191
  %v1048 = vunpack.c.l.b16 %v192
  %v1049 = vunpack.c.l.b16 %v193
  %v1050 = vunpack.c.l.b16 %v194
  %v1051 = vunpack.c.l.b16 %v195
  %v1052 = vunpack.c.l.b16 %v196
  %v1053 = vunpack.c.l.b16 %v197
  %v1054 = vunpack.c.l.b16 %v198
  %v1055 = vunpack.c.l.b16 %v199
  %v1056 = vunpack.c.l.b16 %v200
  %v1057 = vunpack.c.l.b16 %v201
  %v1058 = vunpack.c.l.b16 %v202
  %v1059 = vunpack.c.l.b16 %v203
  %v1060 = vunpack.c.l.b16 %v204
  %v1061 = vunpack.c.l.b16 %v205
  %v1062 = vunpack.c.l.b16 %v206
  %v1063 = vunpack.c.l.b16 %v207
  %v1064 = vunpack.c.l.b16 %v208
  %v1065 = vunpack.c.l.b16 %v209
  %v1066 = vunpack.c.l.b16 %v210
  %v1067 = vunpack.c.l.b16 %v211
  %v1068 = vunpack.c.l.b16 %v212
  %v1069 = vunpack.c.l.b16 %v213
  %v1070 = vunpack.c.l.b16 %v214
  %v1071 = vunpack.c.l.b16 %v215
  %v1072 = vunpack.c.l.b16 %v216
  %v1073 = vunpack.c.l.b16 %v217
  %v1074 = vunpack.c.l.b16 %v218
  %v1075 = vunpack.c.l.b16 %v219
  %v1076 = vunpack.c.l.b16 %v220
  %v1077 = vunpack.c.l.b16 %v221
  %v1078 = vunpack.c.l.b16 %v222
  %v1079 = vunpack.c.l.b16 %v223
  %v1080 = vunpack.c.l.b16 %v224
  %v1081 = vunpack.c.l.b16 %v225
  %v1082 = vunpack.c.l.b16 %v226
  %v1083 = vunpack.c.l.b16 %v227
  %v1084 = vunpack.c.l.b16 %v228
  %v1085 = vunpack.c.l.b16 %v229
  %v1086 = vunpack.c.l.b16 %v230
  %v1087 = vunpack.c.l.b16 %v231
  %v1088 = vunpack.c.l.b16 %v232
  %v1089 = vunpack.c.l.b16 %v233
  %v1090 = vunpack.c.l.b16 %v234
  %v1091 = vunpack.c.l.b16 %v235
  %v1092 = vunpack.c.l.b16 %v236
  %v1093 = vunpack.c.l.b16 %v237
  %v1094 = vunpack.c.l.b16 %v238
  %v1095 = vunpack.c.l.b16 %v239
  %v1096 = vunpack.c.l.b16 %v240
  %v1097 = vunpack.c.l.b16 %v241
  %v1098 = vunpack.c.l.b16 %v242
  %v1099 = vunpack.c.l.b16 %v243
  %v1100 = vunpack.c.l.b16 %v244
  %v1101 = vunpack.c.l.b16 %v245
  %v1102 = vunpack.c.l.b16 %v246
  %v1103 = vunpack.c.l.b16 %v247
  %v1104 = vunpack.c.l.b16 %v248
  %v1105 = vunpack.c.l.b16 %v249
  %v1106 = vunpack.c.l.b16 %v250
  %v1107 = vunpack.c.l.b16 %v251
  %v1108 = vunpack.c.l.b16 %v252
  %v1109 = vunpack.c.l.b16 %v253
  %v1110 = vunpack.c.l.b16 %v254
  %v1111 = vunpack.c.l.b16 %v255
  %v1112 = vunpack.c.l.b16 %v256
  %v1113 = vunpack.c.l.b16 %v257
  %v1114 = vunpack.c.l.b16 %v258
  %v1115 = vunpack.c.l.b16 %v259
  %v1116 = vunpack.c.l.b16 %v260
  %v1117 = vunpack.c.l.b16 %v261
  %v1118 = vunpack.c.l.b16 %v262
  %v1119 = vunpack.c.l.b16 %v263
  %v1120 = vunpack.c.l.b16 %v264
  %v1121 = vunpack.c.l.b16 %v265
  %v1122 = vunpack.c.l.b16 %v266
  %v1123 = vunpack.c.l.b16 %v267
  %v1124 = vunpack.c.l.b16 %v268
  %v1125 = vunpack.c.l.b16 %v269
  %v1126 = vunpack.c.l.b16 %v270
  %v1127 = vunpack.c.l.b16 %v271
  %v1128 = vunpack.c.l.b16 %v272
  %v1129 = vunpack.c.l.b16 %v273
  %v1130 = vunpack.c.l.b16 %v274
  %v1131 = vunpack.c.l.b16 %v275
  %v1132 = vunpack.c.l.b16 %v276
  %v1133 = vunpack.c.l.b16 %v277
  %v1134 = vunpack.c.l.b16 %v278
  %v1135 = vunpack.c.l.b16 %v279
  %v1136 = vunpack.c.l.b16 %v280
  %v1137 = vunpack.c.l.b16 %v281
  %v1138 = vunpack.c.l.b16 %v282
  %v1139 = vunpack.c.l.b16 %v283
  %v1140 = vunpack.c.l.b16 %v284
  %v1141 = vunpack.c.l.b16 %v285
  %v1142 = vunpack.c.l.b16 %v286
  %v1143 = vunpack.c.l.b16 %v287
  %v1144 = vunpack.c.l.b16 %v288
  %v1145 = vunpack.c.l.b16 %v289
  %v1146 = vunpack.c.l.b16 %v290
  %v1147 = vunpack.c.l.b16 %v291
  %v1148 = vunpack.c.l.b16 %v292
  %v1149 = vunpack.c.l.b16 %v293
  %v1150 = vunpack.c.l.b16 %v294
  %v1151 = vunpack.c.l.b16 %v295
  %v1152 = vunpack.c.l.b16 %v296
  %v1153 = vunpack.c.l.b16 %v297
  %v1154 = vunpack.c.l.b16 %v298
  %v1155 = vunpack.c.l.b16 %v299
  %v1156 = vunpack.c.l.b16 %v300
  %v1157 = vunpack.c.l.b16 %v301
  %v1158 = vunpack.c.l.b16 %v302
  %v1159 = vunpack.c.l.b16 %v303
  %v1160 = vunpack.c.l.b16 %v304
  %v1161 = vunpack.c.l.b16 %v305
  %v1162 = vunpack.c.l.b16 %v306
  %v1163 = vunpack.c.l.b16 %v307
  %v1164 = vunpack.c.l.b16 %v308
  %v1165 = vunpack.c.l.b16 %v309
  %v1166 = vunpack.c.l.b16 %v310
  %v1167 = vunpack.c.l.b16 %v311
  %v1168 = vunpack.c.l.b16 %v312
  %v1169 = vunpack.c.l.b16 %v313
  %v1170 = vunpack.c.l.b16 %v314
  %v1171 = vunpack.c.l.b16 %v315
  %v1172 = vunpack.c.l.b16 %v316
  %v1173 = vunpack.c.l.b16 %v317
  %v1174 = vunpack.c.l.b16 %v318
  %v1175 = vunpack.c.l.b16 %v319
  %v1176 = vunpack.c.l.b16 %v320
  %v1177 = vunpack.c.l.b16 %v321
  %v1178 = vunpack.c.l.b16 %v322
  %v1179 = vunpack.c.l.b16 %v323
  %v1180 = vunpack.c.l.b16 %v324
  %v1181 = vunpack.c.l.b16 %v325
  %v1182 = vunpack.c.l.b16 %v326
  %v1183 = vunpack.c.l.b16 %v327
  %v1184 = vunpack.c.l.b16 %v328
  %v1185 = vunpack.c.l.b16 %v329
  %v1186 = vunpack.c.l.b16 %v330
  %v1187 = vunpack.c.l.b16 %v331
  %v1188 = vunpack.c.l.b16 %v332
  %v1189 = vunpack.c.l.b16 %v333
  %v1190 = vunpack.c.l.b16 %v334
  %v1191 = vunpack.c.l.b16 %v335
  %v1192 = vunpack.c.l.b16 %v336
  %v1193 = vunpack.c.l.b16 %v337
  %v1194 = vunpack.c.l.b16 %v338
  %v1195 = vunpack.c.l.b16 %v339
  %v1196 = vunpack.c.l.b16 %v340
  %v1197 = vunpack.c.l.b16 %v341
  %v1198 = vunpack.c.l.b16 %v342
  %v1199 = vunpack.c.l.b16 %v343
  %v1200 = vunpack.c.l.b16 %v344
  %v1201 = vunpack.c.l.b16 %v345
  %v1202 = vunpack.c.l.b16 %v346
  %v1203 = vunpack.c.l.b16 %v347
  %v1204 = vunpack.c.l.b16 %v348
  %v1205 = vunpack.c.l.b16 %v349
  %v1206 = vunpack.c.l.b16 %v350
  %v1207 = vunpack.c.l.b16 %v351
  %v1208 = vunpack.c.l.b16 %v352
  %v1209 = vunpack.c.l.b16 %v353
  %v1210 = vunpack.c.l.b16 %v354
  %v1211 = vunpack.c.l.b16 %v355
  %v1212 = vunpack.c.l.b16 %v356
  %v1213 = vunpack.c.l.b16 %v357
  %v1214 = vunpack.c.l.b16 %v358
  %v1215 = vunpack.c.l.b16 %v359
  %v1216 = vunpack.c.l.b16 %v360
  %v1217 = vunpack.c.l.b16 %v361
  %v1218 = vunpack.c.l.b16 %v362
  %v1219 = vunpack.c.l.b16 %v363
  %v1220 = vunpack.c.l.b16 %v364
  %v1221 = vunpack.c.l.b16 %v365
  %v1222 = vunpack.c.l.b16 %v366
  %v1223 = vunpack.c.l.b16 %v367
  %v1224 = vunpack.c.l.b16 %v368
  %v1225 = vunpack.c.l.b16 %v369
  %v1226 = vunpack.c.l.b16 %v370
  %v1227 = vunpack.c.l.b16 %v371
  %v1228 = vunpack.c.l.b16 %v372
  %v1229 = vunpack.c.l.b16 %v373
  %v1230 = vunpack.c.l.b16 %v374
  %v1231 = vunpack.c.l.b16 %v375
  %v1232 = vunpack.c.l.b16 %v376
  %v1233 = vunpack.c.l.b16 %v377
  %v1234 = vunpack.c.l.b16 %v378
  %v1235 = vunpack.c.l.b16 %v379
  %v1236 = vunpack.c.l.b16 %v380
  %v1237 = vunpack.c.l.b16 %v381
  %v1238 = vunpack.c.l.b16 %v382
  %v1239 = vunpack.c.l.b16 %v383
  %v1240 = vunpack.c.l.b16 %v384
  %v1241 = vunpack.c.l.b16 %v385
  %v1242 = vunpack.c.l.b16 %v386
  %v1243 = vunpack.c.l.b16 %v387
  %v1244 = vunpack.c.l.b16 %v388
  %v1245 = vunpack.c.l.b16 %v389
  %v1246 = vunpack.c.l.b16 %v390
  %v1247 = vunpack.c.l.b16 %v391
  %v1248 = vunpack.c.l.b16 %v392
  %v1249 = vunpack.c.l.b16 %v393
  %v1250 = vunpack.c.l.b16 %v394
  %v1251 = vunpack.c.l.b16 %v395
  %v1252 = vunpack.c.l.b16 %v396
  %v1253 = vunpack.c.l.b16 %v397
  %v1254 = vunpack.c.l.b16 %v398
  %v1255 = vunpack.c.l.b16 %v399
  %v1256 = vunpack.c.l.b16 %v400
  %v1257 = vunpack.c.l.b16 %v401
  %v1258 = vunpack.c.l.b16 %v402
  %v1259 = vunpack.c.l.b16 %v403
  %v1260 = vunpack.c.l.b16 %v404
  %v1261 = vunpack.c.l.b16 %v405
  %v1262 = vunpack.c.l.b16 %v406
  %v1263 = vunpack.c.l.b16 %v407
  %v1264 = vunpack.c.l.b16 %v408
  %v1265 = vunpack.c.l.b16 %v409
  %v1266 = vpack.c.b16 %v883, %v882
  %v1267 = vpack.c.b16 %v885, %v884
  %v1268 = vpack.c.b16 %v887, %v886
  %v1269 = vpack.c.b16 %v889, %v888
  %v1270 = vpack.c.b16 %v891, %v890
  %v1271 = vpack.c.b16 %v893, %v892
  %v1272 = vpack.c.b16 %v895, %v894
  %v1273 = vpack.c.b16 %v897, %v896
  %v1274 = vpack.c.b16 %v899, %v898
  %v1275 = vpack.c.b16 %v901, %v900
  %v1276 = vpack.c.b16 %v903, %v902
  %v1277 = vpack.c.b16 %v905, %v904
  %v1278 = vpack.c.b16 %v907, %v906
  %v1279 = vpack.c.b16 %v909, %v908
  %v1280 = vpack.c.b16 %v911, %v910
  %v1281 = vpack.c.b16 %v913, %v912
  %v1282 = vpack.c.b16 %v915, %v914
  %v1283 = vpack.c.b16 %v917, %v916
  %v1284 = vpack.c.b16 %v919, %v918
  %v1285 = vpack.c.b16 %v921, %v920
  %v1286 = vpack.c.b16 %v923, %v922
  %v1287 = vpack.c.b16 %v925, %v924
  %v1288 = vpack.c.b16 %v927, %v926
  %v1289 = vpack.c.b16 %v929, %v928
  %v1290 = vpack.c.b16 %v931, %v930
  %v1291 = vpack.c.b16 %v933, %v932
  %v1292 = vpack.c.b16 %v935, %v934
  %v1293 = vpack.c.b16 %v937, %v936
  %v1294 = vpack.c.b16 %v939, %v938
  %v1295 = vpack.c.b16 %v941, %v940
  %v1296 = vpack.c.b16 %v943, %v942
  %v1297 = vpack.c.b16 %v945, %v944
  %v1298 = vpack.c.b16 %v947, %v946
  %v1299 = vpack.c.b16 %v949, %v948
  %v1300 = vpack.c.b16 %v951, %v950
  %v1301 = vpack.c.b16 %v953, %v952
  %v1302 = vpack.c.b16 %v955, %v954
  %v1303 = vpack.c.b16 %v957, %v956
  %v1304 = vpack.c.b16 %v959, %v958
  %v1305 = vpack.c.b16 %v961, %v960
  %v1306 = vpack.c.b16 %v963, %v962
  %v1307 = vpack.c.b16 %v965, %v964
  %v1308 = vpack.c.b16 %v967, %v966
  %v1309 = vpack.c.b16 %v969, %v968
  %v1310 = vpack.c.b16 %v971, %v970
  %v1311 = vpack.c.b16 %v973, %v972
  %v1312 = vpack.c.b16 %v975, %v974
  %v1313 = vpack.c.b16 %v977, %v976
  %v1314 = vpack.c.b16 %v979, %v978
  %v1315 = vpack.c.b16 %v981, %v980
  %v1316 = vpack.c.b16 %v983, %v982
  %v1317 = vpack.c.b16 %v985, %v984
  %v1318 = vpack.c.b16 %v987, %v986
  %v1319 = vpack.c.b16 %v989, %v988
  %v1320 = vpack.c.b16 %v991, %v990
  %v1321 = vpack.c.b16 %v993, %v992
  %v1322 = vpack.c.b16 %v995, %v994
  %v1323 = vpack.c.b16 %v997, %v996
  %v1324 = vpack.c.b16 %v999, %v998
  %v1325 = vpack.c.b16 %v1001, %v1000
  %v1326 = vpack.c.b16 %v1003, %v1002
  %v1327 = vpack.c.b16 %v1005, %v1004
  %v1328 = vpack.c.b16 %v1007, %v1006
  %v1329 = vpack.c.b16 %v1009, %v1008
  %v1330 = vpack.c.b16 %v1011, %v1010
  %v1331 = vpack.c.b16 %v1013, %v1012
  %v1332 = vpack.c.b16 %v1015, %v1014
  %v1333 = vpack.c.b16 %v1017, %v1016
  %v1334 = vpack.c.b16 %v1019, %v1018
  %v1335 = vpack.c.b16 %v1021, %v1020
  %v1336 = vpack.c.b16 %v1023, %v1022
  %v1337 = vpack.c.b16 %v1025, %v1024
  %v1338 = vpack.c.b16 %v1027, %v1026
  %v1339 = vpack.c.b16 %v1029, %v1028
  %v1340 = vpack.c.b16 %v1031, %v1030
  %v1341 = vpack.c.b16 %v1033, %v1032
  %v1342 = vpack.c.b16 %v1035, %v1034
  %v1343 = vpack.c.b16 %v1037, %v1036
  %v1344 = vpack.c.b16 %v1039, %v1038
  %v1345 = vpack.c.b16 %v1041, %v1040
  %v1346 = vpack.c.b16 %v1043, %v1042
  %v1347 = vpack.c.b16 %v1045, %v1044
  %v1348 = vpack.c.b16 %v1047, %v1046
  %v1349 = vpack.c.b16 %v1049, %v1048
  %v1350 = vpack.c.b16 %v1051, %v1050
  %v1351 = vpack.c.b16 %v1053, %v1052
  %v1352 = vpack.c.b16 %v1055, %v1054
  %v1353 = vpack.c.b16 %v1057, %v1056
  %v1354 = vpack.c.b16 %v1059, %v1058
  %v1355 = vpack.c.b16 %v1061, %v1060
  %v1356 = vpack.c.b16 %v1063, %v1062
  %v1357 = vpack.c.b16 %v1065, %v1064
  %v1358 = vpack.c.b16 %v1067, %v1066
  %v1359 = vpack.c.b16 %v1069, %v1068
  %v1360 = vpack.c.b16 %v1071, %v1070
  %v1361 = vpack.c.b16 %v1073, %v1072
  %v1362 = vpack.c.b16 %v1075, %v1074
  %v1363 = vpack.c.b16 %v1077, %v1076
  %v1364 = vpack.c.b16 %v1079, %v1078
  %v1365 = vpack.c.b16 %v1081, %v1080
  %v1366 = vpack.c.b16 %v1083, %v1082
  %v1367 = vpack.c.b16 %v1085, %v1084
  %v1368 = vpack.c.b16 %v1087, %v1086
  %v1369 = vpack.c.b16 %v1089, %v1088
  %v1370 = vpack.c.b16 %v1091, %v1090
  %v1371 = vpack.c.b16 %v1093, %v1092
  %v1372 = vpack.c.b16 %v1095, %v1094
  %v1373 = vpack.c.b16 %v1097, %v1096
  %v1374 = vpack.c.b16 %v1099, %v1098
  %v1375 = vpack.c.b16 %v1101, %v1100
  %v1376 = vpack.c.b16 %v1103, %v1102
  %v1377 = vpack.c.b16 %v1105, %v1104
  %v1378 = vpack.c.b16 %v1107, %v1106
  %v1379 = vpack.c.b16 %v1109, %v1108
  %v1380 = vpack.c.b16 %v1111, %v1110
  %v1381 = vpack.c.b16 %v1113, %v1112
  %v1382 = vpack.c.b16 %v1115, %v1114
  %v1383 = vpack.c.b16 %v1117, %v1116
  %v1384 = vpack.c.b16 %v1119, %v1118
  %v1385 = vpack.c.b16 %v1121, %v1120
  %v1386 = vpack.c.b16 %v1123, %v1122
  %v1387 = vpack.c.b16 %v1125, %v1124
  %v1388 = vpack.c.b16 %v1127, %v1126
  %v1389 = vpack.c.b16 %v1129, %v1128
  %v1390 = vpack.c.b16 %v1131, %v1130
  %v1391 = vpack.c.b16 %v1133, %v1132
  %v1392 = vpack.c.b16 %v1135, %v1134
  %v1393 = vpack.c.b16 %v1137, %v1136
  %v1394 = vpack.c.b16 %v1139, %v1138
  %v1395 = vpack.c.b16 %v1141, %v1140
  %v1396 = vpack.c.b16 %v1143, %v1142
  %v1397 = vpack.c.b16 %v1145, %v1144
  %v1398 = vpack.c.b16 %v1147, %v1146
  %v1399 = vpack.c.b16 %v1149, %v1148
  %v1400 = vpack.c.b16 %v1151, %v1150
  %v1401 = vpack.c.b16 %v1153, %v1152
  %v1402 = vpack.c.b16 %v1155, %v1154
  %v1403 = vpack.c.b16 %v1157, %v1156
  %v1404 = vpack.c.b16 %v1159, %v1158
  %v1405 = vpack.c.b16 %v1161, %v1160
  %v1406 = vpack.c.b16 %v1163, %v1162
  %v1407 = vpack.c.b16 %v1165, %v1164
  %v1408 = vpack.c.b16 %v1167, %v1166
  %v1409 = vpack.c.b16 %v1169, %v1168
  %v1410 = vpack.c.b16 %v1171, %v1170
  %v1411 = vpack.c.b16 %v1173, %v1172
  %v1412 = vpack.c.b16 %v1175, %v1174
  %v1413 = vpack.c.b16 %v1177, %v1176
  %v1414 = vpack.c.b16 %v1179, %v1178
  %v1415 = vpack.c.b16 %v1181, %v1180
  %v1416 = vpack.c.b16 %v1183, %v1182
  %v1417 = vpack.c.b16 %v1185, %v1184
  %v1418 = vpack.c.b16 %v1187, %v1186
  %v1419 = vpack.c.b16 %v1189, %v1188
  %v1420 = vpack.c.b16 %v1191, %v1190
  %v1421 = vpack.c.b16 %v1193, %v1192
  %v1422 = vpack.c.b16 %v1195, %v1194
  %v1423 = vpack.c.b16 %v1197, %v1196
  %v1424 = vpack.c.b16 %v1199, %v1198
  %v1425 = vpack.c.b16 %v1201, %v1200
  %v1426 = vpack.c.b16 %v1203, %v1202
  %v1427 = vpack.c.b16 %v1205, %v1204
  %v1428 = vpack.c.b16 %v1207, %v1206
  %v1429 = vpack.c.b16 %v1209, %v1208
  %v1430 = vpack.c.b16 %v1211, %v1210
  %v1431 = vpack.c.b16 %v1213, %v1212
  %v1432 = vpack.c.b16 %v1215, %v1214
  %v1433 = vpack.c.b16 %v1217, %v1216
  %v1434 = vpack.c.b16 %v1219, %v1218
  %v1435 = vpack.c.b16 %v1221, %v1220
  %v1436 = vpack.c.b16 %v1223, %v1222
  %v1437 = vpack.c.b16 %v1225, %v1224
  %v1438 = vpack.c.b16 %v1227, %v1226
  %v1439 = vpack.c.b16 %v1229, %v1228
  %v1440 = vpack.c.b16 %v1231, %v1230
  %v1441 = vpack.c.b16 %v1233, %v1232
  %v1442 = vpack.c.b16 %v1235, %v1234
  %v1443 = vpack.c.b16 %v1237, %v1236
  %v1444 = vpack.c.b16 %v1239, %v1238
  %v1445 = vpack.c.b16 %v1241, %v1240
  %v1446 = vpack.c.b16 %v1243, %v1242
  %v1447 = vpack.c.b16 %v1245, %v1244
  %v1448 = vpack.c.b16 %v1247, %v1246
  %v1449 = vpack.c.b16 %v1249, %v1248
  %v1450 = vpack.c.b16 %v1251, %v1250
  %v1451 = vpack.c.b16 %v1253, %v1252
  %v1452 = vpack.c.b16 %v1255, %v1254
  %v1453 = vpack.c.b16 %v1257, %v1256
  %v1454 = vpack.c.b16 %v1259, %v1258
  %v1455 = vpack.c.b16 %v1261, %v1260
  %v1456 = vpack.c.b16 %v1263, %v1262
  %v1457 = vpack.c.b16 %v1265, %v1264
  %1650 = vmatpush.bf16.msra.mxu0 %v1273
  %1651 = vmatpush.bf16.msra.mxu0 %v1272
  %1652 = vmatpush.bf16.msra.mxu0 %v1271
  %1653 = vmatpush.bf16.msra.mxu0 %v1270
  %1654 = vmatpush.bf16.msra.mxu0 %v1269
  %1655 = vmatpush.bf16.msra.mxu0 %v1268
  %1656 = vmatpush.bf16.msra.mxu0 %v1267
  %1657 = vmatpush.bf16.msra.mxu0 %v1266
  %1658 = vmatmul.bf16.gmra.mxu0 %v450
  %v1659 = vpop.f32.mrf.mxu0
  %v1660 = vadd.f32 %v412, %v1659
  %v1661 = vpop.f32.mrf.mxu0
  %1662 = vdwg.mxu0
  %1663 = vmatpush.bf16.msra.mxu0 %v1281
  %1664 = vmatpush.bf16.msra.mxu0 %v1280
  %1665 = vmatpush.bf16.msra.mxu0 %v1279
  %1666 = vmatpush.bf16.msra.mxu0 %v1278
  %1667 = vmatpush.bf16.msra.mxu0 %v1277
  %1668 = vmatpush.bf16.msra.mxu0 %v1276
  %1669 = vmatpush.bf16.msra.mxu0 %v1275
  %1670 = vmatpush.bf16.msra.mxu0 %v1274
  %1671 = vmatmul.bf16.gmra.mxu0 %v451
  %v1672 = vpop.f32.mrf.mxu0
  %v1673 = vadd.f32 %v1660, %v1672
  %v1674 = vpop.f32.mrf.mxu0
  %1675 = vdwg.mxu0
  %1676 = vmatpush.bf16.msra.mxu0 %v1289
  %1677 = vmatpush.bf16.msra.mxu0 %v1288
  %1678 = vmatpush.bf16.msra.mxu0 %v1287
  %1679 = vmatpush.bf16.msra.mxu0 %v1286
  %1680 = vmatpush.bf16.msra.mxu0 %v1285
  %1681 = vmatpush.bf16.msra.mxu0 %v1284
  %1682 = vmatpush.bf16.msra.mxu0 %v1283
  %1683 = vmatpush.bf16.msra.mxu0 %v1282
  %1684 = vmatmul.bf16.gmra.mxu0 %v452
  %v1685 = vpop.f32.mrf.mxu0
  %v1686 = vadd.f32 %v1673, %v1685
  %v1687 = vpop.f32.mrf.mxu0
  %1688 = vdwg.mxu0
  %1689 = vmatpush.bf16.msra.mxu0 %v1297
  %1690 = vmatpush.bf16.msra.mxu0 %v1296
  %1691 = vmatpush.bf16.msra.mxu0 %v1295
  %1692 = vmatpush.bf16.msra.mxu0 %v1294
  %1693 = vmatpush.bf16.msra.mxu0 %v1293
  %1694 = vmatpush.bf16.msra.mxu0 %v1292
  %1695 = vmatpush.bf16.msra.mxu0 %v1291
  %1696 = vmatpush.bf16.msra.mxu0 %v1290
  %1697 = vmatmul.bf16.gmra.mxu0 %v453
  %v1698 = vpop.f32.mrf.mxu0
  %v1699 = vadd.f32 %v1686, %v1698
  %v1700 = vpop.f32.mrf.mxu0
  %1701 = vdwg.mxu0
  %1702 = vmatpush.bf16.msra.mxu0 %v1305
  %1703 = vmatpush.bf16.msra.mxu0 %v1304
  %1704 = vmatpush.bf16.msra.mxu0 %v1303
  %1705 = vmatpush.bf16.msra.mxu0 %v1302
  %1706 = vmatpush.bf16.msra.mxu0 %v1301
  %1707 = vmatpush.bf16.msra.mxu0 %v1300
  %1708 = vmatpush.bf16.msra.mxu0 %v1299
  %1709 = vmatpush.bf16.msra.mxu0 %v1298
  %1710 = vmatmul.bf16.gmra.mxu0 %v454
  %v1711 = vpop.f32.mrf.mxu0
  %v1712 = vadd.f32 %v1699, %v1711
  %v1713 = vpop.f32.mrf.mxu0
  %1714 = vdwg.mxu0
  %1715 = vmatpush.bf16.msra.mxu0 %v1313
  %1716 = vmatpush.bf16.msra.mxu0 %v1312
  %1717 = vmatpush.bf16.msra.mxu0 %v1311
  %1718 = vmatpush.bf16.msra.mxu0 %v1310
  %1719 = vmatpush.bf16.msra.mxu0 %v1309
  %1720 = vmatpush.bf16.msra.mxu0 %v1308
  %1721 = vmatpush.bf16.msra.mxu0 %v1307
  %1722 = vmatpush.bf16.msra.mxu0 %v1306
  %1723 = vmatmul.bf16.gmra.mxu0 %v455
  %v1724 = vpop.f32.mrf.mxu0
  %v1725 = vadd.f32 %v1712, %v1724
  %v1726 = vpop.f32.mrf.mxu0
  %1727 = vdwg.mxu0
  %1728 = vmatpush.bf16.msra.mxu0 %v1321
  %1729 = vmatpush.bf16.msra.mxu0 %v1320
  %1730 = vmatpush.bf16.msra.mxu0 %v1319
  %1731 = vmatpush.bf16.msra.mxu0 %v1318
  %1732 = vmatpush.bf16.msra.mxu0 %v1317
  %1733 = vmatpush.bf16.msra.mxu0 %v1316
  %1734 = vmatpush.bf16.msra.mxu0 %v1315
  %1735 = vmatpush.bf16.msra.mxu0 %v1314
  %1736 = vmatmul.bf16.gmra.mxu0 %v456
  %v1737 = vpop.f32.mrf.mxu0
  %v1738 = vadd.f32 %v1725, %v1737
  %v1739 = vpop.f32.mrf.mxu0
  %1740 = vdwg.mxu0
  %1741 = vmatpush.bf16.msra.mxu0 %v1329
  %1742 = vmatpush.bf16.msra.mxu0 %v1328
  %1743 = vmatpush.bf16.msra.mxu0 %v1327
  %1744 = vmatpush.bf16.msra.mxu0 %v1326
  %1745 = vmatpush.bf16.msra.mxu0 %v1325
  %1746 = vmatpush.bf16.msra.mxu0 %v1324
  %1747 = vmatpush.bf16.msra.mxu0 %v1323
  %1748 = vmatpush.bf16.msra.mxu0 %v1322
  %1749 = vmatmul.bf16.gmra.mxu0 %v457
  %v1750 = vpop.f32.mrf.mxu0
  %v1751 = vadd.f32 %v1738, %v1750
  %v1752 = vpop.f32.mrf.mxu0
  %1753 = vdwg.mxu0
  %1754 = vmatpush.bf16.msra.mxu0 %v1337
  %1755 = vmatpush.bf16.msra.mxu0 %v1336
  %1756 = vmatpush.bf16.msra.mxu0 %v1335
  %1757 = vmatpush.bf16.msra.mxu0 %v1334
  %1758 = vmatpush.bf16.msra.mxu0 %v1333
  %1759 = vmatpush.bf16.msra.mxu0 %v1332
  %1760 = vmatpush.bf16.msra.mxu0 %v1331
  %1761 = vmatpush.bf16.msra.mxu0 %v1330
  %1762 = vmatmul.bf16.gmra.mxu0 %v458
  %v1763 = vpop.f32.mrf.mxu0
  %v1764 = vadd.f32 %v1751, %v1763
  %v1765 = vpop.f32.mrf.mxu0
  %1766 = vdwg.mxu0
  %1767 = vmatpush.bf16.msra.mxu0 %v1345
  %1768 = vmatpush.bf16.msra.mxu0 %v1344
  %1769 = vmatpush.bf16.msra.mxu0 %v1343
  %1770 = vmatpush.bf16.msra.mxu0 %v1342
  %1771 = vmatpush.bf16.msra.mxu0 %v1341
  %1772 = vmatpush.bf16.msra.mxu0 %v1340
  %1773 = vmatpush.bf16.msra.mxu0 %v1339
  %1774 = vmatpush.bf16.msra.mxu0 %v1338
  %1775 = vmatmul.bf16.gmra.mxu0 %v459
  %v1776 = vpop.f32.mrf.mxu0
  %v1777 = vadd.f32 %v1764, %v1776
  %v1778 = vpop.f32.mrf.mxu0
  %1779 = vdwg.mxu0
  %1780 = vmatpush.bf16.msra.mxu0 %v1353
  %1781 = vmatpush.bf16.msra.mxu0 %v1352
  %1782 = vmatpush.bf16.msra.mxu0 %v1351
  %1783 = vmatpush.bf16.msra.mxu0 %v1350
  %1784 = vmatpush.bf16.msra.mxu0 %v1349
  %1785 = vmatpush.bf16.msra.mxu0 %v1348
  %1786 = vmatpush.bf16.msra.mxu0 %v1347
  %1787 = vmatpush.bf16.msra.mxu0 %v1346
  %1788 = vmatmul.bf16.gmra.mxu0 %v460
  %v1789 = vpop.f32.mrf.mxu0
  %v1790 = vadd.f32 %v1777, %v1789
  %v1791 = vpop.f32.mrf.mxu0
  %1792 = vdwg.mxu0
  %1793 = vmatpush.bf16.msra.mxu0 %v1361
  %1794 = vmatpush.bf16.msra.mxu0 %v1360
  %1795 = vmatpush.bf16.msra.mxu0 %v1359
  %1796 = vmatpush.bf16.msra.mxu0 %v1358
  %1797 = vmatpush.bf16.msra.mxu0 %v1357
  %1798 = vmatpush.bf16.msra.mxu0 %v1356
  %1799 = vmatpush.bf16.msra.mxu0 %v1355
  %1800 = vmatpush.bf16.msra.mxu0 %v1354
  %1801 = vmatmul.bf16.gmra.mxu0 %v461
  %v1802 = vpop.f32.mrf.mxu0
  %v1803 = vadd.f32 %v1790, %v1802
  %v1804 = vpop.f32.mrf.mxu0
  %1805 = vdwg.mxu0
  %1806 = vmatpush.bf16.msra.mxu0 %v1369
  %1807 = vmatpush.bf16.msra.mxu0 %v1368
  %1808 = vmatpush.bf16.msra.mxu0 %v1367
  %1809 = vmatpush.bf16.msra.mxu0 %v1366
  %1810 = vmatpush.bf16.msra.mxu0 %v1365
  %1811 = vmatpush.bf16.msra.mxu0 %v1364
  %1812 = vmatpush.bf16.msra.mxu0 %v1363
  %1813 = vmatpush.bf16.msra.mxu0 %v1362
  %1814 = vmatmul.bf16.gmra.mxu0 %v462
  %v1815 = vpop.f32.mrf.mxu0
  %v1816 = vadd.f32 %v1803, %v1815
  %v1817 = vpop.f32.mrf.mxu0
  %1818 = vdwg.mxu0
  %1819 = vmatpush.bf16.msra.mxu0 %v1377
  %1820 = vmatpush.bf16.msra.mxu0 %v1376
  %1821 = vmatpush.bf16.msra.mxu0 %v1375
  %1822 = vmatpush.bf16.msra.mxu0 %v1374
  %1823 = vmatpush.bf16.msra.mxu0 %v1373
  %1824 = vmatpush.bf16.msra.mxu0 %v1372
  %1825 = vmatpush.bf16.msra.mxu0 %v1371
  %1826 = vmatpush.bf16.msra.mxu0 %v1370
  %1827 = vmatmul.bf16.gmra.mxu0 %v463
  %v1828 = vpop.f32.mrf.mxu0
  %v1829 = vadd.f32 %v1816, %v1828
  %v1830 = vpop.f32.mrf.mxu0
  %1831 = vdwg.mxu0
  %1832 = vmatpush.bf16.msra.mxu0 %v1385
  %1833 = vmatpush.bf16.msra.mxu0 %v1384
  %1834 = vmatpush.bf16.msra.mxu0 %v1383
  %1835 = vmatpush.bf16.msra.mxu0 %v1382
  %1836 = vmatpush.bf16.msra.mxu0 %v1381
  %1837 = vmatpush.bf16.msra.mxu0 %v1380
  %1838 = vmatpush.bf16.msra.mxu0 %v1379
  %1839 = vmatpush.bf16.msra.mxu0 %v1378
  %1840 = vmatmul.bf16.gmra.mxu0 %v464
  %v1841 = vpop.f32.mrf.mxu0
  %v1842 = vadd.f32 %v1829, %v1841
  %v1843 = vpop.f32.mrf.mxu0
  %1844 = vdwg.mxu0
  %1845 = vmatpush.bf16.msra.mxu0 %v1393
  %1846 = vmatpush.bf16.msra.mxu0 %v1392
  %1847 = vmatpush.bf16.msra.mxu0 %v1391
  %1848 = vmatpush.bf16.msra.mxu0 %v1390
  %1849 = vmatpush.bf16.msra.mxu0 %v1389
  %1850 = vmatpush.bf16.msra.mxu0 %v1388
  %1851 = vmatpush.bf16.msra.mxu0 %v1387
  %1852 = vmatpush.bf16.msra.mxu0 %v1386
  %1853 = vmatmul.bf16.gmra.mxu0 %v465
  %v1854 = vpop.f32.mrf.mxu0
  %v1855 = vadd.f32 %v1842, %v1854
  %v1856 = vpop.f32.mrf.mxu0
  %1857 = vdwg.mxu0
  %1858 = vmatpush.bf16.msra.mxu0 %v1401
  %1859 = vmatpush.bf16.msra.mxu0 %v1400
  %1860 = vmatpush.bf16.msra.mxu0 %v1399
  %1861 = vmatpush.bf16.msra.mxu0 %v1398
  %1862 = vmatpush.bf16.msra.mxu0 %v1397
  %1863 = vmatpush.bf16.msra.mxu0 %v1396
  %1864 = vmatpush.bf16.msra.mxu0 %v1395
  %1865 = vmatpush.bf16.msra.mxu0 %v1394
  %1866 = vmatmul.bf16.gmra.mxu0 %v466
  %v1867 = vpop.f32.mrf.mxu0
  %v1868 = vadd.f32 %v1855, %v1867
  %v1869 = vpop.f32.mrf.mxu0
  %1870 = vdwg.mxu0
  %1871 = vmatpush.bf16.msra.mxu0 %v1409
  %1872 = vmatpush.bf16.msra.mxu0 %v1408
  %1873 = vmatpush.bf16.msra.mxu0 %v1407
  %1874 = vmatpush.bf16.msra.mxu0 %v1406
  %1875 = vmatpush.bf16.msra.mxu0 %v1405
  %1876 = vmatpush.bf16.msra.mxu0 %v1404
  %1877 = vmatpush.bf16.msra.mxu0 %v1403
  %1878 = vmatpush.bf16.msra.mxu0 %v1402
  %1879 = vmatmul.bf16.gmra.mxu0 %v467
  %v1880 = vpop.f32.mrf.mxu0
  %v1881 = vadd.f32 %v1868, %v1880
  %v1882 = vpop.f32.mrf.mxu0
  %1883 = vdwg.mxu0
  %1884 = vmatpush.bf16.msra.mxu0 %v1417
  %1885 = vmatpush.bf16.msra.mxu0 %v1416
  %1886 = vmatpush.bf16.msra.mxu0 %v1415
  %1887 = vmatpush.bf16.msra.mxu0 %v1414
  %1888 = vmatpush.bf16.msra.mxu0 %v1413
  %1889 = vmatpush.bf16.msra.mxu0 %v1412
  %1890 = vmatpush.bf16.msra.mxu0 %v1411
  %1891 = vmatpush.bf16.msra.mxu0 %v1410
  %1892 = vmatmul.bf16.gmra.mxu0 %v468
  %v1893 = vpop.f32.mrf.mxu0
  %v1894 = vadd.f32 %v1881, %v1893
  %v1895 = vpop.f32.mrf.mxu0
  %1896 = vdwg.mxu0
  %1897 = vmatpush.bf16.msra.mxu0 %v1425
  %1898 = vmatpush.bf16.msra.mxu0 %v1424
  %1899 = vmatpush.bf16.msra.mxu0 %v1423
  %1900 = vmatpush.bf16.msra.mxu0 %v1422
  %1901 = vmatpush.bf16.msra.mxu0 %v1421
  %1902 = vmatpush.bf16.msra.mxu0 %v1420
  %1903 = vmatpush.bf16.msra.mxu0 %v1419
  %1904 = vmatpush.bf16.msra.mxu0 %v1418
  %1905 = vmatmul.bf16.gmra.mxu0 %v469
  %v1906 = vpop.f32.mrf.mxu0
  %v1907 = vadd.f32 %v1894, %v1906
  %v1908 = vpop.f32.mrf.mxu0
  %1909 = vdwg.mxu0
  %1910 = vmatpush.bf16.msra.mxu0 %v1433
  %1911 = vmatpush.bf16.msra.mxu0 %v1432
  %1912 = vmatpush.bf16.msra.mxu0 %v1431
  %1913 = vmatpush.bf16.msra.mxu0 %v1430
  %1914 = vmatpush.bf16.msra.mxu0 %v1429
  %1915 = vmatpush.bf16.msra.mxu0 %v1428
  %1916 = vmatpush.bf16.msra.mxu0 %v1427
  %1917 = vmatpush.bf16.msra.mxu0 %v1426
  %1918 = vmatmul.bf16.gmra.mxu0 %v470
  %v1919 = vpop.f32.mrf.mxu0
  %v1920 = vadd.f32 %v1907, %v1919
  %v1921 = vpop.f32.mrf.mxu0
  %1922 = vdwg.mxu0
  %1923 = vmatpush.bf16.msra.mxu0 %v1441
  %1924 = vmatpush.bf16.msra.mxu0 %v1440
  %1925 = vmatpush.bf16.msra.mxu0 %v1439
  %1926 = vmatpush.bf16.msra.mxu0 %v1438
  %1927 = vmatpush.bf16.msra.mxu0 %v1437
  %1928 = vmatpush.bf16.msra.mxu0 %v1436
  %1929 = vmatpush.bf16.msra.mxu0 %v1435
  %1930 = vmatpush.bf16.msra.mxu0 %v1434
  %1931 = vmatmul.bf16.gmra.mxu0 %v471
  %v1932 = vpop.f32.mrf.mxu0
  %v1933 = vadd.f32 %v1920, %v1932
  %v1934 = vpop.f32.mrf.mxu0
  %1935 = vdwg.mxu0
  %1936 = vmatpush.bf16.msra.mxu0 %v1449
  %1937 = vmatpush.bf16.msra.mxu0 %v1448
  %1938 = vmatpush.bf16.msra.mxu0 %v1447
  %1939 = vmatpush.bf16.msra.mxu0 %v1446
  %1940 = vmatpush.bf16.msra.mxu0 %v1445
  %1941 = vmatpush.bf16.msra.mxu0 %v1444
  %1942 = vmatpush.bf16.msra.mxu0 %v1443
  %1943 = vmatpush.bf16.msra.mxu0 %v1442
  %1944 = vmatmul.bf16.gmra.mxu0 %v472
  %v1945 = vpop.f32.mrf.mxu0
  %v1946 = vadd.f32 %v1933, %v1945
  %v1947 = vpop.f32.mrf.mxu0
  %1948 = vdwg.mxu0
  %1949 = vmatpush.bf16.msra.mxu0 %v1457
  %1950 = vmatpush.bf16.msra.mxu0 %v1456
  %1951 = vmatpush.bf16.msra.mxu0 %v1455
  %1952 = vmatpush.bf16.msra.mxu0 %v1454
  %1953 = vmatpush.bf16.msra.mxu0 %v1453
  %1954 = vmatpush.bf16.msra.mxu0 %v1452
  %1955 = vmatpush.bf16.msra.mxu0 %v1451
  %1956 = vmatpush.bf16.msra.mxu0 %v1450
  %1957 = vmatmul.bf16.gmra.mxu0 %v473
  %v1958 = vpop.f32.mrf.mxu0
  %v1959 = vadd.f32 %v1946, %v1958
  %v1960 = vpop.f32.mrf.mxu0
  %1961 = vdwg.mxu0
  %1962 = vst [vmem:[%s3] sm:$0xff] %v1959
  // Predicated region
  $region14: #{vit_b32_forward.14} parent=0 // pred_check
    _
  $region15: #{vit_b32_forward.14} parent=0 // pred_check_branch
    %1964 = sbr.rel (0) target = $region17
  $region16: #{vit_b32_forward.14} parent=0 // pred_region
    _
  $region17: #{vit_b32_forward.14} parent=0 // pred_fallthru
    _
  // Predicated region
  $region18: #{vit_b32_forward.14} parent=0 // pred_check
    _
  $region19: #{vit_b32_forward.14} parent=0 // pred_check_branch
    %1966 = sbr.rel (0) target = $region21
  $region20: #{vit_b32_forward.14} parent=0 // pred_region
    _
  $region21: #{vit_b32_forward.14} parent=0 // pred_fallthru
    _

// kernel: vit_b32_forward.25
$region0: #{vit_b32_forward.25}
  #allocation0 [shape = 'u32[]', space=smem, size = 0x4, offset = 0x4, fixed_abs, tag = 'smem constant byte address 0x4 - core index']
  #allocation1 [shape = 'u32[72,128]{1,0:T(1,128)}', space=vmem, size = 0x9000, scoped, tag = 'internal scratch']
  %s0 = inlined_call_operand.vmem [shape: f32[2,128], index: 0, kind: input, shape index: {}]
  %s1 = inlined_call_operand.vmem [shape: f32[1,128], index: 1, kind: input, shape index: {}]
  %s2 = inlined_call_operand.vmem [shape: f32[1,128], index: 2, kind: input, shape index: {}]
  %s3 = inlined_call_operand.vmem [shape: f32[2,128], index: 3, kind: output, shape index: {}]
  %s4 = sld [smem:[#allocation0]]
  $region22: #{vit_b32_forward.25} parent=0
    _
  %s6 = ssub.s32 1, %s4
  %s7 = scalar_select 0, %s6, %s4
  // Predicated region
  $region2: #{vit_b32_forward.25} parent=0 // pred_check
    _
  $region3: #{vit_b32_forward.25} parent=0 // pred_check_branch
    %9 = sbr.rel (0) target = $region5
  $region4: #{vit_b32_forward.25} parent=0 // pred_region
    _
  $region5: #{vit_b32_forward.25} parent=0 // pred_fallthru
    _
  // Predicated region
  $region6: #{vit_b32_forward.25} parent=0 // pred_check
    _
  $region7: #{vit_b32_forward.25} parent=0 // pred_check_branch
    %11 = sbr.rel (0) target = $region9
  $region8: #{vit_b32_forward.25} parent=0 // pred_region
    _
  $region9: #{vit_b32_forward.25} parent=0 // pred_fallthru
    _
  // Predicated region
  $region10: #{vit_b32_forward.25} parent=0 // pred_check
    _
  $region11: #{vit_b32_forward.25} parent=0 // pred_check_branch
    %13 = sbr.rel (0) target = $region13
  $region12: #{vit_b32_forward.25} parent=0 // pred_region
    _
  $region13: #{vit_b32_forward.25} parent=0 // pred_fallthru
    _
  %v14 = vld [vmem:[%s0] sm:$0x3]
  %vm15 = vcmask 1041408
  %v16 = vsel %vm15, %v14, 0.0
  %17 = vadd.xlane.f32.xlu0 %v16
  %v18 = vpop.xlane.xlu0 %17
  %v19 = vrcp.pop 128.0
  %v20 = vmul.f32 128.0, %v19
  %v21 = vsub.f32 1.0, %v20
  %v22 = vmul.f32 %v19, %v21
  %v23 = vadd.f32 %v19, %v22
  %vm24 = vweird.f32 %v19
  %v25 = vsel %vm24, %v19, %v23
  %v26 = vmul.f32 %v18, %v25
  %v27 = vsub.f32 %v14, %v26
  %v28 = vmul.f32 %v27, %v27
  %v29 = vsel %vm15, %v28, 0.0
  %30 = vadd.xlane.f32.xlu0 %v29
  %v31 = vpop.xlane.xlu0 %30
  %v32 = vmul.f32 %v31, %v25
  %v33 = vadd.f32 %v32, 1e-06
  %v34 = vrsqrt.pop %v33
  %v35 = vmul.f32 %v34, %v33
  %v36 = vmul.f32 %v35, %v34
  %v37 = vmul.f32 0.5, %v36
  %v38 = vsub.f32 1.5, %v37
  %v39 = vmul.f32 %v34, %v38
  %vm40 = vweird.f32 %v33
  %vm41 = vweird.f32 %v34
  %vm42 = vmor %vm40, %vm41
  %v43 = vsel %vm42, %v34, %v39
  %v44 = vmul.f32 %v27, %v43
  %v45 = vld [vmem:[%s1] sm:$0x1]
  %v47 = vperm.slane %v45, 0
  %v49 = vmul.f32 %v44, %v47
  %v50 = vld [vmem:[%s2] sm:$0x1]
  %v52 = vperm.slane %v50, 0
  %v54 = vadd.f32 %v49, %v52
  %55 = vst [vmem:[%s3] sm:$0x3] %v54
  // Predicated region
  $region14: #{vit_b32_forward.25} parent=0 // pred_check
    _
  $region15: #{vit_b32_forward.25} parent=0 // pred_check_branch
    %57 = sbr.rel (0) target = $region17
  $region16: #{vit_b32_forward.25} parent=0 // pred_region
    _
  $region17: #{vit_b32_forward.25} parent=0 // pred_fallthru
    _
  // Predicated region
  $region18: #{vit_b32_forward.25} parent=0 // pred_check
    _
  $region19: #{vit_b32_forward.25} parent=0 // pred_check_branch
    %59 = sbr.rel (0) target = $region21
  $region20: #{vit_b32_forward.25} parent=0 // pred_region
    _
  $region21: #{vit_b32_forward.25} parent=0 // pred_fallthru
    _

// kernel: vit_b32_forward.19
$region0: #{vit_b32_forward.19}
  #allocation0 [shape = 'u32[]', space=smem, size = 0x4, offset = 0x4, fixed_abs, tag = 'smem constant byte address 0x4 - core index']
  #allocation1 [shape = 'u32[72,128]{1,0:T(1,128)}', space=vmem, size = 0x9000, scoped, tag = 'internal scratch']
  %s0 = inlined_call_operand.vmem [shape: bf16[10,256], index: 0, kind: input, shape index: {}]
  %s1 = inlined_call_operand.vmem [shape: bf16[256,128], index: 1, kind: input, shape index: {}]
  %s2 = inlined_call_operand.vmem [shape: f32[1,128], index: 2, kind: input, shape index: {}]
  %s3 = inlined_call_operand.vmem [shape: f32[10,128], index: 3, kind: input, shape index: {}]
  %s4 = inlined_call_operand.vmem [shape: f32[10,128], index: 4, kind: output, shape index: {}]
  %s5 = sld [smem:[#allocation0]]
  $region26: #{vit_b32_forward.19} parent=0
    _
  %s7 = ssub.s32 1, %s5
  %s8 = scalar_select 0, %s7, %s5
  // Predicated region
  $region2: #{vit_b32_forward.19} parent=0 // pred_check
    _
  $region3: #{vit_b32_forward.19} parent=0 // pred_check_branch
    %10 = sbr.rel (0) target = $region5
  $region4: #{vit_b32_forward.19} parent=0 // pred_region
    _
  $region5: #{vit_b32_forward.19} parent=0 // pred_fallthru
    _
  // Predicated region
  $region6: #{vit_b32_forward.19} parent=0 // pred_check
    _
  $region7: #{vit_b32_forward.19} parent=0 // pred_check_branch
    %12 = sbr.rel (0) target = $region9
  $region8: #{vit_b32_forward.19} parent=0 // pred_region
    _
  $region9: #{vit_b32_forward.19} parent=0 // pred_fallthru
    _
  // Predicated region
  $region10: #{vit_b32_forward.19} parent=0 // pred_check
    _
  $region11: #{vit_b32_forward.19} parent=0 // pred_check_branch
    %14 = sbr.rel (0) target = $region13
  $region12: #{vit_b32_forward.19} parent=0 // pred_region
    _
  $region13: #{vit_b32_forward.19} parent=0 // pred_fallthru
    _
  // Predicated region
  $region14: #{vit_b32_forward.19} parent=0 // pred_check
    _
  $region15: #{vit_b32_forward.19} parent=0 // pred_check_branch
    %16 = sbr.rel (0) target = $region17
  $region16: #{vit_b32_forward.19} parent=0 // pred_region
    _
  $region17: #{vit_b32_forward.19} parent=0 // pred_fallthru
    _
  %v17 = vld [vmem:[%s0] sm:$0xff]
  %v18 = vld [vmem:[%s0 + $0x8] sm:$0x11]
  %v19 = vld [vmem:[%s1] sm:$0xf]
  %v20 = vld [vmem:[%s1 + $0x4] sm:$0xf]
  %v21 = vld [vmem:[%s1 + $0x8] sm:$0xf]
  %v22 = vld [vmem:[%s1 + $0xc] sm:$0xf]
  %v23 = vld [vmem:[%s1 + $0x10] sm:$0xf]
  %v24 = vld [vmem:[%s1 + $0x14] sm:$0xf]
  %v25 = vld [vmem:[%s1 + $0x18] sm:$0xf]
  %v26 = vld [vmem:[%s1 + $0x1c] sm:$0xf]
  %v27 = vld [vmem:[%s1 + $0x20] sm:$0xf]
  %v28 = vld [vmem:[%s1 + $0x24] sm:$0xf]
  %v29 = vld [vmem:[%s1 + $0x28] sm:$0xf]
  %v30 = vld [vmem:[%s1 + $0x2c] sm:$0xf]
  %v31 = vld [vmem:[%s1 + $0x30] sm:$0xf]
  %v32 = vld [vmem:[%s1 + $0x34] sm:$0xf]
  %v33 = vld [vmem:[%s1 + $0x38] sm:$0xf]
  %v34 = vld [vmem:[%s1 + $0x3c] sm:$0xf]
  %v35 = vld [vmem:[%s1 + $0x40] sm:$0xf]
  %v36 = vld [vmem:[%s1 + $0x44] sm:$0xf]
  %v37 = vld [vmem:[%s1 + $0x48] sm:$0xf]
  %v38 = vld [vmem:[%s1 + $0x4c] sm:$0xf]
  %v39 = vld [vmem:[%s1 + $0x50] sm:$0xf]
  %v40 = vld [vmem:[%s1 + $0x54] sm:$0xf]
  %v41 = vld [vmem:[%s1 + $0x58] sm:$0xf]
  %v42 = vld [vmem:[%s1 + $0x5c] sm:$0xf]
  %v43 = vld [vmem:[%s1 + $0x60] sm:$0xf]
  %v44 = vld [vmem:[%s1 + $0x64] sm:$0xf]
  %v45 = vld [vmem:[%s1 + $0x68] sm:$0xf]
  %v46 = vld [vmem:[%s1 + $0x6c] sm:$0xf]
  %v47 = vld [vmem:[%s1 + $0x70] sm:$0xf]
  %v48 = vld [vmem:[%s1 + $0x74] sm:$0xf]
  %v49 = vld [vmem:[%s1 + $0x78] sm:$0xf]
  %v50 = vld [vmem:[%s1 + $0x7c] sm:$0xf]
  %v51 = vld [vmem:[%s2] sm:$0x1]
  %v53 = vperm.slane %v51, 0
  %v57 = vunpack.c.l.b16 %v17
  %v58 = vunpack.c.h.b16 %v17
  %v59 = vunpack.c.l.b16 %v18
  %v60 = vunpack.c.h.b16 %v18
  %v61 = vpack.c.b16 %v59, %v57
  %v62 = vpack.c.b16 %v60, %v58
  %v97 = vunpack.c.l.b16 %v19
  %v98 = vunpack.c.l.b16 %v20
  %v99 = vunpack.c.l.b16 %v21
  %v100 = vunpack.c.l.b16 %v22
  %v101 = vunpack.c.l.b16 %v23
  %v102 = vunpack.c.l.b16 %v24
  %v103 = vunpack.c.l.b16 %v25
  %v104 = vunpack.c.l.b16 %v26
  %v105 = vunpack.c.l.b16 %v27
  %v106 = vunpack.c.l.b16 %v28
  %v107 = vunpack.c.l.b16 %v29
  %v108 = vunpack.c.l.b16 %v30
  %v109 = vunpack.c.l.b16 %v31
  %v110 = vunpack.c.l.b16 %v32
  %v111 = vunpack.c.l.b16 %v33
  %v112 = vunpack.c.l.b16 %v34
  %v113 = vunpack.c.l.b16 %v35
  %v114 = vunpack.c.l.b16 %v36
  %v115 = vunpack.c.l.b16 %v37
  %v116 = vunpack.c.l.b16 %v38
  %v117 = vunpack.c.l.b16 %v39
  %v118 = vunpack.c.l.b16 %v40
  %v119 = vunpack.c.l.b16 %v41
  %v120 = vunpack.c.l.b16 %v42
  %v121 = vunpack.c.l.b16 %v43
  %v122 = vunpack.c.l.b16 %v44
  %v123 = vunpack.c.l.b16 %v45
  %v124 = vunpack.c.l.b16 %v46
  %v125 = vunpack.c.l.b16 %v47
  %v126 = vunpack.c.l.b16 %v48
  %v127 = vunpack.c.l.b16 %v49
  %v128 = vunpack.c.l.b16 %v50
  %v129 = vpack.c.b16 %v98, %v97
  %v130 = vpack.c.b16 %v100, %v99
  %v131 = vpack.c.b16 %v102, %v101
  %v132 = vpack.c.b16 %v104, %v103
  %v133 = vpack.c.b16 %v106, %v105
  %v134 = vpack.c.b16 %v108, %v107
  %v135 = vpack.c.b16 %v110, %v109
  %v136 = vpack.c.b16 %v112, %v111
  %v137 = vpack.c.b16 %v114, %v113
  %v138 = vpack.c.b16 %v116, %v115
  %v139 = vpack.c.b16 %v118, %v117
  %v140 = vpack.c.b16 %v120, %v119
  %v141 = vpack.c.b16 %v122, %v121
  %v142 = vpack.c.b16 %v124, %v123
  %v143 = vpack.c.b16 %v126, %v125
  %v144 = vpack.c.b16 %v128, %v127
  %161 = vmatpush.bf16.msra.mxu0 %v136
  %162 = vmatpush.bf16.msra.mxu0 %v135
  %163 = vmatpush.bf16.msra.mxu0 %v134
  %164 = vmatpush.bf16.msra.mxu0 %v133
  %165 = vmatpush.bf16.msra.mxu0 %v132
  %166 = vmatpush.bf16.msra.mxu0 %v131
  %167 = vmatpush.bf16.msra.mxu0 %v130
  %168 = vmatpush.bf16.msra.mxu0 %v129
  %169 = vmatmul.bf16.gmra.mxu0 %v61
  %v170 = vpop.f32.mrf.mxu0
  %v171 = vadd.f32 %v53, %v170
  %v172 = vpop.f32.mrf.mxu0
  %v173 = vadd.f32 %v53, %v172
  %174 = vdwg.mxu0
  %175 = vmatpush.bf16.msra.mxu0 %v144
  %176 = vmatpush.bf16.msra.mxu0 %v143
  %177 = vmatpush.bf16.msra.mxu0 %v142
  %178 = vmatpush.bf16.msra.mxu0 %v141
  %179 = vmatpush.bf16.msra.mxu0 %v140
  %180 = vmatpush.bf16.msra.mxu0 %v139
  %181 = vmatpush.bf16.msra.mxu0 %v138
  %182 = vmatpush.bf16.msra.mxu0 %v137
  %183 = vmatmul.bf16.gmra.mxu0 %v62
  %v184 = vpop.f32.mrf.mxu0
  %v185 = vadd.f32 %v171, %v184
  %v186 = vpop.f32.mrf.mxu0
  %v187 = vadd.f32 %v173, %v186
  %188 = vdwg.mxu0
  %v189 = vld [vmem:[%s3] sm:$0xff]
  %v190 = vld [vmem:[%s3 + $0x8] sm:$0x3]
  %v191 = vadd.f32 %v185, %v189
  %v192 = vadd.f32 %v187, %v190
  %193 = vst [vmem:[%s4] sm:$0xff] %v191
  %194 = vst [vmem:[%s4 + $0x8] sm:$0x3] %v192
  // Predicated region
  $region18: #{vit_b32_forward.19} parent=0 // pred_check
    _
  $region19: #{vit_b32_forward.19} parent=0 // pred_check_branch
    %196 = sbr.rel (0) target = $region21
  $region20: #{vit_b32_forward.19} parent=0 // pred_region
    _
  $region21: #{vit_b32_forward.19} parent=0 // pred_fallthru
    _
  // Predicated region
  $region22: #{vit_b32_forward.19} parent=0 // pred_check
    _
  $region23: #{vit_b32_forward.19} parent=0 // pred_check_branch
    %198 = sbr.rel (0) target = $region25
  $region24: #{vit_b32_forward.19} parent=0 // pred_region
    _
  $region25: #{vit_b32_forward.19} parent=0 // pred_fallthru
    _

// kernel: vit_b32_forward.26
$region0: #{vit_b32_forward.26}
  #allocation0 [shape = 'u32[]', space=smem, size = 0x4, offset = 0x4, fixed_abs, tag = 'smem constant byte address 0x4 - core index']
  #allocation1 [shape = 'u32[72,128]{1,0:T(1,128)}', space=vmem, size = 0x9000, scoped, tag = 'internal scratch']
  %s0 = inlined_call_operand.vmem [shape: f32[2,128], index: 0, kind: input, shape index: {}]
  %s1 = inlined_call_operand.vmem [shape: f32[1,128], index: 1, kind: input, shape index: {}]
  %s2 = inlined_call_operand.vmem [shape: f32[1,128], index: 2, kind: input, shape index: {}]
  %s3 = inlined_call_operand.vmem [shape: bf16[128,64], index: 3, kind: input, shape index: {}]
  %s4 = inlined_call_operand.vmem [shape: f32[1,64], index: 4, kind: input, shape index: {}]
  %s5 = inlined_call_operand.vmem [shape: f32[2,64], index: 5, kind: output, shape index: {}]
  %s6 = sld [smem:[#allocation0]]
  $region30: #{vit_b32_forward.26} parent=0
    _
  %s8 = ssub.s32 1, %s6
  %s9 = scalar_select 0, %s8, %s6
  // Predicated region
  $region2: #{vit_b32_forward.26} parent=0 // pred_check
    _
  $region3: #{vit_b32_forward.26} parent=0 // pred_check_branch
    %11 = sbr.rel (0) target = $region5
  $region4: #{vit_b32_forward.26} parent=0 // pred_region
    _
  $region5: #{vit_b32_forward.26} parent=0 // pred_fallthru
    _
  // Predicated region
  $region6: #{vit_b32_forward.26} parent=0 // pred_check
    _
  $region7: #{vit_b32_forward.26} parent=0 // pred_check_branch
    %13 = sbr.rel (0) target = $region9
  $region8: #{vit_b32_forward.26} parent=0 // pred_region
    _
  $region9: #{vit_b32_forward.26} parent=0 // pred_fallthru
    _
  // Predicated region
  $region10: #{vit_b32_forward.26} parent=0 // pred_check
    _
  $region11: #{vit_b32_forward.26} parent=0 // pred_check_branch
    %15 = sbr.rel (0) target = $region13
  $region12: #{vit_b32_forward.26} parent=0 // pred_region
    _
  $region13: #{vit_b32_forward.26} parent=0 // pred_fallthru
    _
  // Predicated region
  $region14: #{vit_b32_forward.26} parent=0 // pred_check
    _
  $region15: #{vit_b32_forward.26} parent=0 // pred_check_branch
    %17 = sbr.rel (0) target = $region17
  $region16: #{vit_b32_forward.26} parent=0 // pred_region
    _
  $region17: #{vit_b32_forward.26} parent=0 // pred_fallthru
    _
  // Predicated region
  $region18: #{vit_b32_forward.26} parent=0 // pred_check
    _
  $region19: #{vit_b32_forward.26} parent=0 // pred_check_branch
    %19 = sbr.rel (0) target = $region21
  $region20: #{vit_b32_forward.26} parent=0 // pred_region
    _
  $region21: #{vit_b32_forward.26} parent=0 // pred_fallthru
    _
  %v20 = vld [vmem:[%s0] sm:$0x3]
  %vm21 = vcmask 1041408
  %v22 = vsel %vm21, %v20, 0.0
  %23 = vadd.xlane.f32.xlu0 %v22
  %v24 = vpop.xlane.xlu0 %23
  %v25 = vrcp.pop 128.0
  %v26 = vmul.f32 128.0, %v25
  %v27 = vsub.f32 1.0, %v26
  %v28 = vmul.f32 %v25, %v27
  %v29 = vadd.f32 %v25, %v28
  %vm30 = vweird.f32 %v25
  %v31 = vsel %vm30, %v25, %v29
  %v32 = vmul.f32 %v24, %v31
  %v33 = vsub.f32 %v20, %v32
  %v34 = vmul.f32 %v33, %v33
  %v35 = vsel %vm21, %v34, 0.0
  %36 = vadd.xlane.f32.xlu0 %v35
  %v37 = vpop.xlane.xlu0 %36
  %v38 = vmul.f32 %v37, %v31
  %v39 = vadd.f32 %v38, 1e-05
  %v40 = vrsqrt.pop %v39
  %v41 = vmul.f32 %v40, %v39
  %v42 = vmul.f32 %v41, %v40
  %v43 = vmul.f32 0.5, %v42
  %v44 = vsub.f32 1.5, %v43
  %v45 = vmul.f32 %v40, %v44
  %vm46 = vweird.f32 %v39
  %vm47 = vweird.f32 %v40
  %vm48 = vmor %vm46, %vm47
  %v49 = vsel %vm48, %v40, %v45
  %v50 = vmul.f32 %v33, %v49
  %v51 = vld [vmem:[%s1] sm:$0x1]
  %v53 = vperm.slane %v51, 0
  %v55 = vmul.f32 %v50, %v53
  %v56 = vld [vmem:[%s2] sm:$0x1]
  %v58 = vperm.slane %v56, 0
  %v60 = vadd.f32 %v55, %v58
  %v61 = vpack.c.bf16 %v60, %v60
  %v62 = vld [vmem:[%s3] sm:$0xf]
  %v63 = vld [vmem:[%s3 + $0x4] sm:$0xf]
  %v64 = vld [vmem:[%s3 + $0x8] sm:$0xf]
  %v65 = vld [vmem:[%s3 + $0xc] sm:$0xf]
  %v66 = vld [vmem:[%s3 + $0x10] sm:$0xf]
  %v67 = vld [vmem:[%s3 + $0x14] sm:$0xf]
  %v68 = vld [vmem:[%s3 + $0x18] sm:$0xf]
  %v69 = vld [vmem:[%s3 + $0x1c] sm:$0xf]
  %v70 = vld [vmem:[%s3 + $0x20] sm:$0xf]
  %v71 = vld [vmem:[%s3 + $0x24] sm:$0xf]
  %v72 = vld [vmem:[%s3 + $0x28] sm:$0xf]
  %v73 = vld [vmem:[%s3 + $0x2c] sm:$0xf]
  %v74 = vld [vmem:[%s3 + $0x30] sm:$0xf]
  %v75 = vld [vmem:[%s3 + $0x34] sm:$0xf]
  %v76 = vld [vmem:[%s3 + $0x38] sm:$0xf]
  %v77 = vld [vmem:[%s3 + $0x3c] sm:$0xf]
  %v78 = vld [vmem:[%s4] sm:$0x1]
  %v80 = vperm.slane %v78, 0
  %v98 = vunpack.c.l.b16 %v62
  %v99 = vunpack.c.l.b16 %v63
  %v100 = vunpack.c.l.b16 %v64
  %v101 = vunpack.c.l.b16 %v65
  %v102 = vunpack.c.l.b16 %v66
  %v103 = vunpack.c.l.b16 %v67
  %v104 = vunpack.c.l.b16 %v68
  %v105 = vunpack.c.l.b16 %v69
  %v106 = vunpack.c.l.b16 %v70
  %v107 = vunpack.c.l.b16 %v71
  %v108 = vunpack.c.l.b16 %v72
  %v109 = vunpack.c.l.b16 %v73
  %v110 = vunpack.c.l.b16 %v74
  %v111 = vunpack.c.l.b16 %v75
  %v112 = vunpack.c.l.b16 %v76
  %v113 = vunpack.c.l.b16 %v77
  %v114 = vpack.c.b16 %v99, %v98
  %v115 = vpack.c.b16 %v101, %v100
  %v116 = vpack.c.b16 %v103, %v102
  %v117 = vpack.c.b16 %v105, %v104
  %v118 = vpack.c.b16 %v107, %v106
  %v119 = vpack.c.b16 %v109, %v108
  %v120 = vpack.c.b16 %v111, %v110
  %v121 = vpack.c.b16 %v113, %v112
  %130 = vmatpush.bf16.msra.mxu0 %v121
  %131 = vmatpush.bf16.msra.mxu0 %v120
  %132 = vmatpush.bf16.msra.mxu0 %v119
  %133 = vmatpush.bf16.msra.mxu0 %v118
  %134 = vmatpush.bf16.msra.mxu0 %v117
  %135 = vmatpush.bf16.msra.mxu0 %v116
  %136 = vmatpush.bf16.msra.mxu0 %v115
  %137 = vmatpush.bf16.msra.mxu0 %v114
  %138 = vmatmul.bf16.gmra.mxu0 %v61
  %v139 = vpop.f32.mrf.mxu0
  %v140 = vadd.f32 %v80, %v139
  %v141 = vpop.f32.mrf.mxu0
  %142 = vdwg.mxu0
  %vm143 = vcmask 517120
  %144 = vst.msk [vmem:[%s5] sm:$0x3] %vm143, %v140
  // Predicated region
  $region22: #{vit_b32_forward.26} parent=0 // pred_check
    _
  $region23: #{vit_b32_forward.26} parent=0 // pred_check_branch
    %146 = sbr.rel (0) target = $region25
  $region24: #{vit_b32_forward.26} parent=0 // pred_region
    _
  $region25: #{vit_b32_forward.26} parent=0 // pred_fallthru
    _
  // Predicated region
  $region26: #{vit_b32_forward.26} parent=0 // pred_check
    _
  $region27: #{vit_b32_forward.26} parent=0 // pred_check_branch
    %148 = sbr.rel (0) target = $region29
  $region28: #{vit_b32_forward.26} parent=0 // pred_region
    _
  $region29: #{vit_b32_forward.26} parent=0 // pred_fallthru
    _

// kernel: vit_b32_forward.27
$region0: #{vit_b32_forward.27}
  #allocation0 [shape = 'u32[]', space=smem, size = 0x4, offset = 0x4, fixed_abs, tag = 'smem constant byte address 0x4 - core index']
  #allocation1 [shape = 'u32[72,128]{1,0:T(1,128)}', space=vmem, size = 0x9000, scoped, tag = 'internal scratch']
  %s0 = inlined_call_operand.vmem [shape: f32[2,64], index: 0, kind: input, shape index: {}]
  %s1 = inlined_call_operand.hbm [shape: f32[2,64], index: 1, kind: output, shape index: {}]
  %s2 = sld [smem:[#allocation0]]
  $region14: #{vit_b32_forward.27} parent=0
    _
  %s4 = ssub.s32 1, %s2
  %s5 = scalar_select 0, %s4, %s2
  $region1: #{vit_b32_forward.27} parent=0
    #allocation2 [shape = 'u8[1024]{0}', space=vmem, size = 0x400, scoped, tag = 'output window, operand 0, single buffered']
    #allocation3 [shape = 's32[1]{0}', space=sflag, size = 0x4, scoped, tag = 'scoped memory for vit_b32_forward.27']
    %6 = vsyncpa [#allocation3], 0
    // Predicated region
    $region2: #{vit_b32_forward.27} parent=1 // pred_check
      _
    $region3: #{vit_b32_forward.27} parent=1 // pred_check_branch
      %8 = sbr.rel (0) target = $region5
    $region4: #{vit_b32_forward.27} parent=1 // pred_region
      _
    $region5: #{vit_b32_forward.27} parent=1 // pred_fallthru
      _
    %v9 = vld [vmem:[%s0] sm:$0x3]
    %v10 = vmul.f32 %v9, %v9
    %vm11 = vcmask 517120
    %v12 = vsel %vm11, %v10, 0.0
    %13 = vadd.xlane.f32.xlu0 %v12
    %v14 = vpop.xlane.xlu0 %13
    %v15 = vrsqrt.pop %v14
    %v16 = vmul.f32 %v15, %v14
    %v17 = vmul.f32 %v16, %v15
    %v18 = vmul.f32 0.5, %v17
    %v19 = vsub.f32 1.5, %v18
    %v20 = vmul.f32 %v15, %v19
    %v21 = vmul.f32 %v14, %v20
    %vm22 = vcmp.eq.f32.partialorder %v14, inf
    %v23 = vsel %vm22, %v14, %v21
    %vm24 = vcmp.eq.f32.partialorder %v14, 0.0
    %v25 = vand.u32 %v14, 2147483648
    %v26 = vsel %vm24, %v25, %v23
    %v27 = vmax.f32 %v26, 1e-12
    %v28 = vrcp.pop %v27
    %v29 = vmul.f32 %v27, %v28
    %v30 = vsub.f32 1.0, %v29
    %v31 = vmul.f32 %v28, %v30
    %v32 = vadd.f32 %v28, %v31
    %vm33 = vweird.f32 %v27
    %vm34 = vweird.f32 %v28
    %vm35 = vmor %vm33, %vm34
    %v36 = vsel %vm35, %v28, %v32
    %v37 = vand.u32 2147483647, %v27
    %vm38 = vcmp.eq.f32.partialorder %v37, 8.507059e+37
    %v39 = vand.u32 %v27, 2147483648
    %v40 = vor.u32 1.1754944e-38, %v39
    %v41 = vsel %vm38, %v40, %v36
    %v42 = vmul.f32 %v9, %v41
    %43 = vst.msk [vmem:[#allocation2] sm:$0x3] %vm11, %v42
    // Predicated region
    $region6: #{vit_b32_forward.27} parent=1 // pred_check
      _
    $region7: #{vit_b32_forward.27} parent=1 // pred_check_branch
      %45 = sbr.rel (0) target = $region9
    $region8: #{vit_b32_forward.27} parent=1 // pred_region
      %47 = vsyncadd [#allocation3], 0
      %s49 = sshll.u32 [#allocation2], 4
      %s50 = int_to_ptr.vmem [resolvable:$true] %s49
      %s51 = sshll.u32 %s1, 4
      %s52 = int_to_ptr.hbm [resolvable:$true] %s51
      %54 = dma.vmem_to_hbm [thread:$0]  %s50, 32, %s52, [#allocation3]
    $region9: #{vit_b32_forward.27} parent=1 // pred_fallthru
      _
    // Predicated region
    $region10: #{vit_b32_forward.27} parent=1 // pred_check
      _
    $region11: #{vit_b32_forward.27} parent=1 // pred_check_branch
      %56 = sbr.rel (0) target = $region13
    $region12: #{vit_b32_forward.27} parent=1 // pred_region
      %58 = dma.done [#allocation3], 32
    $region13: #{vit_b32_forward.27} parent=1 // pred_fallthru
      _
    %59 = vsyncpa [#allocation3], 1

</llo_original>
